<compile_context>
chip_gen: v6e
topology: v6e:2x2x1
jax: 0.10.0
libtpu: 0.0.40
codegen_flags: <defaults>
</compile_context>

<pallas_src>
import jax
import jax.numpy as jnp
from jax import lax
from jax.experimental import pallas as pl
from jax.experimental.pallas import tpu as pltpu

NC = 16                 # conv output channels
KSZ = 5                 # conv kernel size
IMG = 28                # 16*12*12 classifier input implies 28x28 single-channel input
CONV = IMG - KSZ + 1    # 24
POOLED = CONV // 2      # 12
PP = POOLED * POOLED    # 144  pooled pixels per image (lane axis within an image)
WIN = KSZ + 1           # 6    stride-2 window offsets per axis
NWIN = WIN * WIN        # 36   combined (pool offset + tap) windows
FLAT = NC * PP          # 2304
HID = 256
NUM_CLASSES = 10
MAX_TN = 128            # images per grid step (cap)
CHUNK = 8               # images per in-kernel conv matmul
CHPP = CHUNK * PP       # 1152 = 9*128 lane-aligned


def _round_up(a, m):
    return ((a + m - 1) // m) * m


# ----------------------------- Fused kernel -----------------------------
def fused_kernel(xcol_ref, wall_ref, bconv_ref, w1p_ref, b1_ref, w2_ref, b2_ref,
                 o_ref, pooled_ref, acc_ref):
    # xcol_ref  : (36, TN*144) bf16  im2col, lane index = n*144 + pooled_pixel
    # wall_ref  : (64, 36)     bf16  conv weights, row = pool_offset*16 + out_channel
    # bconv_ref : (64, 1)      f32   conv bias tiled over the 4 pool offsets
    # w1p_ref   : (16, 144, 256) bf16  Linear1 weights, per-channel slabs (channel-major flatten)
    # b1_ref    : (1, 256) f32 ; w2_ref : (256, 10) f32 ; b2_ref : (1, 10) f32
    # o_ref     : (TN, 10) f32
    # pooled_ref: (16, TN, 144) bf16 VMEM scratch ; acc_ref: (TN, 256) f32 VMEM scratch
    tn = pooled_ref.shape[1]
    wall = wall_ref[...]
    bconv = bconv_ref[...]

    # ---- Stage 1: conv + bias + ReLU + 2x2 max-pool, one MXU matmul per CHUNK images ----
    for g in range(tn // CHUNK):
        xg = xcol_ref[:, g * CHPP:(g + 1) * CHPP]                          # (36, 1152) bf16
        act = jnp.dot(wall, xg, preferred_element_type=jnp.float32)        # (64, 1152) f32
        act = jnp.maximum(act + bconv, 0.0)
        pooled = jnp.maximum(jnp.maximum(act[0:NC], act[NC:2 * NC]),
                             jnp.maximum(act[2 * NC:3 * NC], act[3 * NC:4 * NC]))  # (16, 1152)
        pooled = pooled.astype(pooled_ref.dtype)
        # bridge: channels stay leading, (image, pixel) split off the lane axis
        pooled_ref[:, g * CHUNK:(g + 1) * CHUNK, :] = pooled.reshape(NC, CHUNK, PP)

    # ---- Stage 2: Linear(2304, 256) = sum_c (TN,144)@(144,256) bf16 matmuls, f32 acc ----
    acc_ref[...] = jnp.dot(pooled_ref[0], w1p_ref[0], preferred_element_type=jnp.float32)
    for c in range(1, NC):
        acc_ref[...] += jnp.dot(pooled_ref[c], w1p_ref[c], preferred_element_type=jnp.float32)
    h = jnp.maximum(acc_ref[...] + b1_ref[...], 0.0)                        # (TN, 256) f32

    # ---- Stage 3: Linear(256, 10) ----
    o_ref[...] = jnp.dot(h, w2_ref[...], preferred_element_type=jnp.float32) + b2_ref[...]


# ----------------------------- Parameter packing (one-time) -----------------------------
def pack_params(params):
    """Repack PyTorch-convention params into kernel layouts (done once, not per call)."""
    w_conv, b_conv, w1, b1, w2, b2 = params
    # wall[pw*16 + c, a*6 + b] = w_conv[c, 0, a-pi, b-pj] (zero outside the 5x5 taps),
    # where pw = pi*2 + pj is the 2x2 pooling offset and (a, b) the stride-2 window offset.
    wall = jnp.zeros((4, NC, WIN, WIN), jnp.float32)
    for pi in range(2):
        for pj in range(2):
            wall = wall.at[pi * 2 + pj, :, pi:pi + KSZ, pj:pj + KSZ].set(w_conv[:, 0])
    wall = wall.reshape(4 * NC, NWIN).astype(jnp.bfloat16)
    bconv = jnp.tile(b_conv, 4).reshape(4 * NC, 1).astype(jnp.float32)
    # w1p[c, pos, o] = w1[o, c*144 + pos]  -> matches torch.flatten channel-major order.
    w1p = jnp.transpose(w1.reshape(HID, NC, PP), (1, 2, 0)).astype(jnp.bfloat16)
    return (wall, bconv, w1p,
            b1.reshape(1, HID).astype(jnp.float32),
            w2.T.astype(jnp.float32),
            b2.reshape(1, NUM_CLASSES).astype(jnp.float32))


# ----------------------------- Forward -----------------------------
def model2_forward(x, packed):
    wall, bconv, w1p, b1, w2t, b2 = packed
    n = x.shape[0]
    tn = min(MAX_TN, _round_up(n, CHUNK))          # images per grid step (multiple of 8)
    n_pad = _round_up(n, tn)
    if n_pad != n:
        x = jnp.pad(x, ((0, n_pad - n), (0, 0), (0, 0), (0, 0)))

    # Stride-2 window im2col, lane-dense & bf16:
    #   xcol[a*6+b, n*144 + i*12+j] = x[n, 0, 2i+a, 2j+b]
    x2 = x[:, 0].astype(jnp.bfloat16)                                             # (N, 28, 28)
    rows = jnp.stack([x2[:, a:a + 2 * POOLED:2, :] for a in range(WIN)], axis=0)  # (6,N,12,28)
    wins = jnp.stack([rows[..., b:b + 2 * POOLED:2] for b in range(WIN)], axis=1) # (6,6,N,12,12)
    xcol = wins.reshape(NWIN, n_pad * PP)                                          # (36, N*144)

    out = pl.pallas_call(
        fused_kernel,
        out_shape=jax.ShapeDtypeStruct((n_pad, NUM_CLASSES), jnp.float32),
        grid=(n_pad // tn,),
        in_specs=[
            pl.BlockSpec((NWIN, tn * PP), lambda i: (0, i)),        # activations: batch-tiled
            pl.BlockSpec((4 * NC, NWIN), lambda i: (0, 0)),         # conv weights: resident
            pl.BlockSpec((4 * NC, 1), lambda i: (0, 0)),
            pl.BlockSpec((NC, PP, HID), lambda i: (0, 0, 0)),       # w1 (bf16): resident
            pl.BlockSpec((1, HID), lambda i: (0, 0)),
            pl.BlockSpec((HID, NUM_CLASSES), lambda i: (0, 0)),
            pl.BlockSpec((1, NUM_CLASSES), lambda i: (0, 0)),
        ],
        out_specs=pl.BlockSpec((tn, NUM_CLASSES), lambda i: (i, 0)),
        scratch_shapes=[pltpu.VMEM((NC, tn, PP), jnp.bfloat16),     # pooled, channel-leading
                        pltpu.VMEM((tn, HID), jnp.float32)],        # Linear1 accumulator
        compiler_params=pltpu.CompilerParams(dimension_semantics=("parallel",)),
    )(xcol, wall, bconv, w1p, b1, w2t, b2)
    return out[:n]


# ----------------------------- Reference (plain JAX, f32) -----------------------------
def model2_reference(x, params):
    w_conv, b_conv, w1, b1, w2, b2 = params
    conv = lax.conv_general_dilated(
        x, w_conv, window_strides=(1, 1), padding='VALID',
        dimension_numbers=('NCHW', 'OIHW', 'NCHW'))
    conv = jnp.maximum(conv + b_conv[None, :, None, None], 0.0)
    pooled = lax.reduce_window(conv, -jnp.inf, lax.max,
                               (1, 1, 2, 2), (1, 1, 2, 2), 'VALID')
    flat = pooled.reshape(x.shape[0], -1)
    h = jnp.maximum(jnp.dot(flat, w1.T, precision=lax.Precision.HIGHEST) + b1, 0.0)
    return jnp.dot(h, w2.T, precision=lax.Precision.HIGHEST) + b2


# ----------------------------- Parameter init (deterministic) -----------------------------
def init_params(key):
    ks = jax.random.split(key, 6)
    fan_conv = 1 * KSZ * KSZ
    w_conv = jax.random.uniform(ks[0], (NC, 1, KSZ, KSZ), jnp.float32, -1.0, 1.0) / jnp.sqrt(fan_conv)
    b_conv = jax.random.uniform(ks[1], (NC,), jnp.float32, -1.0, 1.0) / jnp.sqrt(fan_conv)
    w1 = jax.random.uniform(ks[2], (HID, FLAT), jnp.float32, -1.0, 1.0) / jnp.sqrt(FLAT)
    b1 = jax.random.uniform(ks[3], (HID,), jnp.float32, -1.0, 1.0) / jnp.sqrt(FLAT)
    w2 = jax.random.uniform(ks[4], (NUM_CLASSES, HID), jnp.float32, -1.0, 1.0) / jnp.sqrt(HID)
    b2 = jax.random.uniform(ks[5], (NUM_CLASSES,), jnp.float32, -1.0, 1.0) / jnp.sqrt(HID)
    return (w_conv, b_conv, w1, b1, w2, b2)


if __name__ == "__main__":
    key = jax.random.PRNGKey(0)
    k_x, k_p = jax.random.split(key)
    params = init_params(k_p)
    packed = pack_params(params)            # one-time weight repack (not on the forward path)
    fwd = jax.jit(model2_forward)

    # small demo batch
    x = jax.random.normal(k_x, (2, 1, IMG, IMG), dtype=jnp.float32)
    out = jax.block_until_ready(fwd(x, packed))
    ref = jax.block_until_ready(model2_reference(x, params))
    assert out.shape == (2, NUM_CLASSES), out.shape
    assert jnp.allclose(out, ref, rtol=3e-2, atol=3e-2), (
        f"max abs diff {jnp.max(jnp.abs(out - ref))}")

    # larger batch: exercises TN=128 tiling, a multi-step grid and batch padding
    x2 = jax.random.normal(jax.random.PRNGKey(1), (144, 1, IMG, IMG), dtype=jnp.float32)
    out2 = jax.block_until_ready(fwd(x2, packed))
    ref2 = jax.block_until_ready(model2_reference(x2, params))
    assert out2.shape == (144, NUM_CLASSES), out2.shape
    assert jnp.allclose(out2, ref2, rtol=3e-2, atol=3e-2), (
        f"max abs diff {jnp.max(jnp.abs(out2 - ref2))}")

    print("KERNEL_OK")
</pallas_src>

<mosaic_0001>
module attributes {stable_mosaic.version = 11 : i64} {
  func.func @fused_kernel(%arg0: i32, %arg1: memref<36x1152xbf16, #tpu.memory_space<vmem>>, %arg2: memref<64x36xbf16, #tpu.memory_space<vmem>>, %arg3: memref<64x1xf32, #tpu.memory_space<vmem>>, %arg4: memref<16x144x256xbf16, #tpu.memory_space<vmem>>, %arg5: memref<1x256xf32, #tpu.memory_space<vmem>>, %arg6: memref<256x10xf32, #tpu.memory_space<vmem>>, %arg7: memref<1x10xf32, #tpu.memory_space<vmem>>, %arg8: memref<8x10xf32, #tpu.memory_space<vmem>>, %arg9: memref<16x8x144xbf16, #tpu.memory_space<vmem>>, %arg10: memref<8x256xf32, #tpu.memory_space<vmem>>) attributes {dimension_semantics = [#tpu.dimension_semantics<parallel>], iteration_bounds = array<i64: 1>, scalar_prefetch = 0 : i64, scratch_operands = 2 : i64, tpu.core_type = #tpu.core_type<tc>, window_params = [{transform_indices = @transform_0, window_bounds = array<i64: 36, 1152>}, {pipeline_mode = #tpu.pipeline_mode<synchronous>, transform_indices = @transform_1, window_bounds = array<i64: 64, 36>}, {pipeline_mode = #tpu.pipeline_mode<synchronous>, transform_indices = @transform_2, window_bounds = array<i64: 64, 1>}, {pipeline_mode = #tpu.pipeline_mode<synchronous>, transform_indices = @transform_3, window_bounds = array<i64: 16, 144, 256>}, {pipeline_mode = #tpu.pipeline_mode<synchronous>, transform_indices = @transform_4, window_bounds = array<i64: 1, 256>}, {pipeline_mode = #tpu.pipeline_mode<synchronous>, transform_indices = @transform_5, window_bounds = array<i64: 256, 10>}, {pipeline_mode = #tpu.pipeline_mode<synchronous>, transform_indices = @transform_6, window_bounds = array<i64: 1, 10>}, {transform_indices = @transform_7, window_bounds = array<i64: 8, 10>}]} {
    %c0 = arith.constant 0 : index
    %c0_0 = arith.constant 0 : index
    %0 = vector.load %arg2[%c0, %c0_0] : memref<64x36xbf16, #tpu.memory_space<vmem>>, vector<64x36xbf16>
    %c0_1 = arith.constant 0 : index
    %c0_2 = arith.constant 0 : index
    %1 = vector.load %arg3[%c0_1, %c0_2] : memref<64x1xf32, #tpu.memory_space<vmem>>, vector<64x1xf32>
    %c0_3 = arith.constant 0 : index
    %c0_4 = arith.constant 0 : index
    %2 = vector.load %arg1[%c0_3, %c0_4] : memref<36x1152xbf16, #tpu.memory_space<vmem>>, vector<36x1152xbf16>
    %cst = arith.constant dense<0.000000e+00> : vector<64x1152xf32>
    %3 = tpu.matmul %0, %2, %cst {dimension_numbers = #tpu.dot_dimension_numbers<[1], [0], [0], [1], [0, 0, 1, 1], [], []>} : vector<64x36xbf16>, vector<36x1152xbf16>, vector<64x1152xf32> -> vector<64x1152xf32>
    %4 = vector.broadcast %1 : vector<64x1xf32> to vector<64x1152xf32>
    %5 = arith.addf %3, %4 : vector<64x1152xf32>
    %cst_5 = arith.constant 0.000000e+00 : f32
    %6 = vector.broadcast %cst_5 : f32 to vector<64x1152xf32>
    %7 = arith.maximumf %5, %6 : vector<64x1152xf32>
    %8 = vector.extract_strided_slice %7 {offsets = [0, 0], sizes = [16, 1152], strides = [1, 1]} : vector<64x1152xf32> to vector<16x1152xf32>
    %9 = vector.extract_strided_slice %7 {offsets = [16, 0], sizes = [16, 1152], strides = [1, 1]} : vector<64x1152xf32> to vector<16x1152xf32>
    %10 = arith.maximumf %8, %9 : vector<16x1152xf32>
    %11 = vector.extract_strided_slice %7 {offsets = [32, 0], sizes = [16, 1152], strides = [1, 1]} : vector<64x1152xf32> to vector<16x1152xf32>
    %12 = vector.extract_strided_slice %7 {offsets = [48, 0], sizes = [16, 1152], strides = [1, 1]} : vector<64x1152xf32> to vector<16x1152xf32>
    %13 = arith.maximumf %11, %12 : vector<16x1152xf32>
    %14 = arith.maximumf %10, %13 : vector<16x1152xf32>
    %15 = arith.truncf %14 : vector<16x1152xf32> to vector<16x1152xbf16>
    %16 = vector.shape_cast %15 : vector<16x1152xbf16> to vector<16x8x144xbf16>
    %c0_6 = arith.constant 0 : index
    %c0_7 = arith.constant 0 : index
    %c0_8 = arith.constant 0 : index
    %17 = vector.load %arg9[%c0_6, %c0_7, %c0_8] : memref<16x8x144xbf16, #tpu.memory_space<vmem>>, vector<16x8x144xbf16>
    tpu.vector_store %arg9[%c0_6, %c0_7, %c0_8], %16 {strides = array<i32>} : memref<16x8x144xbf16, #tpu.memory_space<vmem>>, vector<16x8x144xbf16>,
    %c0_9 = arith.constant 0 : index
    %c0_10 = arith.constant 0 : index
    %c0_11 = arith.constant 0 : index
    %18 = vector.load %arg9[%c0_9, %c0_10, %c0_11] : memref<16x8x144xbf16, #tpu.memory_space<vmem>>, vector<1x8x144xbf16>
    %19 = vector.shape_cast %18 : vector<1x8x144xbf16> to vector<8x144xbf16>
    %c0_12 = arith.constant 0 : index
    %c0_13 = arith.constant 0 : index
    %c0_14 = arith.constant 0 : index
    %20 = vector.load %arg4[%c0_12, %c0_13, %c0_14] : memref<16x144x256xbf16, #tpu.memory_space<vmem>>, vector<1x144x256xbf16>
    %21 = vector.shape_cast %20 : vector<1x144x256xbf16> to vector<144x256xbf16>
    %cst_15 = arith.constant dense<0.000000e+00> : vector<8x256xf32>
    %22 = tpu.matmul %19, %21, %cst_15 {dimension_numbers = #tpu.dot_dimension_numbers<[1], [0], [0], [1], [0, 0, 1, 1], [], []>} : vector<8x144xbf16>, vector<144x256xbf16>, vector<8x256xf32> -> vector<8x256xf32>
    %c0_16 = arith.constant 0 : index
    %c0_17 = arith.constant 0 : index
    %23 = vector.load %arg10[%c0_16, %c0_17] : memref<8x256xf32, #tpu.memory_space<vmem>>, vector<8x256xf32>
    tpu.vector_store %arg10[%c0_16, %c0_17], %22 {strides = array<i32>} : memref<8x256xf32, #tpu.memory_space<vmem>>, vector<8x256xf32>,
    %c0_18 = arith.constant 0 : index
    %c0_19 = arith.constant 0 : index
    %24 = vector.load %arg10[%c0_18, %c0_19] : memref<8x256xf32, #tpu.memory_space<vmem>>, vector<8x256xf32>
    %c1 = arith.constant 1 : index
    %c0_20 = arith.constant 0 : index
    %c0_21 = arith.constant 0 : index
    %25 = vector.load %arg9[%c1, %c0_20, %c0_21] : memref<16x8x144xbf16, #tpu.memory_space<vmem>>, vector<1x8x144xbf16>
    %26 = vector.shape_cast %25 : vector<1x8x144xbf16> to vector<8x144xbf16>
    %c1_22 = arith.constant 1 : index
    %c0_23 = arith.constant 0 : index
    %c0_24 = arith.constant 0 : index
    %27 = vector.load %arg4[%c1_22, %c0_23, %c0_24] : memref<16x144x256xbf16, #tpu.memory_space<vmem>>, vector<1x144x256xbf16>
    %28 = vector.shape_cast %27 : vector<1x144x256xbf16> to vector<144x256xbf16>
    %cst_25 = arith.constant dense<0.000000e+00> : vector<8x256xf32>
    %29 = tpu.matmul %26, %28, %cst_25 {dimension_numbers = #tpu.dot_dimension_numbers<[1], [0], [0], [1], [0, 0, 1, 1], [], []>} : vector<8x144xbf16>, vector<144x256xbf16>, vector<8x256xf32> -> vector<8x256xf32>
    %30 = arith.addf %24, %29 : vector<8x256xf32>
    %c0_26 = arith.constant 0 : index
    %c0_27 = arith.constant 0 : index
    %31 = vector.load %arg10[%c0_26, %c0_27] : memref<8x256xf32, #tpu.memory_space<vmem>>, vector<8x256xf32>
    tpu.vector_store %arg10[%c0_26, %c0_27], %30 {strides = array<i32>} : memref<8x256xf32, #tpu.memory_space<vmem>>, vector<8x256xf32>,
    %c0_28 = arith.constant 0 : index
    %c0_29 = arith.constant 0 : index
    %32 = vector.load %arg10[%c0_28, %c0_29] : memref<8x256xf32, #tpu.memory_space<vmem>>, vector<8x256xf32>
    %c2 = arith.constant 2 : index
    %c0_30 = arith.constant 0 : index
    %c0_31 = arith.constant 0 : index
    %33 = vector.load %arg9[%c2, %c0_30, %c0_31] : memref<16x8x144xbf16, #tpu.memory_space<vmem>>, vector<1x8x144xbf16>
    %34 = vector.shape_cast %33 : vector<1x8x144xbf16> to vector<8x144xbf16>
    %c2_32 = arith.constant 2 : index
    %c0_33 = arith.constant 0 : index
    %c0_34 = arith.constant 0 : index
    %35 = vector.load %arg4[%c2_32, %c0_33, %c0_34] : memref<16x144x256xbf16, #tpu.memory_space<vmem>>, vector<1x144x256xbf16>
    %36 = vector.shape_cast %35 : vector<1x144x256xbf16> to vector<144x256xbf16>
    %cst_35 = arith.constant dense<0.000000e+00> : vector<8x256xf32>
    %37 = tpu.matmul %34, %36, %cst_35 {dimension_numbers = #tpu.dot_dimension_numbers<[1], [0], [0], [1], [0, 0, 1, 1], [], []>} : vector<8x144xbf16>, vector<144x256xbf16>, vector<8x256xf32> -> vector<8x256xf32>
    %38 = arith.addf %32, %37 : vector<8x256xf32>
    %c0_36 = arith.constant 0 : index
    %c0_37 = arith.constant 0 : index
    %39 = vector.load %arg10[%c0_36, %c0_37] : memref<8x256xf32, #tpu.memory_space<vmem>>, vector<8x256xf32>
    tpu.vector_store %arg10[%c0_36, %c0_37], %38 {strides = array<i32>} : memref<8x256xf32, #tpu.memory_space<vmem>>, vector<8x256xf32>,
    %c0_38 = arith.constant 0 : index
    %c0_39 = arith.constant 0 : index
    %40 = vector.load %arg10[%c0_38, %c0_39] : memref<8x256xf32, #tpu.memory_space<vmem>>, vector<8x256xf32>
    %c3 = arith.constant 3 : index
    %c0_40 = arith.constant 0 : index
    %c0_41 = arith.constant 0 : index
    %41 = vector.load %arg9[%c3, %c0_40, %c0_41] : memref<16x8x144xbf16, #tpu.memory_space<vmem>>, vector<1x8x144xbf16>
    %42 = vector.shape_cast %41 : vector<1x8x144xbf16> to vector<8x144xbf16>
    %c3_42 = arith.constant 3 : index
    %c0_43 = arith.constant 0 : index
    %c0_44 = arith.constant 0 : index
    %43 = vector.load %arg4[%c3_42, %c0_43, %c0_44] : memref<16x144x256xbf16, #tpu.memory_space<vmem>>, vector<1x144x256xbf16>
    %44 = vector.shape_cast %43 : vector<1x144x256xbf16> to vector<144x256xbf16>
    %cst_45 = arith.constant dense<0.000000e+00> : vector<8x256xf32>
    %45 = tpu.matmul %42, %44, %cst_45 {dimension_numbers = #tpu.dot_dimension_numbers<[1], [0], [0], [1], [0, 0, 1, 1], [], []>} : vector<8x144xbf16>, vector<144x256xbf16>, vector<8x256xf32> -> vector<8x256xf32>
    %46 = arith.addf %40, %45 : vector<8x256xf32>
    %c0_46 = arith.constant 0 : index
    %c0_47 = arith.constant 0 : index
    %47 = vector.load %arg10[%c0_46, %c0_47] : memref<8x256xf32, #tpu.memory_space<vmem>>, vector<8x256xf32>
    tpu.vector_store %arg10[%c0_46, %c0_47], %46 {strides = array<i32>} : memref<8x256xf32, #tpu.memory_space<vmem>>, vector<8x256xf32>,
    %c0_48 = arith.constant 0 : index
    %c0_49 = arith.constant 0 : index
    %48 = vector.load %arg10[%c0_48, %c0_49] : memref<8x256xf32, #tpu.memory_space<vmem>>, vector<8x256xf32>
    %c4 = arith.constant 4 : index
    %c0_50 = arith.constant 0 : index
    %c0_51 = arith.constant 0 : index
    %49 = vector.load %arg9[%c4, %c0_50, %c0_51] : memref<16x8x144xbf16, #tpu.memory_space<vmem>>, vector<1x8x144xbf16>
    %50 = vector.shape_cast %49 : vector<1x8x144xbf16> to vector<8x144xbf16>
    %c4_52 = arith.constant 4 : index
    %c0_53 = arith.constant 0 : index
    %c0_54 = arith.constant 0 : index
    %51 = vector.load %arg4[%c4_52, %c0_53, %c0_54] : memref<16x144x256xbf16, #tpu.memory_space<vmem>>, vector<1x144x256xbf16>
    %52 = vector.shape_cast %51 : vector<1x144x256xbf16> to vector<144x256xbf16>
    %cst_55 = arith.constant dense<0.000000e+00> : vector<8x256xf32>
    %53 = tpu.matmul %50, %52, %cst_55 {dimension_numbers = #tpu.dot_dimension_numbers<[1], [0], [0], [1], [0, 0, 1, 1], [], []>} : vector<8x144xbf16>, vector<144x256xbf16>, vector<8x256xf32> -> vector<8x256xf32>
    %54 = arith.addf %48, %53 : vector<8x256xf32>
    %c0_56 = arith.constant 0 : index
    %c0_57 = arith.constant 0 : index
    %55 = vector.load %arg10[%c0_56, %c0_57] : memref<8x256xf32, #tpu.memory_space<vmem>>, vector<8x256xf32>
    tpu.vector_store %arg10[%c0_56, %c0_57], %54 {strides = array<i32>} : memref<8x256xf32, #tpu.memory_space<vmem>>, vector<8x256xf32>,
    %c0_58 = arith.constant 0 : index
    %c0_59 = arith.constant 0 : index
    %56 = vector.load %arg10[%c0_58, %c0_59] : memref<8x256xf32, #tpu.memory_space<vmem>>, vector<8x256xf32>
    %c5 = arith.constant 5 : index
    %c0_60 = arith.constant 0 : index
    %c0_61 = arith.constant 0 : index
    %57 = vector.load %arg9[%c5, %c0_60, %c0_61] : memref<16x8x144xbf16, #tpu.memory_space<vmem>>, vector<1x8x144xbf16>
    %58 = vector.shape_cast %57 : vector<1x8x144xbf16> to vector<8x144xbf16>
    %c5_62 = arith.constant 5 : index
    %c0_63 = arith.constant 0 : index
    %c0_64 = arith.constant 0 : index
    %59 = vector.load %arg4[%c5_62, %c0_63, %c0_64] : memref<16x144x256xbf16, #tpu.memory_space<vmem>>, vector<1x144x256xbf16>
    %60 = vector.shape_cast %59 : vector<1x144x256xbf16> to vector<144x256xbf16>
    %cst_65 = arith.constant dense<0.000000e+00> : vector<8x256xf32>
    %61 = tpu.matmul %58, %60, %cst_65 {dimension_numbers = #tpu.dot_dimension_numbers<[1], [0], [0], [1], [0, 0, 1, 1], [], []>} : vector<8x144xbf16>, vector<144x256xbf16>, vector<8x256xf32> -> vector<8x256xf32>
    %62 = arith.addf %56, %61 : vector<8x256xf32>
    %c0_66 = arith.constant 0 : index
    %c0_67 = arith.constant 0 : index
    %63 = vector.load %arg10[%c0_66, %c0_67] : memref<8x256xf32, #tpu.memory_space<vmem>>, vector<8x256xf32>
    tpu.vector_store %arg10[%c0_66, %c0_67], %62 {strides = array<i32>} : memref<8x256xf32, #tpu.memory_space<vmem>>, vector<8x256xf32>,
    %c0_68 = arith.constant 0 : index
    %c0_69 = arith.constant 0 : index
    %64 = vector.load %arg10[%c0_68, %c0_69] : memref<8x256xf32, #tpu.memory_space<vmem>>, vector<8x256xf32>
    %c6 = arith.constant 6 : index
    %c0_70 = arith.constant 0 : index
    %c0_71 = arith.constant 0 : index
    %65 = vector.load %arg9[%c6, %c0_70, %c0_71] : memref<16x8x144xbf16, #tpu.memory_space<vmem>>, vector<1x8x144xbf16>
    %66 = vector.shape_cast %65 : vector<1x8x144xbf16> to vector<8x144xbf16>
    %c6_72 = arith.constant 6 : index
    %c0_73 = arith.constant 0 : index
    %c0_74 = arith.constant 0 : index
    %67 = vector.load %arg4[%c6_72, %c0_73, %c0_74] : memref<16x144x256xbf16, #tpu.memory_space<vmem>>, vector<1x144x256xbf16>
    %68 = vector.shape_cast %67 : vector<1x144x256xbf16> to vector<144x256xbf16>
    %cst_75 = arith.constant dense<0.000000e+00> : vector<8x256xf32>
    %69 = tpu.matmul %66, %68, %cst_75 {dimension_numbers = #tpu.dot_dimension_numbers<[1], [0], [0], [1], [0, 0, 1, 1], [], []>} : vector<8x144xbf16>, vector<144x256xbf16>, vector<8x256xf32> -> vector<8x256xf32>
    %70 = arith.addf %64, %69 : vector<8x256xf32>
    %c0_76 = arith.constant 0 : index
    %c0_77 = arith.constant 0 : index
    %71 = vector.load %arg10[%c0_76, %c0_77] : memref<8x256xf32, #tpu.memory_space<vmem>>, vector<8x256xf32>
    tpu.vector_store %arg10[%c0_76, %c0_77], %70 {strides = array<i32>} : memref<8x256xf32, #tpu.memory_space<vmem>>, vector<8x256xf32>,
    %c0_78 = arith.constant 0 : index
    %c0_79 = arith.constant 0 : index
    %72 = vector.load %arg10[%c0_78, %c0_79] : memref<8x256xf32, #tpu.memory_space<vmem>>, vector<8x256xf32>
    %c7 = arith.constant 7 : index
    %c0_80 = arith.constant 0 : index
    %c0_81 = arith.constant 0 : index
    %73 = vector.load %arg9[%c7, %c0_80, %c0_81] : memref<16x8x144xbf16, #tpu.memory_space<vmem>>, vector<1x8x144xbf16>
    %74 = vector.shape_cast %73 : vector<1x8x144xbf16> to vector<8x144xbf16>
    %c7_82 = arith.constant 7 : index
    %c0_83 = arith.constant 0 : index
    %c0_84 = arith.constant 0 : index
    %75 = vector.load %arg4[%c7_82, %c0_83, %c0_84] : memref<16x144x256xbf16, #tpu.memory_space<vmem>>, vector<1x144x256xbf16>
    %76 = vector.shape_cast %75 : vector<1x144x256xbf16> to vector<144x256xbf16>
    %cst_85 = arith.constant dense<0.000000e+00> : vector<8x256xf32>
    %77 = tpu.matmul %74, %76, %cst_85 {dimension_numbers = #tpu.dot_dimension_numbers<[1], [0], [0], [1], [0, 0, 1, 1], [], []>} : vector<8x144xbf16>, vector<144x256xbf16>, vector<8x256xf32> -> vector<8x256xf32>
    %78 = arith.addf %72, %77 : vector<8x256xf32>
    %c0_86 = arith.constant 0 : index
    %c0_87 = arith.constant 0 : index
    %79 = vector.load %arg10[%c0_86, %c0_87] : memref<8x256xf32, #tpu.memory_space<vmem>>, vector<8x256xf32>
    tpu.vector_store %arg10[%c0_86, %c0_87], %78 {strides = array<i32>} : memref<8x256xf32, #tpu.memory_space<vmem>>, vector<8x256xf32>,
    %c0_88 = arith.constant 0 : index
    %c0_89 = arith.constant 0 : index
    %80 = vector.load %arg10[%c0_88, %c0_89] : memref<8x256xf32, #tpu.memory_space<vmem>>, vector<8x256xf32>
    %c8 = arith.constant 8 : index
    %c0_90 = arith.constant 0 : index
    %c0_91 = arith.constant 0 : index
    %81 = vector.load %arg9[%c8, %c0_90, %c0_91] : memref<16x8x144xbf16, #tpu.memory_space<vmem>>, vector<1x8x144xbf16>
    %82 = vector.shape_cast %81 : vector<1x8x144xbf16> to vector<8x144xbf16>
    %c8_92 = arith.constant 8 : index
    %c0_93 = arith.constant 0 : index
    %c0_94 = arith.constant 0 : index
    %83 = vector.load %arg4[%c8_92, %c0_93, %c0_94] : memref<16x144x256xbf16, #tpu.memory_space<vmem>>, vector<1x144x256xbf16>
    %84 = vector.shape_cast %83 : vector<1x144x256xbf16> to vector<144x256xbf16>
    %cst_95 = arith.constant dense<0.000000e+00> : vector<8x256xf32>
    %85 = tpu.matmul %82, %84, %cst_95 {dimension_numbers = #tpu.dot_dimension_numbers<[1], [0], [0], [1], [0, 0, 1, 1], [], []>} : vector<8x144xbf16>, vector<144x256xbf16>, vector<8x256xf32> -> vector<8x256xf32>
    %86 = arith.addf %80, %85 : vector<8x256xf32>
    %c0_96 = arith.constant 0 : index
    %c0_97 = arith.constant 0 : index
    %87 = vector.load %arg10[%c0_96, %c0_97] : memref<8x256xf32, #tpu.memory_space<vmem>>, vector<8x256xf32>
    tpu.vector_store %arg10[%c0_96, %c0_97], %86 {strides = array<i32>} : memref<8x256xf32, #tpu.memory_space<vmem>>, vector<8x256xf32>,
    %c0_98 = arith.constant 0 : index
    %c0_99 = arith.constant 0 : index
    %88 = vector.load %arg10[%c0_98, %c0_99] : memref<8x256xf32, #tpu.memory_space<vmem>>, vector<8x256xf32>
    %c9 = arith.constant 9 : index
    %c0_100 = arith.constant 0 : index
    %c0_101 = arith.constant 0 : index
    %89 = vector.load %arg9[%c9, %c0_100, %c0_101] : memref<16x8x144xbf16, #tpu.memory_space<vmem>>, vector<1x8x144xbf16>
    %90 = vector.shape_cast %89 : vector<1x8x144xbf16> to vector<8x144xbf16>
    %c9_102 = arith.constant 9 : index
    %c0_103 = arith.constant 0 : index
    %c0_104 = arith.constant 0 : index
    %91 = vector.load %arg4[%c9_102, %c0_103, %c0_104] : memref<16x144x256xbf16, #tpu.memory_space<vmem>>, vector<1x144x256xbf16>
    %92 = vector.shape_cast %91 : vector<1x144x256xbf16> to vector<144x256xbf16>
    %cst_105 = arith.constant dense<0.000000e+00> : vector<8x256xf32>
    %93 = tpu.matmul %90, %92, %cst_105 {dimension_numbers = #tpu.dot_dimension_numbers<[1], [0], [0], [1], [0, 0, 1, 1], [], []>} : vector<8x144xbf16>, vector<144x256xbf16>, vector<8x256xf32> -> vector<8x256xf32>
    %94 = arith.addf %88, %93 : vector<8x256xf32>
    %c0_106 = arith.constant 0 : index
    %c0_107 = arith.constant 0 : index
    %95 = vector.load %arg10[%c0_106, %c0_107] : memref<8x256xf32, #tpu.memory_space<vmem>>, vector<8x256xf32>
    tpu.vector_store %arg10[%c0_106, %c0_107], %94 {strides = array<i32>} : memref<8x256xf32, #tpu.memory_space<vmem>>, vector<8x256xf32>,
    %c0_108 = arith.constant 0 : index
    %c0_109 = arith.constant 0 : index
    %96 = vector.load %arg10[%c0_108, %c0_109] : memref<8x256xf32, #tpu.memory_space<vmem>>, vector<8x256xf32>
    %c10 = arith.constant 10 : index
    %c0_110 = arith.constant 0 : index
    %c0_111 = arith.constant 0 : index
    %97 = vector.load %arg9[%c10, %c0_110, %c0_111] : memref<16x8x144xbf16, #tpu.memory_space<vmem>>, vector<1x8x144xbf16>
    %98 = vector.shape_cast %97 : vector<1x8x144xbf16> to vector<8x144xbf16>
    %c10_112 = arith.constant 10 : index
    %c0_113 = arith.constant 0 : index
    %c0_114 = arith.constant 0 : index
    %99 = vector.load %arg4[%c10_112, %c0_113, %c0_114] : memref<16x144x256xbf16, #tpu.memory_space<vmem>>, vector<1x144x256xbf16>
    %100 = vector.shape_cast %99 : vector<1x144x256xbf16> to vector<144x256xbf16>
    %cst_115 = arith.constant dense<0.000000e+00> : vector<8x256xf32>
    %101 = tpu.matmul %98, %100, %cst_115 {dimension_numbers = #tpu.dot_dimension_numbers<[1], [0], [0], [1], [0, 0, 1, 1], [], []>} : vector<8x144xbf16>, vector<144x256xbf16>, vector<8x256xf32> -> vector<8x256xf32>
    %102 = arith.addf %96, %101 : vector<8x256xf32>
    %c0_116 = arith.constant 0 : index
    %c0_117 = arith.constant 0 : index
    %103 = vector.load %arg10[%c0_116, %c0_117] : memref<8x256xf32, #tpu.memory_space<vmem>>, vector<8x256xf32>
    tpu.vector_store %arg10[%c0_116, %c0_117], %102 {strides = array<i32>} : memref<8x256xf32, #tpu.memory_space<vmem>>, vector<8x256xf32>,
    %c0_118 = arith.constant 0 : index
    %c0_119 = arith.constant 0 : index
    %104 = vector.load %arg10[%c0_118, %c0_119] : memref<8x256xf32, #tpu.memory_space<vmem>>, vector<8x256xf32>
    %c11 = arith.constant 11 : index
    %c0_120 = arith.constant 0 : index
    %c0_121 = arith.constant 0 : index
    %105 = vector.load %arg9[%c11, %c0_120, %c0_121] : memref<16x8x144xbf16, #tpu.memory_space<vmem>>, vector<1x8x144xbf16>
    %106 = vector.shape_cast %105 : vector<1x8x144xbf16> to vector<8x144xbf16>
    %c11_122 = arith.constant 11 : index
    %c0_123 = arith.constant 0 : index
    %c0_124 = arith.constant 0 : index
    %107 = vector.load %arg4[%c11_122, %c0_123, %c0_124] : memref<16x144x256xbf16, #tpu.memory_space<vmem>>, vector<1x144x256xbf16>
    %108 = vector.shape_cast %107 : vector<1x144x256xbf16> to vector<144x256xbf16>
    %cst_125 = arith.constant dense<0.000000e+00> : vector<8x256xf32>
    %109 = tpu.matmul %106, %108, %cst_125 {dimension_numbers = #tpu.dot_dimension_numbers<[1], [0], [0], [1], [0, 0, 1, 1], [], []>} : vector<8x144xbf16>, vector<144x256xbf16>, vector<8x256xf32> -> vector<8x256xf32>
    %110 = arith.addf %104, %109 : vector<8x256xf32>
    %c0_126 = arith.constant 0 : index
    %c0_127 = arith.constant 0 : index
    %111 = vector.load %arg10[%c0_126, %c0_127] : memref<8x256xf32, #tpu.memory_space<vmem>>, vector<8x256xf32>
    tpu.vector_store %arg10[%c0_126, %c0_127], %110 {strides = array<i32>} : memref<8x256xf32, #tpu.memory_space<vmem>>, vector<8x256xf32>,
    %c0_128 = arith.constant 0 : index
    %c0_129 = arith.constant 0 : index
    %112 = vector.load %arg10[%c0_128, %c0_129] : memref<8x256xf32, #tpu.memory_space<vmem>>, vector<8x256xf32>
    %c12 = arith.constant 12 : index
    %c0_130 = arith.constant 0 : index
    %c0_131 = arith.constant 0 : index
    %113 = vector.load %arg9[%c12, %c0_130, %c0_131] : memref<16x8x144xbf16, #tpu.memory_space<vmem>>, vector<1x8x144xbf16>
    %114 = vector.shape_cast %113 : vector<1x8x144xbf16> to vector<8x144xbf16>
    %c12_132 = arith.constant 12 : index
    %c0_133 = arith.constant 0 : index
    %c0_134 = arith.constant 0 : index
    %115 = vector.load %arg4[%c12_132, %c0_133, %c0_134] : memref<16x144x256xbf16, #tpu.memory_space<vmem>>, vector<1x144x256xbf16>
    %116 = vector.shape_cast %115 : vector<1x144x256xbf16> to vector<144x256xbf16>
    %cst_135 = arith.constant dense<0.000000e+00> : vector<8x256xf32>
    %117 = tpu.matmul %114, %116, %cst_135 {dimension_numbers = #tpu.dot_dimension_numbers<[1], [0], [0], [1], [0, 0, 1, 1], [], []>} : vector<8x144xbf16>, vector<144x256xbf16>, vector<8x256xf32> -> vector<8x256xf32>
    %118 = arith.addf %112, %117 : vector<8x256xf32>
    %c0_136 = arith.constant 0 : index
    %c0_137 = arith.constant 0 : index
    %119 = vector.load %arg10[%c0_136, %c0_137] : memref<8x256xf32, #tpu.memory_space<vmem>>, vector<8x256xf32>
    tpu.vector_store %arg10[%c0_136, %c0_137], %118 {strides = array<i32>} : memref<8x256xf32, #tpu.memory_space<vmem>>, vector<8x256xf32>,
    %c0_138 = arith.constant 0 : index
    %c0_139 = arith.constant 0 : index
    %120 = vector.load %arg10[%c0_138, %c0_139] : memref<8x256xf32, #tpu.memory_space<vmem>>, vector<8x256xf32>
    %c13 = arith.constant 13 : index
    %c0_140 = arith.constant 0 : index
    %c0_141 = arith.constant 0 : index
    %121 = vector.load %arg9[%c13, %c0_140, %c0_141] : memref<16x8x144xbf16, #tpu.memory_space<vmem>>, vector<1x8x144xbf16>
    %122 = vector.shape_cast %121 : vector<1x8x144xbf16> to vector<8x144xbf16>
    %c13_142 = arith.constant 13 : index
    %c0_143 = arith.constant 0 : index
    %c0_144 = arith.constant 0 : index
    %123 = vector.load %arg4[%c13_142, %c0_143, %c0_144] : memref<16x144x256xbf16, #tpu.memory_space<vmem>>, vector<1x144x256xbf16>
    %124 = vector.shape_cast %123 : vector<1x144x256xbf16> to vector<144x256xbf16>
    %cst_145 = arith.constant dense<0.000000e+00> : vector<8x256xf32>
    %125 = tpu.matmul %122, %124, %cst_145 {dimension_numbers = #tpu.dot_dimension_numbers<[1], [0], [0], [1], [0, 0, 1, 1], [], []>} : vector<8x144xbf16>, vector<144x256xbf16>, vector<8x256xf32> -> vector<8x256xf32>
    %126 = arith.addf %120, %125 : vector<8x256xf32>
    %c0_146 = arith.constant 0 : index
    %c0_147 = arith.constant 0 : index
    %127 = vector.load %arg10[%c0_146, %c0_147] : memref<8x256xf32, #tpu.memory_space<vmem>>, vector<8x256xf32>
    tpu.vector_store %arg10[%c0_146, %c0_147], %126 {strides = array<i32>} : memref<8x256xf32, #tpu.memory_space<vmem>>, vector<8x256xf32>,
    %c0_148 = arith.constant 0 : index
    %c0_149 = arith.constant 0 : index
    %128 = vector.load %arg10[%c0_148, %c0_149] : memref<8x256xf32, #tpu.memory_space<vmem>>, vector<8x256xf32>
    %c14 = arith.constant 14 : index
    %c0_150 = arith.constant 0 : index
    %c0_151 = arith.constant 0 : index
    %129 = vector.load %arg9[%c14, %c0_150, %c0_151] : memref<16x8x144xbf16, #tpu.memory_space<vmem>>, vector<1x8x144xbf16>
    %130 = vector.shape_cast %129 : vector<1x8x144xbf16> to vector<8x144xbf16>
    %c14_152 = arith.constant 14 : index
    %c0_153 = arith.constant 0 : index
    %c0_154 = arith.constant 0 : index
    %131 = vector.load %arg4[%c14_152, %c0_153, %c0_154] : memref<16x144x256xbf16, #tpu.memory_space<vmem>>, vector<1x144x256xbf16>
    %132 = vector.shape_cast %131 : vector<1x144x256xbf16> to vector<144x256xbf16>
    %cst_155 = arith.constant dense<0.000000e+00> : vector<8x256xf32>
    %133 = tpu.matmul %130, %132, %cst_155 {dimension_numbers = #tpu.dot_dimension_numbers<[1], [0], [0], [1], [0, 0, 1, 1], [], []>} : vector<8x144xbf16>, vector<144x256xbf16>, vector<8x256xf32> -> vector<8x256xf32>
    %134 = arith.addf %128, %133 : vector<8x256xf32>
    %c0_156 = arith.constant 0 : index
    %c0_157 = arith.constant 0 : index
    %135 = vector.load %arg10[%c0_156, %c0_157] : memref<8x256xf32, #tpu.memory_space<vmem>>, vector<8x256xf32>
    tpu.vector_store %arg10[%c0_156, %c0_157], %134 {strides = array<i32>} : memref<8x256xf32, #tpu.memory_space<vmem>>, vector<8x256xf32>,
    %c0_158 = arith.constant 0 : index
    %c0_159 = arith.constant 0 : index
    %136 = vector.load %arg10[%c0_158, %c0_159] : memref<8x256xf32, #tpu.memory_space<vmem>>, vector<8x256xf32>
    %c15 = arith.constant 15 : index
    %c0_160 = arith.constant 0 : index
    %c0_161 = arith.constant 0 : index
    %137 = vector.load %arg9[%c15, %c0_160, %c0_161] : memref<16x8x144xbf16, #tpu.memory_space<vmem>>, vector<1x8x144xbf16>
    %138 = vector.shape_cast %137 : vector<1x8x144xbf16> to vector<8x144xbf16>
    %c15_162 = arith.constant 15 : index
    %c0_163 = arith.constant 0 : index
    %c0_164 = arith.constant 0 : index
    %139 = vector.load %arg4[%c15_162, %c0_163, %c0_164] : memref<16x144x256xbf16, #tpu.memory_space<vmem>>, vector<1x144x256xbf16>
    %140 = vector.shape_cast %139 : vector<1x144x256xbf16> to vector<144x256xbf16>
    %cst_165 = arith.constant dense<0.000000e+00> : vector<8x256xf32>
    %141 = tpu.matmul %138, %140, %cst_165 {dimension_numbers = #tpu.dot_dimension_numbers<[1], [0], [0], [1], [0, 0, 1, 1], [], []>} : vector<8x144xbf16>, vector<144x256xbf16>, vector<8x256xf32> -> vector<8x256xf32>
    %142 = arith.addf %136, %141 : vector<8x256xf32>
    %c0_166 = arith.constant 0 : index
    %c0_167 = arith.constant 0 : index
    %143 = vector.load %arg10[%c0_166, %c0_167] : memref<8x256xf32, #tpu.memory_space<vmem>>, vector<8x256xf32>
    tpu.vector_store %arg10[%c0_166, %c0_167], %142 {strides = array<i32>} : memref<8x256xf32, #tpu.memory_space<vmem>>, vector<8x256xf32>,
    %c0_168 = arith.constant 0 : index
    %c0_169 = arith.constant 0 : index
    %144 = vector.load %arg10[%c0_168, %c0_169] : memref<8x256xf32, #tpu.memory_space<vmem>>, vector<8x256xf32>
    %c0_170 = arith.constant 0 : index
    %c0_171 = arith.constant 0 : index
    %145 = vector.load %arg5[%c0_170, %c0_171] : memref<1x256xf32, #tpu.memory_space<vmem>>, vector<1x256xf32>
    %146 = vector.broadcast %145 : vector<1x256xf32> to vector<8x256xf32>
    %147 = arith.addf %144, %146 : vector<8x256xf32>
    %cst_172 = arith.constant 0.000000e+00 : f32
    %148 = vector.broadcast %cst_172 : f32 to vector<8x256xf32>
    %149 = arith.maximumf %147, %148 : vector<8x256xf32>
    %c0_173 = arith.constant 0 : index
    %c0_174 = arith.constant 0 : index
    %150 = vector.load %arg6[%c0_173, %c0_174] : memref<256x10xf32, #tpu.memory_space<vmem>>, vector<256x10xf32>
    %cst_175 = arith.constant dense<0.000000e+00> : vector<8x10xf32>
    %151 = tpu.matmul %149, %150, %cst_175 {dimension_numbers = #tpu.dot_dimension_numbers<[1], [0], [0], [1], [0, 0, 1, 1], [], []>} : vector<8x256xf32>, vector<256x10xf32>, vector<8x10xf32> -> vector<8x10xf32>
    %c0_176 = arith.constant 0 : index
    %c0_177 = arith.constant 0 : index
    %152 = vector.load %arg7[%c0_176, %c0_177] : memref<1x10xf32, #tpu.memory_space<vmem>>, vector<1x10xf32>
    %153 = vector.broadcast %152 : vector<1x10xf32> to vector<8x10xf32>
    %154 = arith.addf %151, %153 : vector<8x10xf32>
    %c0_178 = arith.constant 0 : index
    %c0_179 = arith.constant 0 : index
    %155 = vector.load %arg8[%c0_178, %c0_179] : memref<8x10xf32, #tpu.memory_space<vmem>>, vector<8x10xf32>
    tpu.vector_store %arg8[%c0_178, %c0_179], %154 {strides = array<i32>} : memref<8x10xf32, #tpu.memory_space<vmem>>, vector<8x10xf32>,
    return
  }
  func.func @transform_0(%arg0: i32) -> (i32, i32) {
    %c0_i32 = arith.constant 0 : i32
    %c0_i32_0 = arith.constant 0 : i32
    return %c0_i32, %arg0 : i32, i32
  }
  func.func @transform_1(%arg0: i32) -> (i32, i32) {
    %c0_i32 = arith.constant 0 : i32
    %c0_i32_0 = arith.constant 0 : i32
    %c0_i32_1 = arith.constant 0 : i32
    return %c0_i32, %c0_i32_0 : i32, i32
  }
  func.func @transform_2(%arg0: i32) -> (i32, i32) {
    %c0_i32 = arith.constant 0 : i32
    %c0_i32_0 = arith.constant 0 : i32
    %c0_i32_1 = arith.constant 0 : i32
    return %c0_i32, %c0_i32_0 : i32, i32
  }
  func.func @transform_3(%arg0: i32) -> (i32, i32, i32) {
    %c0_i32 = arith.constant 0 : i32
    %c0_i32_0 = arith.constant 0 : i32
    %c0_i32_1 = arith.constant 0 : i32
    %c0_i32_2 = arith.constant 0 : i32
    return %c0_i32, %c0_i32_0, %c0_i32_1 : i32, i32, i32
  }
  func.func @transform_4(%arg0: i32) -> (i32, i32) {
    %c0_i32 = arith.constant 0 : i32
    %c0_i32_0 = arith.constant 0 : i32
    %c0_i32_1 = arith.constant 0 : i32
    return %c0_i32, %c0_i32_0 : i32, i32
  }
  func.func @transform_5(%arg0: i32) -> (i32, i32) {
    %c0_i32 = arith.constant 0 : i32
    %c0_i32_0 = arith.constant 0 : i32
    %c0_i32_1 = arith.constant 0 : i32
    return %c0_i32, %c0_i32_0 : i32, i32
  }
  func.func @transform_6(%arg0: i32) -> (i32, i32) {
    %c0_i32 = arith.constant 0 : i32
    %c0_i32_0 = arith.constant 0 : i32
    %c0_i32_1 = arith.constant 0 : i32
    return %c0_i32, %c0_i32_0 : i32, i32
  }
  func.func @transform_7(%arg0: i32) -> (i32, i32) {
    %c0_i32 = arith.constant 0 : i32
    %c0_i32_0 = arith.constant 0 : i32
    return %arg0, %c0_i32 : i32, i32
  }
}

</mosaic_0001>

<llo_original>
// kernel: model2_forward.1
$region0: #{model2_forward.1}
  #allocation0 [shape = 'u32[]', space=smem, size = 0x4, offset = 0x4, fixed_abs, tag = 'smem constant byte address 0x4 - core index']
  #allocation1 [shape = 'u32[144,128]{1,0:T(1,128)}', space=vmem, size = 0x12000, scoped, tag = 'internal scratch']
  #allocation2 [shape = 'bf16[16,8,144]{2,1,0:T(8,128)(2,1)}', space=vmem, size = 0x10000, scoped, tag = 'scratch operand']
  #allocation3 [shape = 'f32[8,256]{1,0:T(8,128)}', space=vmem, size = 0x2000, scoped, tag = 'scratch operand']
  %s0 = inlined_call_operand.vmem [shape: bf16[36,1152], index: 0, kind: input, shape index: {}]
  %s1 = inlined_call_operand.vmem [shape: bf16[64,36], index: 1, kind: input, shape index: {}]
  %s2 = inlined_call_operand.vmem [shape: f32[64,1], index: 2, kind: input, shape index: {}]
  %s3 = inlined_call_operand.vmem [shape: bf16[16,144,256], index: 3, kind: input, shape index: {}]
  %s4 = inlined_call_operand.vmem [shape: f32[1,256], index: 4, kind: input, shape index: {}]
  %s5 = inlined_call_operand.vmem [shape: f32[256,10], index: 5, kind: input, shape index: {}]
  %s6 = inlined_call_operand.vmem [shape: f32[1,10], index: 6, kind: input, shape index: {}]
  %s7 = inlined_call_operand.vmem [shape: f32[8,10], index: 7, kind: output, shape index: {}]
  %s8 = sld [smem:[#allocation0]]
  $region38: #{model2_forward.1} parent=0
    _
  %s10 = ssub.s32 1, %s8
  %s11 = scalar_select 0, %s10, %s8
  // Predicated region
  $region2: #{model2_forward.1} parent=0 // pred_check
    _
  $region3: #{model2_forward.1} parent=0 // pred_check_branch
    %13 = sbr.rel (0) target = $region5
  $region4: #{model2_forward.1} parent=0 // pred_region
    _
  $region5: #{model2_forward.1} parent=0 // pred_fallthru
    _
  // Predicated region
  $region6: #{model2_forward.1} parent=0 // pred_check
    _
  $region7: #{model2_forward.1} parent=0 // pred_check_branch
    %15 = sbr.rel (0) target = $region9
  $region8: #{model2_forward.1} parent=0 // pred_region
    _
  $region9: #{model2_forward.1} parent=0 // pred_fallthru
    _
  // Predicated region
  $region10: #{model2_forward.1} parent=0 // pred_check
    _
  $region11: #{model2_forward.1} parent=0 // pred_check_branch
    %17 = sbr.rel (0) target = $region13
  $region12: #{model2_forward.1} parent=0 // pred_region
    _
  $region13: #{model2_forward.1} parent=0 // pred_fallthru
    _
  // Predicated region
  $region14: #{model2_forward.1} parent=0 // pred_check
    _
  $region15: #{model2_forward.1} parent=0 // pred_check_branch
    %19 = sbr.rel (0) target = $region17
  $region16: #{model2_forward.1} parent=0 // pred_region
    _
  $region17: #{model2_forward.1} parent=0 // pred_fallthru
    _
  // Predicated region
  $region18: #{model2_forward.1} parent=0 // pred_check
    _
  $region19: #{model2_forward.1} parent=0 // pred_check_branch
    %21 = sbr.rel (0) target = $region21
  $region20: #{model2_forward.1} parent=0 // pred_region
    _
  $region21: #{model2_forward.1} parent=0 // pred_fallthru
    _
  // Predicated region
  $region22: #{model2_forward.1} parent=0 // pred_check
    _
  $region23: #{model2_forward.1} parent=0 // pred_check_branch
    %23 = sbr.rel (0) target = $region25
  $region24: #{model2_forward.1} parent=0 // pred_region
    _
  $region25: #{model2_forward.1} parent=0 // pred_fallthru
    _
  // Predicated region
  $region26: #{model2_forward.1} parent=0 // pred_check
    _
  $region27: #{model2_forward.1} parent=0 // pred_check_branch
    %25 = sbr.rel (0) target = $region29
  $region28: #{model2_forward.1} parent=0 // pred_region
    _
  $region29: #{model2_forward.1} parent=0 // pred_fallthru
    _
  %v27 = vld [vmem:[%s1] sm:$0xf]
  %v28 = vld [vmem:[%s1 + $0x4] sm:$0xf]
  %v29 = vld [vmem:[%s1 + $0x8] sm:$0xf]
  %v30 = vld [vmem:[%s1 + $0xc] sm:$0xf]
  %v31 = vld [vmem:[%s1 + $0x10] sm:$0xf]
  %v32 = vld [vmem:[%s1 + $0x14] sm:$0xf]
  %v33 = vld [vmem:[%s1 + $0x18] sm:$0xf]
  %v34 = vld [vmem:[%s1 + $0x1c] sm:$0xf]
  %v35 = vld [vmem:[%s2] sm:$0xff]
  %v36 = vld [vmem:[%s2 + $0x8] sm:$0xff]
  %v37 = vld [vmem:[%s2 + $0x10] sm:$0xff]
  %v38 = vld [vmem:[%s2 + $0x18] sm:$0xff]
  %v39 = vld [vmem:[%s2 + $0x20] sm:$0xff]
  %v40 = vld [vmem:[%s2 + $0x28] sm:$0xff]
  %v41 = vld [vmem:[%s2 + $0x30] sm:$0xff]
  %v42 = vld [vmem:[%s2 + $0x38] sm:$0xff]
  %v43 = vld [vmem:[%s0] sm:$0xff]
  %v44 = vld [vmem:[%s0 + $0x8] sm:$0xff]
  %v45 = vld [vmem:[%s0 + $0x10] sm:$0xff]
  %v46 = vld [vmem:[%s0 + $0x18] sm:$0xff]
  %v47 = vld [vmem:[%s0 + $0x20] sm:$0xf]
  %v48 = vld [vmem:[%s0 + $0x24] sm:$0xff]
  %v49 = vld [vmem:[%s0 + $0x2c] sm:$0xff]
  %v50 = vld [vmem:[%s0 + $0x34] sm:$0xff]
  %v51 = vld [vmem:[%s0 + $0x3c] sm:$0xff]
  %v52 = vld [vmem:[%s0 + $0x44] sm:$0xf]
  %v53 = vld [vmem:[%s0 + $0x48] sm:$0xff]
  %v54 = vld [vmem:[%s0 + $0x50] sm:$0xff]
  %v55 = vld [vmem:[%s0 + $0x58] sm:$0xff]
  %v56 = vld [vmem:[%s0 + $0x60] sm:$0xff]
  %v57 = vld [vmem:[%s0 + $0x68] sm:$0xf]
  %v58 = vld [vmem:[%s0 + $0x6c] sm:$0xff]
  %v59 = vld [vmem:[%s0 + $0x74] sm:$0xff]
  %v60 = vld [vmem:[%s0 + $0x7c] sm:$0xff]
  %v61 = vld [vmem:[%s0 + $0x84] sm:$0xff]
  %v62 = vld [vmem:[%s0 + $0x8c] sm:$0xf]
  %v63 = vld [vmem:[%s0 + $0x90] sm:$0x33]
  %v64 = vld [vmem:[%s0 + $0x98] sm:$0x33]
  %v65 = vld [vmem:[%s0 + $0xa0] sm:$0x33]
  %v66 = vld [vmem:[%s0 + $0xa8] sm:$0x33]
  %v67 = vld [vmem:[%s0 + $0xb0] sm:$0x3]
  %69 = vset.pattern.permute.xlu0 0
  %70 = vperm.xlu0 %69, %v35
  %v71 = vpop.permute.xlu0 %70
  %74 = vset.pattern.permute.xlu0 0
  %75 = vperm.xlu0 %74, %v36
  %v76 = vpop.permute.xlu0 %75
  %79 = vset.pattern.permute.xlu0 0
  %80 = vperm.xlu0 %79, %v37
  %v81 = vpop.permute.xlu0 %80
  %84 = vset.pattern.permute.xlu0 0
  %85 = vperm.xlu0 %84, %v38
  %v86 = vpop.permute.xlu0 %85
  %89 = vset.pattern.permute.xlu0 0
  %90 = vperm.xlu0 %89, %v39
  %v91 = vpop.permute.xlu0 %90
  %94 = vset.pattern.permute.xlu0 0
  %95 = vperm.xlu0 %94, %v40
  %v96 = vpop.permute.xlu0 %95
  %99 = vset.pattern.permute.xlu0 0
  %100 = vperm.xlu0 %99, %v41
  %v101 = vpop.permute.xlu0 %100
  %104 = vset.pattern.permute.xlu0 0
  %105 = vperm.xlu0 %104, %v42
  %v106 = vpop.permute.xlu0 %105
  %v116 = vunpack.c.l.b16 %v27
  %v117 = vunpack.c.l.b16 %v28
  %v118 = vunpack.c.l.b16 %v29
  %v119 = vunpack.c.l.b16 %v30
  %v120 = vunpack.c.l.b16 %v31
  %v121 = vunpack.c.l.b16 %v32
  %v122 = vunpack.c.l.b16 %v33
  %v123 = vunpack.c.l.b16 %v34
  %v124 = vpack.c.b16 %v117, %v116
  %v125 = vpack.c.b16 %v119, %v118
  %v126 = vpack.c.b16 %v121, %v120
  %v127 = vpack.c.b16 %v123, %v122
  %v153 = vunpack.c.l.b16 %v43
  %v154 = vunpack.c.h.b16 %v43
  %v155 = vunpack.c.l.b16 %v44
  %v156 = vunpack.c.h.b16 %v44
  %v157 = vunpack.c.l.b16 %v45
  %v158 = vunpack.c.h.b16 %v45
  %v159 = vunpack.c.l.b16 %v46
  %v160 = vunpack.c.h.b16 %v46
  %v161 = vunpack.c.l.b16 %v47
  %v162 = vunpack.c.l.b16 %v48
  %v163 = vunpack.c.h.b16 %v48
  %v164 = vunpack.c.l.b16 %v49
  %v165 = vunpack.c.h.b16 %v49
  %v166 = vunpack.c.l.b16 %v50
  %v167 = vunpack.c.h.b16 %v50
  %v168 = vunpack.c.l.b16 %v51
  %v169 = vunpack.c.h.b16 %v51
  %v170 = vunpack.c.l.b16 %v52
  %v171 = vunpack.c.l.b16 %v53
  %v172 = vunpack.c.h.b16 %v53
  %v173 = vunpack.c.l.b16 %v54
  %v174 = vunpack.c.h.b16 %v54
  %v175 = vunpack.c.l.b16 %v55
  %v176 = vunpack.c.h.b16 %v55
  %v177 = vunpack.c.l.b16 %v56
  %v178 = vunpack.c.h.b16 %v56
  %v179 = vunpack.c.l.b16 %v57
  %v180 = vunpack.c.l.b16 %v58
  %v181 = vunpack.c.h.b16 %v58
  %v182 = vunpack.c.l.b16 %v59
  %v183 = vunpack.c.h.b16 %v59
  %v184 = vunpack.c.l.b16 %v60
  %v185 = vunpack.c.h.b16 %v60
  %v186 = vunpack.c.l.b16 %v61
  %v187 = vunpack.c.h.b16 %v61
  %v188 = vunpack.c.l.b16 %v62
  %v189 = vunpack.c.l.b16 %v63
  %v190 = vunpack.c.h.b16 %v63
  %v191 = vunpack.c.l.b16 %v64
  %v192 = vunpack.c.h.b16 %v64
  %v193 = vunpack.c.l.b16 %v65
  %v194 = vunpack.c.h.b16 %v65
  %v195 = vunpack.c.l.b16 %v66
  %v196 = vunpack.c.h.b16 %v66
  %v197 = vunpack.c.l.b16 %v67
  %v198 = vpack.c.b16 %v162, %v153
  %v199 = vpack.c.b16 %v163, %v154
  %v200 = vpack.c.b16 %v164, %v155
  %v201 = vpack.c.b16 %v165, %v156
  %v202 = vpack.c.b16 %v166, %v157
  %v203 = vpack.c.b16 %v167, %v158
  %v204 = vpack.c.b16 %v168, %v159
  %v205 = vpack.c.b16 %v169, %v160
  %v206 = vpack.c.b16 %v170, %v161
  %v207 = vpack.c.b16 %v180, %v171
  %v208 = vpack.c.b16 %v181, %v172
  %v209 = vpack.c.b16 %v182, %v173
  %v210 = vpack.c.b16 %v183, %v174
  %v211 = vpack.c.b16 %v184, %v175
  %v212 = vpack.c.b16 %v185, %v176
  %v213 = vpack.c.b16 %v186, %v177
  %v214 = vpack.c.b16 %v187, %v178
  %v215 = vpack.c.b16 %v188, %v179
  %v216 = vpack.c.b16 %v189, %v189
  %v217 = vpack.c.b16 %v190, %v190
  %v218 = vpack.c.b16 %v191, %v191
  %v219 = vpack.c.b16 %v192, %v192
  %v220 = vpack.c.b16 %v193, %v193
  %v221 = vpack.c.b16 %v194, %v194
  %v222 = vpack.c.b16 %v195, %v195
  %v223 = vpack.c.b16 %v196, %v196
  %v224 = vpack.c.b16 %v197, %v197
  %vm243 = vcmask 293888
  %v245 = vsel %vm243, %v124, 0
  %v248 = vsel %vm243, %v125, 0
  %v251 = vsel %vm243, %v126, 0
  %v254 = vsel %vm243, %v127, 0
  %vm256 = vcmask 1041408
  %v258 = vsel %vm256, %v216, 0
  %v261 = vsel %vm256, %v217, 0
  %v264 = vsel %vm256, %v218, 0
  %v267 = vsel %vm256, %v219, 0
  %v270 = vsel %vm256, %v220, 0
  %v273 = vsel %vm256, %v221, 0
  %v276 = vsel %vm256, %v222, 0
  %v279 = vsel %vm256, %v223, 0
  %v282 = vsel %vm256, %v224, 0
  %284 = vmatprep.subr.bf16.mxu0 0
  %285 = vmatpush1.bf16.msra.mxu0 0
  %286 = vmatprep.subr.bf16.mxu0 0
  %287 = vmatpush1.bf16.msra.mxu0 0
  %288 = vmatprep.subr.bf16.mxu0 0
  %289 = vmatpush1.bf16.msra.mxu0 0
  %290 = vmatprep.subr.bf16.mxu0 0
  %291 = vmatpush1.bf16.msra.mxu0 0
  %292 = vmatprep.subr.bf16.mxu0 0
  %293 = vmatpush1.bf16.msra.mxu0 0
  %294 = vmatprep.subr.bf16.mxu0 %v261
  %295 = vmatpush1.bf16.msra.mxu0 %v258
  %296 = vmatprep.subr.bf16.mxu0 %v208
  %297 = vmatpush1.bf16.msra.mxu0 %v207
  %298 = vmatprep.subr.bf16.mxu0 %v199
  %299 = vmatpush1.bf16.msra.mxu0 %v198
  %300 = vmatprep.subr.bf16.mxu0 0
  %301 = vmatpush2.bf16.msra.mxu0 0
  %302 = vmatprep.subr.bf16.mxu0 0
  %303 = vmatpush2.bf16.msra.mxu0 0
  %304 = vmatprep.subr.bf16.mxu0 0
  %305 = vmatpush2.bf16.msra.mxu0 0
  %306 = vmatprep.subr.bf16.mxu0 0
  %307 = vmatpush2.bf16.msra.mxu0 0
  %308 = vmatprep.subr.bf16.mxu0 0
  %309 = vmatpush2.bf16.msra.mxu0 0
  %310 = vmatprep.subr.bf16.mxu0 0
  %311 = vmatpush2.bf16.msra.mxu0 0
  %312 = vmatprep.subr.bf16.mxu0 0
  %313 = vmatpush2.bf16.msra.mxu0 0
  %314 = vmatprep.subr.bf16.mxu0 0
  %315 = vmatpush2.bf16.msra.mxu0 0
  %316 = vmatprep.mubr.bf16.mxu0 0
  %317 = vmatmul.mubr.bf16.gmra.mxu0 %v245
  %v318 = vpop.f32.mrf.mxu0
  %v319 = vadd.f32 %v71, %v318
  %v320 = vpop.f32.mrf.mxu0
  %v321 = vadd.f32 %v71, %v320
  %v322 = vpop.f32.mrf.mxu0
  %v323 = vadd.f32 %v76, %v322
  %v324 = vpop.f32.mrf.mxu0
  %v325 = vadd.f32 %v76, %v324
  %326 = vmatprep.mubr.bf16.mxu0 0
  %327 = vmatmul.mubr.bf16.gmra.mxu0 %v248
  %v328 = vpop.f32.mrf.mxu0
  %v329 = vadd.f32 %v81, %v328
  %v330 = vpop.f32.mrf.mxu0
  %v331 = vadd.f32 %v81, %v330
  %v332 = vpop.f32.mrf.mxu0
  %v333 = vadd.f32 %v86, %v332
  %v334 = vpop.f32.mrf.mxu0
  %v335 = vadd.f32 %v86, %v334
  %336 = vmatprep.mubr.bf16.mxu0 0
  %337 = vmatmul.mubr.bf16.gmra.mxu0 %v251
  %v338 = vpop.f32.mrf.mxu0
  %v339 = vadd.f32 %v91, %v338
  %v340 = vpop.f32.mrf.mxu0
  %v341 = vadd.f32 %v91, %v340
  %v342 = vpop.f32.mrf.mxu0
  %v343 = vadd.f32 %v96, %v342
  %v344 = vpop.f32.mrf.mxu0
  %v345 = vadd.f32 %v96, %v344
  %346 = vmatprep.mubr.bf16.mxu0 0
  %347 = vmatmul.mubr.bf16.gmra.mxu0 %v254
  %v348 = vpop.f32.mrf.mxu0
  %v349 = vadd.f32 %v101, %v348
  %v350 = vpop.f32.mrf.mxu0
  %v351 = vadd.f32 %v101, %v350
  %v352 = vpop.f32.mrf.mxu0
  %v353 = vadd.f32 %v106, %v352
  %v354 = vpop.f32.mrf.mxu0
  %v355 = vadd.f32 %v106, %v354
  %356 = vdwg.mxu0
  %357 = vmatprep.subr.bf16.mxu0 0
  %358 = vmatpush1.bf16.msra.mxu0 0
  %359 = vmatprep.subr.bf16.mxu0 0
  %360 = vmatpush1.bf16.msra.mxu0 0
  %361 = vmatprep.subr.bf16.mxu0 0
  %362 = vmatpush1.bf16.msra.mxu0 0
  %363 = vmatprep.subr.bf16.mxu0 0
  %364 = vmatpush1.bf16.msra.mxu0 0
  %365 = vmatprep.subr.bf16.mxu0 0
  %366 = vmatpush1.bf16.msra.mxu0 0
  %367 = vmatprep.subr.bf16.mxu0 %v267
  %368 = vmatpush1.bf16.msra.mxu0 %v264
  %369 = vmatprep.subr.bf16.mxu0 %v210
  %370 = vmatpush1.bf16.msra.mxu0 %v209
  %371 = vmatprep.subr.bf16.mxu0 %v201
  %372 = vmatpush1.bf16.msra.mxu0 %v200
  %373 = vmatprep.subr.bf16.mxu0 0
  %374 = vmatpush2.bf16.msra.mxu0 0
  %375 = vmatprep.subr.bf16.mxu0 0
  %376 = vmatpush2.bf16.msra.mxu0 0
  %377 = vmatprep.subr.bf16.mxu0 0
  %378 = vmatpush2.bf16.msra.mxu0 0
  %379 = vmatprep.subr.bf16.mxu0 0
  %380 = vmatpush2.bf16.msra.mxu0 0
  %381 = vmatprep.subr.bf16.mxu0 0
  %382 = vmatpush2.bf16.msra.mxu0 0
  %383 = vmatprep.subr.bf16.mxu0 0
  %384 = vmatpush2.bf16.msra.mxu0 0
  %385 = vmatprep.subr.bf16.mxu0 0
  %386 = vmatpush2.bf16.msra.mxu0 0
  %387 = vmatprep.subr.bf16.mxu0 0
  %388 = vmatpush2.bf16.msra.mxu0 0
  %389 = vmatprep.mubr.bf16.mxu0 0
  %390 = vmatmul.mubr.bf16.gmra.mxu0 %v245
  %v391 = vpop.f32.mrf.mxu0
  %v392 = vadd.f32 %v71, %v391
  %v393 = vpop.f32.mrf.mxu0
  %v394 = vadd.f32 %v71, %v393
  %v395 = vpop.f32.mrf.mxu0
  %v396 = vadd.f32 %v76, %v395
  %v397 = vpop.f32.mrf.mxu0
  %v398 = vadd.f32 %v76, %v397
  %399 = vmatprep.mubr.bf16.mxu0 0
  %400 = vmatmul.mubr.bf16.gmra.mxu0 %v248
  %v401 = vpop.f32.mrf.mxu0
  %v402 = vadd.f32 %v81, %v401
  %v403 = vpop.f32.mrf.mxu0
  %v404 = vadd.f32 %v81, %v403
  %v405 = vpop.f32.mrf.mxu0
  %v406 = vadd.f32 %v86, %v405
  %v407 = vpop.f32.mrf.mxu0
  %v408 = vadd.f32 %v86, %v407
  %409 = vmatprep.mubr.bf16.mxu0 0
  %410 = vmatmul.mubr.bf16.gmra.mxu0 %v251
  %v411 = vpop.f32.mrf.mxu0
  %v412 = vadd.f32 %v91, %v411
  %v413 = vpop.f32.mrf.mxu0
  %v414 = vadd.f32 %v91, %v413
  %v415 = vpop.f32.mrf.mxu0
  %v416 = vadd.f32 %v96, %v415
  %v417 = vpop.f32.mrf.mxu0
  %v418 = vadd.f32 %v96, %v417
  %419 = vmatprep.mubr.bf16.mxu0 0
  %420 = vmatmul.mubr.bf16.gmra.mxu0 %v254
  %v421 = vpop.f32.mrf.mxu0
  %v422 = vadd.f32 %v101, %v421
  %v423 = vpop.f32.mrf.mxu0
  %v424 = vadd.f32 %v101, %v423
  %v425 = vpop.f32.mrf.mxu0
  %v426 = vadd.f32 %v106, %v425
  %v427 = vpop.f32.mrf.mxu0
  %v428 = vadd.f32 %v106, %v427
  %429 = vdwg.mxu0
  %430 = vmatprep.subr.bf16.mxu0 0
  %431 = vmatpush1.bf16.msra.mxu0 0
  %432 = vmatprep.subr.bf16.mxu0 0
  %433 = vmatpush1.bf16.msra.mxu0 0
  %434 = vmatprep.subr.bf16.mxu0 0
  %435 = vmatpush1.bf16.msra.mxu0 0
  %436 = vmatprep.subr.bf16.mxu0 0
  %437 = vmatpush1.bf16.msra.mxu0 0
  %438 = vmatprep.subr.bf16.mxu0 0
  %439 = vmatpush1.bf16.msra.mxu0 0
  %440 = vmatprep.subr.bf16.mxu0 %v273
  %441 = vmatpush1.bf16.msra.mxu0 %v270
  %442 = vmatprep.subr.bf16.mxu0 %v212
  %443 = vmatpush1.bf16.msra.mxu0 %v211
  %444 = vmatprep.subr.bf16.mxu0 %v203
  %445 = vmatpush1.bf16.msra.mxu0 %v202
  %446 = vmatprep.subr.bf16.mxu0 0
  %447 = vmatpush2.bf16.msra.mxu0 0
  %448 = vmatprep.subr.bf16.mxu0 0
  %449 = vmatpush2.bf16.msra.mxu0 0
  %450 = vmatprep.subr.bf16.mxu0 0
  %451 = vmatpush2.bf16.msra.mxu0 0
  %452 = vmatprep.subr.bf16.mxu0 0
  %453 = vmatpush2.bf16.msra.mxu0 0
  %454 = vmatprep.subr.bf16.mxu0 0
  %455 = vmatpush2.bf16.msra.mxu0 0
  %456 = vmatprep.subr.bf16.mxu0 0
  %457 = vmatpush2.bf16.msra.mxu0 0
  %458 = vmatprep.subr.bf16.mxu0 0
  %459 = vmatpush2.bf16.msra.mxu0 0
  %460 = vmatprep.subr.bf16.mxu0 0
  %461 = vmatpush2.bf16.msra.mxu0 0
  %462 = vmatprep.mubr.bf16.mxu0 0
  %463 = vmatmul.mubr.bf16.gmra.mxu0 %v245
  %v464 = vpop.f32.mrf.mxu0
  %v465 = vadd.f32 %v71, %v464
  %v466 = vpop.f32.mrf.mxu0
  %v467 = vadd.f32 %v71, %v466
  %v468 = vpop.f32.mrf.mxu0
  %v469 = vadd.f32 %v76, %v468
  %v470 = vpop.f32.mrf.mxu0
  %v471 = vadd.f32 %v76, %v470
  %472 = vmatprep.mubr.bf16.mxu0 0
  %473 = vmatmul.mubr.bf16.gmra.mxu0 %v248
  %v474 = vpop.f32.mrf.mxu0
  %v475 = vadd.f32 %v81, %v474
  %v476 = vpop.f32.mrf.mxu0
  %v477 = vadd.f32 %v81, %v476
  %v478 = vpop.f32.mrf.mxu0
  %v479 = vadd.f32 %v86, %v478
  %v480 = vpop.f32.mrf.mxu0
  %v481 = vadd.f32 %v86, %v480
  %482 = vmatprep.mubr.bf16.mxu0 0
  %483 = vmatmul.mubr.bf16.gmra.mxu0 %v251
  %v484 = vpop.f32.mrf.mxu0
  %v485 = vadd.f32 %v91, %v484
  %v486 = vpop.f32.mrf.mxu0
  %v487 = vadd.f32 %v91, %v486
  %v488 = vpop.f32.mrf.mxu0
  %v489 = vadd.f32 %v96, %v488
  %v490 = vpop.f32.mrf.mxu0
  %v491 = vadd.f32 %v96, %v490
  %492 = vmatprep.mubr.bf16.mxu0 0
  %493 = vmatmul.mubr.bf16.gmra.mxu0 %v254
  %v494 = vpop.f32.mrf.mxu0
  %v495 = vadd.f32 %v101, %v494
  %v496 = vpop.f32.mrf.mxu0
  %v497 = vadd.f32 %v101, %v496
  %v498 = vpop.f32.mrf.mxu0
  %v499 = vadd.f32 %v106, %v498
  %v500 = vpop.f32.mrf.mxu0
  %v501 = vadd.f32 %v106, %v500
  %502 = vdwg.mxu0
  %503 = vmatprep.subr.bf16.mxu0 0
  %504 = vmatpush1.bf16.msra.mxu0 0
  %505 = vmatprep.subr.bf16.mxu0 0
  %506 = vmatpush1.bf16.msra.mxu0 0
  %507 = vmatprep.subr.bf16.mxu0 0
  %508 = vmatpush1.bf16.msra.mxu0 0
  %509 = vmatprep.subr.bf16.mxu0 0
  %510 = vmatpush1.bf16.msra.mxu0 0
  %511 = vmatprep.subr.bf16.mxu0 0
  %512 = vmatpush1.bf16.msra.mxu0 0
  %513 = vmatprep.subr.bf16.mxu0 %v279
  %514 = vmatpush1.bf16.msra.mxu0 %v276
  %515 = vmatprep.subr.bf16.mxu0 %v214
  %516 = vmatpush1.bf16.msra.mxu0 %v213
  %517 = vmatprep.subr.bf16.mxu0 %v205
  %518 = vmatpush1.bf16.msra.mxu0 %v204
  %519 = vmatprep.subr.bf16.mxu0 0
  %520 = vmatpush2.bf16.msra.mxu0 0
  %521 = vmatprep.subr.bf16.mxu0 0
  %522 = vmatpush2.bf16.msra.mxu0 0
  %523 = vmatprep.subr.bf16.mxu0 0
  %524 = vmatpush2.bf16.msra.mxu0 0
  %525 = vmatprep.subr.bf16.mxu0 0
  %526 = vmatpush2.bf16.msra.mxu0 0
  %527 = vmatprep.subr.bf16.mxu0 0
  %528 = vmatpush2.bf16.msra.mxu0 0
  %529 = vmatprep.subr.bf16.mxu0 0
  %530 = vmatpush2.bf16.msra.mxu0 0
  %531 = vmatprep.subr.bf16.mxu0 0
  %532 = vmatpush2.bf16.msra.mxu0 0
  %533 = vmatprep.subr.bf16.mxu0 0
  %534 = vmatpush2.bf16.msra.mxu0 0
  %535 = vmatprep.mubr.bf16.mxu0 0
  %536 = vmatmul.mubr.bf16.gmra.mxu0 %v245
  %v537 = vpop.f32.mrf.mxu0
  %v538 = vadd.f32 %v71, %v537
  %v539 = vpop.f32.mrf.mxu0
  %v540 = vadd.f32 %v71, %v539
  %v541 = vpop.f32.mrf.mxu0
  %v542 = vadd.f32 %v76, %v541
  %v543 = vpop.f32.mrf.mxu0
  %v544 = vadd.f32 %v76, %v543
  %545 = vmatprep.mubr.bf16.mxu0 0
  %546 = vmatmul.mubr.bf16.gmra.mxu0 %v248
  %v547 = vpop.f32.mrf.mxu0
  %v548 = vadd.f32 %v81, %v547
  %v549 = vpop.f32.mrf.mxu0
  %v550 = vadd.f32 %v81, %v549
  %v551 = vpop.f32.mrf.mxu0
  %v552 = vadd.f32 %v86, %v551
  %v553 = vpop.f32.mrf.mxu0
  %v554 = vadd.f32 %v86, %v553
  %555 = vmatprep.mubr.bf16.mxu0 0
  %556 = vmatmul.mubr.bf16.gmra.mxu0 %v251
  %v557 = vpop.f32.mrf.mxu0
  %v558 = vadd.f32 %v91, %v557
  %v559 = vpop.f32.mrf.mxu0
  %v560 = vadd.f32 %v91, %v559
  %v561 = vpop.f32.mrf.mxu0
  %v562 = vadd.f32 %v96, %v561
  %v563 = vpop.f32.mrf.mxu0
  %v564 = vadd.f32 %v96, %v563
  %565 = vmatprep.mubr.bf16.mxu0 0
  %566 = vmatmul.mubr.bf16.gmra.mxu0 %v254
  %v567 = vpop.f32.mrf.mxu0
  %v568 = vadd.f32 %v101, %v567
  %v569 = vpop.f32.mrf.mxu0
  %v570 = vadd.f32 %v101, %v569
  %v571 = vpop.f32.mrf.mxu0
  %v572 = vadd.f32 %v106, %v571
  %v573 = vpop.f32.mrf.mxu0
  %v574 = vadd.f32 %v106, %v573
  %575 = vdwg.mxu0
  %576 = vmatprep.subr.bf16.mxu0 0
  %577 = vmatpush1.bf16.msra.mxu0 0
  %578 = vmatprep.subr.bf16.mxu0 0
  %579 = vmatpush1.bf16.msra.mxu0 0
  %580 = vmatprep.subr.bf16.mxu0 0
  %581 = vmatpush1.bf16.msra.mxu0 0
  %582 = vmatprep.subr.bf16.mxu0 0
  %583 = vmatpush1.bf16.msra.mxu0 0
  %584 = vmatprep.subr.bf16.mxu0 0
  %585 = vmatpush1.bf16.msra.mxu0 0
  %586 = vmatprep.subr.bf16.mxu0 0
  %587 = vmatpush1.bf16.msra.mxu0 %v282
  %588 = vmatprep.subr.bf16.mxu0 0
  %589 = vmatpush1.bf16.msra.mxu0 %v215
  %590 = vmatprep.subr.bf16.mxu0 0
  %591 = vmatpush1.bf16.msra.mxu0 %v206
  %592 = vmatprep.subr.bf16.mxu0 0
  %593 = vmatpush2.bf16.msra.mxu0 0
  %594 = vmatprep.subr.bf16.mxu0 0
  %595 = vmatpush2.bf16.msra.mxu0 0
  %596 = vmatprep.subr.bf16.mxu0 0
  %597 = vmatpush2.bf16.msra.mxu0 0
  %598 = vmatprep.subr.bf16.mxu0 0
  %599 = vmatpush2.bf16.msra.mxu0 0
  %600 = vmatprep.subr.bf16.mxu0 0
  %601 = vmatpush2.bf16.msra.mxu0 0
  %602 = vmatprep.subr.bf16.mxu0 0
  %603 = vmatpush2.bf16.msra.mxu0 0
  %604 = vmatprep.subr.bf16.mxu0 0
  %605 = vmatpush2.bf16.msra.mxu0 0
  %606 = vmatprep.subr.bf16.mxu0 0
  %607 = vmatpush2.bf16.msra.mxu0 0
  %608 = vmatprep.mubr.bf16.mxu0 0
  %609 = vmatmul.mubr.bf16.gmra.mxu0 %v245
  %v610 = vpop.f32.mrf.mxu0
  %v611 = vadd.f32 %v71, %v610
  %v612 = vpop.f32.mrf.mxu0
  %v613 = vpop.f32.mrf.mxu0
  %v614 = vadd.f32 %v76, %v613
  %v615 = vpop.f32.mrf.mxu0
  %616 = vmatprep.mubr.bf16.mxu0 0
  %617 = vmatmul.mubr.bf16.gmra.mxu0 %v248
  %v618 = vpop.f32.mrf.mxu0
  %v619 = vadd.f32 %v81, %v618
  %v620 = vpop.f32.mrf.mxu0
  %v621 = vpop.f32.mrf.mxu0
  %v622 = vadd.f32 %v86, %v621
  %v623 = vpop.f32.mrf.mxu0
  %624 = vmatprep.mubr.bf16.mxu0 0
  %625 = vmatmul.mubr.bf16.gmra.mxu0 %v251
  %v626 = vpop.f32.mrf.mxu0
  %v627 = vadd.f32 %v91, %v626
  %v628 = vpop.f32.mrf.mxu0
  %v629 = vpop.f32.mrf.mxu0
  %v630 = vadd.f32 %v96, %v629
  %v631 = vpop.f32.mrf.mxu0
  %632 = vmatprep.mubr.bf16.mxu0 0
  %633 = vmatmul.mubr.bf16.gmra.mxu0 %v254
  %v634 = vpop.f32.mrf.mxu0
  %v635 = vadd.f32 %v101, %v634
  %v636 = vpop.f32.mrf.mxu0
  %v637 = vpop.f32.mrf.mxu0
  %v638 = vadd.f32 %v106, %v637
  %v639 = vpop.f32.mrf.mxu0
  %640 = vdwg.mxu0
  %v641 = vmax.f32 %v319, 0.0
  %v642 = vmax.f32 %v321, 0.0
  %v643 = vmax.f32 %v392, 0.0
  %v644 = vmax.f32 %v394, 0.0
  %v645 = vmax.f32 %v465, 0.0
  %v646 = vmax.f32 %v467, 0.0
  %v647 = vmax.f32 %v538, 0.0
  %v648 = vmax.f32 %v540, 0.0
  %v649 = vmax.f32 %v611, 0.0
  %v650 = vmax.f32 %v323, 0.0
  %v651 = vmax.f32 %v325, 0.0
  %v652 = vmax.f32 %v396, 0.0
  %v653 = vmax.f32 %v398, 0.0
  %v654 = vmax.f32 %v469, 0.0
  %v655 = vmax.f32 %v471, 0.0
  %v656 = vmax.f32 %v542, 0.0
  %v657 = vmax.f32 %v544, 0.0
  %v658 = vmax.f32 %v614, 0.0
  %v659 = vmax.f32 %v329, 0.0
  %v660 = vmax.f32 %v331, 0.0
  %v661 = vmax.f32 %v402, 0.0
  %v662 = vmax.f32 %v404, 0.0
  %v663 = vmax.f32 %v475, 0.0
  %v664 = vmax.f32 %v477, 0.0
  %v665 = vmax.f32 %v548, 0.0
  %v666 = vmax.f32 %v550, 0.0
  %v667 = vmax.f32 %v619, 0.0
  %v668 = vmax.f32 %v333, 0.0
  %v669 = vmax.f32 %v335, 0.0
  %v670 = vmax.f32 %v406, 0.0
  %v671 = vmax.f32 %v408, 0.0
  %v672 = vmax.f32 %v479, 0.0
  %v673 = vmax.f32 %v481, 0.0
  %v674 = vmax.f32 %v552, 0.0
  %v675 = vmax.f32 %v554, 0.0
  %v676 = vmax.f32 %v622, 0.0
  %v677 = vmax.f32 %v339, 0.0
  %v678 = vmax.f32 %v341, 0.0
  %v679 = vmax.f32 %v412, 0.0
  %v680 = vmax.f32 %v414, 0.0
  %v681 = vmax.f32 %v485, 0.0
  %v682 = vmax.f32 %v487, 0.0
  %v683 = vmax.f32 %v558, 0.0
  %v684 = vmax.f32 %v560, 0.0
  %v685 = vmax.f32 %v627, 0.0
  %v686 = vmax.f32 %v343, 0.0
  %v687 = vmax.f32 %v345, 0.0
  %v688 = vmax.f32 %v416, 0.0
  %v689 = vmax.f32 %v418, 0.0
  %v690 = vmax.f32 %v489, 0.0
  %v691 = vmax.f32 %v491, 0.0
  %v692 = vmax.f32 %v562, 0.0
  %v693 = vmax.f32 %v564, 0.0
  %v694 = vmax.f32 %v630, 0.0
  %v695 = vmax.f32 %v349, 0.0
  %v696 = vmax.f32 %v351, 0.0
  %v697 = vmax.f32 %v422, 0.0
  %v698 = vmax.f32 %v424, 0.0
  %v699 = vmax.f32 %v495, 0.0
  %v700 = vmax.f32 %v497, 0.0
  %v701 = vmax.f32 %v568, 0.0
  %v702 = vmax.f32 %v570, 0.0
  %v703 = vmax.f32 %v635, 0.0
  %v704 = vmax.f32 %v353, 0.0
  %v705 = vmax.f32 %v355, 0.0
  %v706 = vmax.f32 %v426, 0.0
  %v707 = vmax.f32 %v428, 0.0
  %v708 = vmax.f32 %v499, 0.0
  %v709 = vmax.f32 %v501, 0.0
  %v710 = vmax.f32 %v572, 0.0
  %v711 = vmax.f32 %v574, 0.0
  %v712 = vmax.f32 %v638, 0.0
  %v713 = vmax.f32 %v641, %v659
  %v714 = vmax.f32 %v642, %v660
  %v715 = vmax.f32 %v643, %v661
  %v716 = vmax.f32 %v644, %v662
  %v717 = vmax.f32 %v645, %v663
  %v718 = vmax.f32 %v646, %v664
  %v719 = vmax.f32 %v647, %v665
  %v720 = vmax.f32 %v648, %v666
  %v721 = vmax.f32 %v649, %v667
  %v722 = vmax.f32 %v650, %v668
  %v723 = vmax.f32 %v651, %v669
  %v724 = vmax.f32 %v652, %v670
  %v725 = vmax.f32 %v653, %v671
  %v726 = vmax.f32 %v654, %v672
  %v727 = vmax.f32 %v655, %v673
  %v728 = vmax.f32 %v656, %v674
  %v729 = vmax.f32 %v657, %v675
  %v730 = vmax.f32 %v658, %v676
  %v731 = vmax.f32 %v677, %v695
  %v732 = vmax.f32 %v678, %v696
  %v733 = vmax.f32 %v679, %v697
  %v734 = vmax.f32 %v680, %v698
  %v735 = vmax.f32 %v681, %v699
  %v736 = vmax.f32 %v682, %v700
  %v737 = vmax.f32 %v683, %v701
  %v738 = vmax.f32 %v684, %v702
  %v739 = vmax.f32 %v685, %v703
  %v740 = vmax.f32 %v686, %v704
  %v741 = vmax.f32 %v687, %v705
  %v742 = vmax.f32 %v688, %v706
  %v743 = vmax.f32 %v689, %v707
  %v744 = vmax.f32 %v690, %v708
  %v745 = vmax.f32 %v691, %v709
  %v746 = vmax.f32 %v692, %v710
  %v747 = vmax.f32 %v693, %v711
  %v748 = vmax.f32 %v694, %v712
  %v749 = vmax.f32 %v713, %v731
  %v750 = vmax.f32 %v714, %v732
  %v751 = vmax.f32 %v715, %v733
  %v752 = vmax.f32 %v716, %v734
  %v753 = vmax.f32 %v717, %v735
  %v754 = vmax.f32 %v718, %v736
  %v755 = vmax.f32 %v719, %v737
  %v756 = vmax.f32 %v720, %v738
  %v757 = vmax.f32 %v721, %v739
  %v758 = vmax.f32 %v722, %v740
  %v759 = vmax.f32 %v723, %v741
  %v760 = vmax.f32 %v724, %v742
  %v761 = vmax.f32 %v725, %v743
  %v762 = vmax.f32 %v726, %v744
  %v763 = vmax.f32 %v727, %v745
  %v764 = vmax.f32 %v728, %v746
  %v765 = vmax.f32 %v729, %v747
  %v766 = vmax.f32 %v730, %v748
  %v767 = vpack.c.bf16 %v758, %v749
  %v768 = vpack.c.bf16 %v759, %v750
  %v769 = vpack.c.bf16 %v760, %v751
  %v770 = vpack.c.bf16 %v761, %v752
  %v771 = vpack.c.bf16 %v762, %v753
  %v772 = vpack.c.bf16 %v763, %v754
  %v773 = vpack.c.bf16 %v764, %v755
  %v774 = vpack.c.bf16 %v765, %v756
  %v775 = vpack.c.bf16 %v766, %v757
  %778 = vrot.lane.b32.xlu0 %v768, 112
  %v779 = vpop.permute.xlu0 %778
  %780 = vrot.lane.b32.xlu0 %v769, 112
  %v781 = vpop.permute.xlu0 %780
  %vm782 = vcmask 916480
  %v783 = vsel %vm782, %v779, %v781
  %785 = vrot.lane.b32.xlu0 %v769, 96
  %v786 = vpop.permute.xlu0 %785
  %787 = vrot.lane.b32.xlu0 %v770, 96
  %v788 = vpop.permute.xlu0 %787
  %vm789 = vcmask 785408
  %v790 = vsel %vm789, %v786, %v788
  %792 = vrot.lane.b32.xlu0 %v770, 80
  %v793 = vpop.permute.xlu0 %792
  %794 = vrot.lane.b32.xlu0 %v771, 80
  %v795 = vpop.permute.xlu0 %794
  %vm796 = vcmask 654336
  %v797 = vsel %vm796, %v793, %v795
  %799 = vrot.lane.b32.xlu0 %v771, 64
  %v800 = vpop.permute.xlu0 %799
  %801 = vrot.lane.b32.xlu0 %v772, 64
  %v802 = vpop.permute.xlu0 %801
  %vm803 = vcmask 523264
  %v804 = vsel %vm803, %v800, %v802
  %806 = vrot.lane.b32.xlu0 %v772, 48
  %v807 = vpop.permute.xlu0 %806
  %808 = vrot.lane.b32.xlu0 %v773, 48
  %v809 = vpop.permute.xlu0 %808
  %vm810 = vcmask 392192
  %v811 = vsel %vm810, %v807, %v809
  %813 = vrot.lane.b32.xlu0 %v773, 32
  %v814 = vpop.permute.xlu0 %813
  %815 = vrot.lane.b32.xlu0 %v774, 32
  %v816 = vpop.permute.xlu0 %815
  %vm817 = vcmask 261120
  %v818 = vsel %vm817, %v814, %v816
  %820 = vrot.lane.b32.xlu0 %v774, 16
  %v821 = vpop.permute.xlu0 %820
  %822 = vrot.lane.b32.xlu0 %v775, 16
  %v823 = vpop.permute.xlu0 %822
  %vm824 = vcmask 130048
  %v825 = vsel %vm824, %v821, %v823
  %v827 = vunpack.c.l.b16 %v767
  %v828 = vunpack.c.l.b16 %v768
  %v829 = vunpack.c.h.b16 %v767
  %v830 = vunpack.c.h.b16 %v768
  %v831 = vunpack.c.l.b16 %v783
  %v832 = vunpack.c.l.b16 %v781
  %v833 = vunpack.c.h.b16 %v783
  %v834 = vunpack.c.h.b16 %v781
  %v835 = vunpack.c.l.b16 %v790
  %v836 = vunpack.c.l.b16 %v788
  %v837 = vunpack.c.h.b16 %v790
  %v838 = vunpack.c.h.b16 %v788
  %v839 = vunpack.c.l.b16 %v797
  %v840 = vunpack.c.l.b16 %v795
  %v841 = vunpack.c.h.b16 %v797
  %v842 = vunpack.c.h.b16 %v795
  %v843 = vunpack.c.l.b16 %v804
  %v844 = vunpack.c.l.b16 %v802
  %v845 = vunpack.c.h.b16 %v804
  %v846 = vunpack.c.h.b16 %v802
  %v847 = vunpack.c.l.b16 %v811
  %v848 = vunpack.c.l.b16 %v809
  %v849 = vunpack.c.h.b16 %v811
  %v850 = vunpack.c.h.b16 %v809
  %v851 = vunpack.c.l.b16 %v818
  %v852 = vunpack.c.l.b16 %v816
  %v853 = vunpack.c.h.b16 %v818
  %v854 = vunpack.c.h.b16 %v816
  %v855 = vunpack.c.l.b16 %v825
  %v856 = vunpack.c.l.b16 %v823
  %v857 = vunpack.c.h.b16 %v825
  %v858 = vunpack.c.h.b16 %v823
  %v859 = vpack.c.b16 %v828, %v827
  %v860 = vpack.c.b16 %v830, %v829
  %v861 = vpack.c.b16 %v832, %v831
  %v862 = vpack.c.b16 %v834, %v833
  %v863 = vpack.c.b16 %v836, %v835
  %v864 = vpack.c.b16 %v838, %v837
  %v865 = vpack.c.b16 %v840, %v839
  %v866 = vpack.c.b16 %v842, %v841
  %v867 = vpack.c.b16 %v844, %v843
  %v868 = vpack.c.b16 %v846, %v845
  %v869 = vpack.c.b16 %v848, %v847
  %v870 = vpack.c.b16 %v850, %v849
  %v871 = vpack.c.b16 %v852, %v851
  %v872 = vpack.c.b16 %v854, %v853
  %v873 = vpack.c.b16 %v856, %v855
  %v874 = vpack.c.b16 %v858, %v857
  %v891 = vcombine.low %v859, %v867
  %v892 = vcombine.high %v859, %v867
  %v894 = vunpack.c.l.s4 1983009808
  %v895 = vunpack.c.0.s8 %v894
  %v896 = vlaneseq
  %v897 = vshrl.u32 %v896, 7
  %v898 = vsub.s32 %v895, %v897
  %v899 = vrot.slane %v891, %v898
  %v901 = vunpack.c.l.s4 1983009808
  %v902 = vunpack.c.0.s8 %v901
  %v903 = vlaneseq
  %v904 = vshrl.u32 %v903, 7
  %v905 = vsub.s32 %v902, %v904
  %v906 = vrot.slane %v892, %v905
  %v907 = vcombine.low %v863, %v871
  %v908 = vcombine.high %v863, %v871
  %v910 = vunpack.c.l.s4 1983009808
  %v911 = vunpack.c.0.s8 %v910
  %v912 = vlaneseq
  %v913 = vshrl.u32 %v912, 7
  %v914 = vsub.s32 %v911, %v913
  %v915 = vrot.slane %v907, %v914
  %v917 = vunpack.c.l.s4 1983009808
  %v918 = vunpack.c.0.s8 %v917
  %v919 = vlaneseq
  %v920 = vshrl.u32 %v919, 7
  %v921 = vsub.s32 %v918, %v920
  %v922 = vrot.slane %v908, %v921
  %v923 = vcombine.low %v899, %v915
  %v924 = vcombine.high %v899, %v915
  %v926 = vunpack.c.l.s4 1934713408
  %v927 = vunpack.c.0.s8 %v926
  %v928 = vlaneseq
  %v929 = vshrl.u32 %v928, 7
  %v930 = vsub.s32 %v927, %v929
  %v931 = vrot.slane %v923, %v930
  %v933 = vunpack.c.l.s4 1934713408
  %v934 = vunpack.c.0.s8 %v933
  %v935 = vlaneseq
  %v936 = vshrl.u32 %v935, 7
  %v937 = vsub.s32 %v934, %v936
  %v938 = vrot.slane %v924, %v937
  %v939 = vcombine.low %v906, %v922
  %v940 = vcombine.high %v906, %v922
  %v942 = vunpack.c.l.s4 1934713408
  %v943 = vunpack.c.0.s8 %v942
  %v944 = vlaneseq
  %v945 = vshrl.u32 %v944, 7
  %v946 = vsub.s32 %v943, %v945
  %v947 = vrot.slane %v939, %v946
  %v949 = vunpack.c.l.s4 1934713408
  %v950 = vunpack.c.0.s8 %v949
  %v951 = vlaneseq
  %v952 = vshrl.u32 %v951, 7
  %v953 = vsub.s32 %v950, %v952
  %v954 = vrot.slane %v940, %v953
  %v955 = vcombine.low %v931, %v947
  %v956 = vcombine.high %v931, %v947
  %v957 = vcombine.low %v938, %v954
  %v958 = vcombine.high %v938, %v954
  %v959 = vcombine.low %v861, %v869
  %v960 = vcombine.high %v861, %v869
  %v962 = vunpack.c.l.s4 1983009808
  %v963 = vunpack.c.0.s8 %v962
  %v964 = vlaneseq
  %v965 = vshrl.u32 %v964, 7
  %v966 = vsub.s32 %v963, %v965
  %v967 = vrot.slane %v959, %v966
  %v969 = vunpack.c.l.s4 1983009808
  %v970 = vunpack.c.0.s8 %v969
  %v971 = vlaneseq
  %v972 = vshrl.u32 %v971, 7
  %v973 = vsub.s32 %v970, %v972
  %v974 = vrot.slane %v960, %v973
  %v975 = vcombine.low %v865, %v873
  %v976 = vcombine.high %v865, %v873
  %v978 = vunpack.c.l.s4 1983009808
  %v979 = vunpack.c.0.s8 %v978
  %v980 = vlaneseq
  %v981 = vshrl.u32 %v980, 7
  %v982 = vsub.s32 %v979, %v981
  %v983 = vrot.slane %v975, %v982
  %v985 = vunpack.c.l.s4 1983009808
  %v986 = vunpack.c.0.s8 %v985
  %v987 = vlaneseq
  %v988 = vshrl.u32 %v987, 7
  %v989 = vsub.s32 %v986, %v988
  %v990 = vrot.slane %v976, %v989
  %v991 = vcombine.low %v967, %v983
  %v992 = vcombine.high %v967, %v983
  %v994 = vunpack.c.l.s4 1934713408
  %v995 = vunpack.c.0.s8 %v994
  %v996 = vlaneseq
  %v997 = vshrl.u32 %v996, 7
  %v998 = vsub.s32 %v995, %v997
  %v999 = vrot.slane %v991, %v998
  %v1001 = vunpack.c.l.s4 1934713408
  %v1002 = vunpack.c.0.s8 %v1001
  %v1003 = vlaneseq
  %v1004 = vshrl.u32 %v1003, 7
  %v1005 = vsub.s32 %v1002, %v1004
  %v1006 = vrot.slane %v992, %v1005
  %v1007 = vcombine.low %v974, %v990
  %v1008 = vcombine.high %v974, %v990
  %v1010 = vunpack.c.l.s4 1934713408
  %v1011 = vunpack.c.0.s8 %v1010
  %v1012 = vlaneseq
  %v1013 = vshrl.u32 %v1012, 7
  %v1014 = vsub.s32 %v1011, %v1013
  %v1015 = vrot.slane %v1007, %v1014
  %v1017 = vunpack.c.l.s4 1934713408
  %v1018 = vunpack.c.0.s8 %v1017
  %v1019 = vlaneseq
  %v1020 = vshrl.u32 %v1019, 7
  %v1021 = vsub.s32 %v1018, %v1020
  %v1022 = vrot.slane %v1008, %v1021
  %v1023 = vcombine.low %v999, %v1015
  %v1024 = vcombine.high %v999, %v1015
  %v1025 = vcombine.low %v1006, %v1022
  %v1026 = vcombine.high %v1006, %v1022
  %v1027 = vcombine.low %v860, %v868
  %v1028 = vcombine.high %v860, %v868
  %v1030 = vunpack.c.l.s4 1983009808
  %v1031 = vunpack.c.0.s8 %v1030
  %v1032 = vlaneseq
  %v1033 = vshrl.u32 %v1032, 7
  %v1034 = vsub.s32 %v1031, %v1033
  %v1035 = vrot.slane %v1027, %v1034
  %v1037 = vunpack.c.l.s4 1983009808
  %v1038 = vunpack.c.0.s8 %v1037
  %v1039 = vlaneseq
  %v1040 = vshrl.u32 %v1039, 7
  %v1041 = vsub.s32 %v1038, %v1040
  %v1042 = vrot.slane %v1028, %v1041
  %v1043 = vcombine.low %v864, %v872
  %v1044 = vcombine.high %v864, %v872
  %v1046 = vunpack.c.l.s4 1983009808
  %v1047 = vunpack.c.0.s8 %v1046
  %v1048 = vlaneseq
  %v1049 = vshrl.u32 %v1048, 7
  %v1050 = vsub.s32 %v1047, %v1049
  %v1051 = vrot.slane %v1043, %v1050
  %v1053 = vunpack.c.l.s4 1983009808
  %v1054 = vunpack.c.0.s8 %v1053
  %v1055 = vlaneseq
  %v1056 = vshrl.u32 %v1055, 7
  %v1057 = vsub.s32 %v1054, %v1056
  %v1058 = vrot.slane %v1044, %v1057
  %v1059 = vcombine.low %v1035, %v1051
  %v1060 = vcombine.high %v1035, %v1051
  %v1062 = vunpack.c.l.s4 1934713408
  %v1063 = vunpack.c.0.s8 %v1062
  %v1064 = vlaneseq
  %v1065 = vshrl.u32 %v1064, 7
  %v1066 = vsub.s32 %v1063, %v1065
  %v1067 = vrot.slane %v1059, %v1066
  %v1069 = vunpack.c.l.s4 1934713408
  %v1070 = vunpack.c.0.s8 %v1069
  %v1071 = vlaneseq
  %v1072 = vshrl.u32 %v1071, 7
  %v1073 = vsub.s32 %v1070, %v1072
  %v1074 = vrot.slane %v1060, %v1073
  %v1075 = vcombine.low %v1042, %v1058
  %v1076 = vcombine.high %v1042, %v1058
  %v1078 = vunpack.c.l.s4 1934713408
  %v1079 = vunpack.c.0.s8 %v1078
  %v1080 = vlaneseq
  %v1081 = vshrl.u32 %v1080, 7
  %v1082 = vsub.s32 %v1079, %v1081
  %v1083 = vrot.slane %v1075, %v1082
  %v1085 = vunpack.c.l.s4 1934713408
  %v1086 = vunpack.c.0.s8 %v1085
  %v1087 = vlaneseq
  %v1088 = vshrl.u32 %v1087, 7
  %v1089 = vsub.s32 %v1086, %v1088
  %v1090 = vrot.slane %v1076, %v1089
  %v1091 = vcombine.low %v1067, %v1083
  %v1092 = vcombine.high %v1067, %v1083
  %v1093 = vcombine.low %v1074, %v1090
  %v1094 = vcombine.high %v1074, %v1090
  %v1095 = vcombine.low %v862, %v870
  %v1096 = vcombine.high %v862, %v870
  %v1098 = vunpack.c.l.s4 1983009808
  %v1099 = vunpack.c.0.s8 %v1098
  %v1100 = vlaneseq
  %v1101 = vshrl.u32 %v1100, 7
  %v1102 = vsub.s32 %v1099, %v1101
  %v1103 = vrot.slane %v1095, %v1102
  %v1105 = vunpack.c.l.s4 1983009808
  %v1106 = vunpack.c.0.s8 %v1105
  %v1107 = vlaneseq
  %v1108 = vshrl.u32 %v1107, 7
  %v1109 = vsub.s32 %v1106, %v1108
  %v1110 = vrot.slane %v1096, %v1109
  %v1111 = vcombine.low %v866, %v874
  %v1112 = vcombine.high %v866, %v874
  %v1114 = vunpack.c.l.s4 1983009808
  %v1115 = vunpack.c.0.s8 %v1114
  %v1116 = vlaneseq
  %v1117 = vshrl.u32 %v1116, 7
  %v1118 = vsub.s32 %v1115, %v1117
  %v1119 = vrot.slane %v1111, %v1118
  %v1121 = vunpack.c.l.s4 1983009808
  %v1122 = vunpack.c.0.s8 %v1121
  %v1123 = vlaneseq
  %v1124 = vshrl.u32 %v1123, 7
  %v1125 = vsub.s32 %v1122, %v1124
  %v1126 = vrot.slane %v1112, %v1125
  %v1127 = vcombine.low %v1103, %v1119
  %v1128 = vcombine.high %v1103, %v1119
  %v1130 = vunpack.c.l.s4 1934713408
  %v1131 = vunpack.c.0.s8 %v1130
  %v1132 = vlaneseq
  %v1133 = vshrl.u32 %v1132, 7
  %v1134 = vsub.s32 %v1131, %v1133
  %v1135 = vrot.slane %v1127, %v1134
  %v1137 = vunpack.c.l.s4 1934713408
  %v1138 = vunpack.c.0.s8 %v1137
  %v1139 = vlaneseq
  %v1140 = vshrl.u32 %v1139, 7
  %v1141 = vsub.s32 %v1138, %v1140
  %v1142 = vrot.slane %v1128, %v1141
  %v1143 = vcombine.low %v1110, %v1126
  %v1144 = vcombine.high %v1110, %v1126
  %v1146 = vunpack.c.l.s4 1934713408
  %v1147 = vunpack.c.0.s8 %v1146
  %v1148 = vlaneseq
  %v1149 = vshrl.u32 %v1148, 7
  %v1150 = vsub.s32 %v1147, %v1149
  %v1151 = vrot.slane %v1143, %v1150
  %v1153 = vunpack.c.l.s4 1934713408
  %v1154 = vunpack.c.0.s8 %v1153
  %v1155 = vlaneseq
  %v1156 = vshrl.u32 %v1155, 7
  %v1157 = vsub.s32 %v1154, %v1156
  %v1158 = vrot.slane %v1144, %v1157
  %v1159 = vcombine.low %v1135, %v1151
  %v1160 = vcombine.high %v1135, %v1151
  %v1161 = vcombine.low %v1142, %v1158
  %v1162 = vcombine.high %v1142, %v1158
  %v1165 = vpack.i.b16 %v1023, %v955
  %v1167 = vshrl.u32 %v955, 16
  %v1168 = vshrl.u32 %v1023, 16
  %v1169 = vpack.i.b16 %v1168, %v1167
  %v1173 = vpack.i.b16 %v1024, %v956
  %v1175 = vshrl.u32 %v956, 16
  %v1176 = vshrl.u32 %v1024, 16
  %v1177 = vpack.i.b16 %v1176, %v1175
  %v1181 = vpack.i.b16 %v1025, %v957
  %v1183 = vshrl.u32 %v957, 16
  %v1184 = vshrl.u32 %v1025, 16
  %v1185 = vpack.i.b16 %v1184, %v1183
  %v1189 = vpack.i.b16 %v1026, %v958
  %v1191 = vshrl.u32 %v958, 16
  %v1192 = vshrl.u32 %v1026, 16
  %v1193 = vpack.i.b16 %v1192, %v1191
  %v1197 = vpack.i.b16 %v1159, %v1091
  %v1199 = vshrl.u32 %v1091, 16
  %v1200 = vshrl.u32 %v1159, 16
  %v1201 = vpack.i.b16 %v1200, %v1199
  %v1205 = vpack.i.b16 %v1160, %v1092
  %v1207 = vshrl.u32 %v1092, 16
  %v1208 = vshrl.u32 %v1160, 16
  %v1209 = vpack.i.b16 %v1208, %v1207
  %v1213 = vpack.i.b16 %v1161, %v1093
  %v1215 = vshrl.u32 %v1093, 16
  %v1216 = vshrl.u32 %v1161, 16
  %v1217 = vpack.i.b16 %v1216, %v1215
  %v1221 = vpack.i.b16 %v1162, %v1094
  %v1223 = vshrl.u32 %v1094, 16
  %v1224 = vshrl.u32 %v1162, 16
  %v1225 = vpack.i.b16 %v1224, %v1223
  %vm1227 = vcmask 1043456
  %vm1228 = vcmask 130052
  %vm1229 = vmor %vm1228, %vm1227
  %1230 = vst.msk [vmem:[#allocation2] sm:$0xff] %vm1229, %v1165
  %1231 = vst.msk [vmem:[#allocation2 + $0x8] sm:$0xff] %vm1229, %v1169
  %1232 = vst.msk [vmem:[#allocation2 + $0x10] sm:$0xff] %vm1229, %v1173
  %1233 = vst.msk [vmem:[#allocation2 + $0x18] sm:$0xff] %vm1229, %v1177
  %1234 = vst.msk [vmem:[#allocation2 + $0x20] sm:$0xff] %vm1229, %v1181
  %1235 = vst.msk [vmem:[#allocation2 + $0x28] sm:$0xff] %vm1229, %v1185
  %1236 = vst.msk [vmem:[#allocation2 + $0x30] sm:$0xff] %vm1229, %v1189
  %1237 = vst.msk [vmem:[#allocation2 + $0x38] sm:$0xff] %vm1229, %v1193
  %1238 = vst.msk [vmem:[#allocation2 + $0x40] sm:$0xff] %vm1229, %v1197
  %1239 = vst.msk [vmem:[#allocation2 + $0x48] sm:$0xff] %vm1229, %v1201
  %1240 = vst.msk [vmem:[#allocation2 + $0x50] sm:$0xff] %vm1229, %v1205
  %1241 = vst.msk [vmem:[#allocation2 + $0x58] sm:$0xff] %vm1229, %v1209
  %1242 = vst.msk [vmem:[#allocation2 + $0x60] sm:$0xff] %vm1229, %v1213
  %1243 = vst.msk [vmem:[#allocation2 + $0x68] sm:$0xff] %vm1229, %v1217
  %1244 = vst.msk [vmem:[#allocation2 + $0x70] sm:$0xff] %vm1229, %v1221
  %1245 = vst.msk [vmem:[#allocation2 + $0x78] sm:$0xff] %vm1229, %v1225
  %v1246 = vld [vmem:[#allocation2] sm:$0xff]
  %v1247 = vld [vmem:[%s3] sm:$0xff]
  %v1248 = vld [vmem:[%s3 + $0x8] sm:$0xff]
  %v1249 = vld [vmem:[%s3 + $0x10] sm:$0xff]
  %v1250 = vld [vmem:[%s3 + $0x18] sm:$0xff]
  %v1251 = vld [vmem:[%s3 + $0x20] sm:$0xff]
  %v1252 = vld [vmem:[%s3 + $0x28] sm:$0xff]
  %v1253 = vld [vmem:[%s3 + $0x30] sm:$0xff]
  %v1254 = vld [vmem:[%s3 + $0x38] sm:$0xff]
  %v1255 = vld [vmem:[%s3 + $0x40] sm:$0xff]
  %v1256 = vld [vmem:[%s3 + $0x48] sm:$0xff]
  %v1257 = vld [vmem:[%s3 + $0x50] sm:$0xff]
  %v1258 = vld [vmem:[%s3 + $0x58] sm:$0xff]
  %v1259 = vld [vmem:[%s3 + $0x60] sm:$0xff]
  %v1260 = vld [vmem:[%s3 + $0x68] sm:$0xff]
  %v1261 = vld [vmem:[%s3 + $0x70] sm:$0xff]
  %v1262 = vld [vmem:[%s3 + $0x78] sm:$0xff]
  %v1263 = vld [vmem:[%s3 + $0x80] sm:$0xff]
  %v1264 = vld [vmem:[%s3 + $0x88] sm:$0xff]
  %v1266 = vunpack.c.l.b16 %v1246
  %v1267 = vunpack.c.h.b16 %v1246
  %v1268 = vpack.c.b16 %v1266, %v1266
  %v1269 = vpack.c.b16 %v1267, %v1267
  %v1289 = vunpack.c.l.b16 %v1247
  %v1290 = vunpack.c.h.b16 %v1247
  %v1291 = vunpack.c.l.b16 %v1248
  %v1292 = vunpack.c.h.b16 %v1248
  %v1293 = vunpack.c.l.b16 %v1249
  %v1294 = vunpack.c.h.b16 %v1249
  %v1295 = vunpack.c.l.b16 %v1250
  %v1296 = vunpack.c.h.b16 %v1250
  %v1297 = vunpack.c.l.b16 %v1251
  %v1298 = vunpack.c.h.b16 %v1251
  %v1299 = vunpack.c.l.b16 %v1252
  %v1300 = vunpack.c.h.b16 %v1252
  %v1301 = vunpack.c.l.b16 %v1253
  %v1302 = vunpack.c.h.b16 %v1253
  %v1303 = vunpack.c.l.b16 %v1254
  %v1304 = vunpack.c.h.b16 %v1254
  %v1305 = vunpack.c.l.b16 %v1255
  %v1306 = vunpack.c.h.b16 %v1255
  %v1307 = vunpack.c.l.b16 %v1256
  %v1308 = vunpack.c.h.b16 %v1256
  %v1309 = vunpack.c.l.b16 %v1257
  %v1310 = vunpack.c.h.b16 %v1257
  %v1311 = vunpack.c.l.b16 %v1258
  %v1312 = vunpack.c.h.b16 %v1258
  %v1313 = vunpack.c.l.b16 %v1259
  %v1314 = vunpack.c.h.b16 %v1259
  %v1315 = vunpack.c.l.b16 %v1260
  %v1316 = vunpack.c.h.b16 %v1260
  %v1317 = vunpack.c.l.b16 %v1261
  %v1318 = vunpack.c.h.b16 %v1261
  %v1319 = vunpack.c.l.b16 %v1262
  %v1320 = vunpack.c.h.b16 %v1262
  %v1321 = vunpack.c.l.b16 %v1263
  %v1322 = vunpack.c.h.b16 %v1263
  %v1323 = vunpack.c.l.b16 %v1264
  %v1324 = vunpack.c.h.b16 %v1264
  %v1325 = vpack.c.b16 %v1291, %v1289
  %v1326 = vpack.c.b16 %v1292, %v1290
  %v1327 = vpack.c.b16 %v1295, %v1293
  %v1328 = vpack.c.b16 %v1296, %v1294
  %v1329 = vpack.c.b16 %v1299, %v1297
  %v1330 = vpack.c.b16 %v1300, %v1298
  %v1331 = vpack.c.b16 %v1303, %v1301
  %v1332 = vpack.c.b16 %v1304, %v1302
  %v1333 = vpack.c.b16 %v1307, %v1305
  %v1334 = vpack.c.b16 %v1308, %v1306
  %v1335 = vpack.c.b16 %v1311, %v1309
  %v1336 = vpack.c.b16 %v1312, %v1310
  %v1337 = vpack.c.b16 %v1315, %v1313
  %v1338 = vpack.c.b16 %v1316, %v1314
  %v1339 = vpack.c.b16 %v1319, %v1317
  %v1340 = vpack.c.b16 %v1320, %v1318
  %v1341 = vpack.c.b16 %v1323, %v1321
  %v1342 = vpack.c.b16 %v1324, %v1322
  %vm1361 = vcmask 130048
  %v1363 = vsel %vm1361, %v1269, 0
  %1365 = vmatprep.subr.bf16.mxu0 %v1340
  %1366 = vmatpush1.bf16.msra.mxu0 %v1339
  %1367 = vmatprep.subr.bf16.mxu0 %v1338
  %1368 = vmatpush1.bf16.msra.mxu0 %v1337
  %1369 = vmatprep.subr.bf16.mxu0 %v1336
  %1370 = vmatpush1.bf16.msra.mxu0 %v1335
  %1371 = vmatprep.subr.bf16.mxu0 %v1334
  %1372 = vmatpush1.bf16.msra.mxu0 %v1333
  %1373 = vmatprep.subr.bf16.mxu0 %v1332
  %1374 = vmatpush1.bf16.msra.mxu0 %v1331
  %1375 = vmatprep.subr.bf16.mxu0 %v1330
  %1376 = vmatpush1.bf16.msra.mxu0 %v1329
  %1377 = vmatprep.subr.bf16.mxu0 %v1328
  %1378 = vmatpush1.bf16.msra.mxu0 %v1327
  %1379 = vmatprep.subr.bf16.mxu0 %v1326
  %1380 = vmatpush1.bf16.msra.mxu0 %v1325
  %1381 = vmatprep.subr.bf16.mxu0 0
  %1382 = vmatpush2.bf16.msra.mxu0 0
  %1383 = vmatprep.subr.bf16.mxu0 0
  %1384 = vmatpush2.bf16.msra.mxu0 0
  %1385 = vmatprep.subr.bf16.mxu0 0
  %1386 = vmatpush2.bf16.msra.mxu0 0
  %1387 = vmatprep.subr.bf16.mxu0 0
  %1388 = vmatpush2.bf16.msra.mxu0 0
  %1389 = vmatprep.subr.bf16.mxu0 0
  %1390 = vmatpush2.bf16.msra.mxu0 0
  %1391 = vmatprep.subr.bf16.mxu0 0
  %1392 = vmatpush2.bf16.msra.mxu0 0
  %1393 = vmatprep.subr.bf16.mxu0 0
  %1394 = vmatpush2.bf16.msra.mxu0 0
  %1395 = vmatprep.subr.bf16.mxu0 %v1342
  %1396 = vmatpush2.bf16.msra.mxu0 %v1341
  %1397 = vmatprep.mubr.bf16.mxu0 %v1363
  %1398 = vmatmul.mubr.bf16.gmra.mxu0 %v1268
  %v1399 = vpop.f32.mrf.mxu0
  %v1400 = vadd.f32 0.0, %v1399
  %v1401 = vpop.f32.mrf.mxu0
  %v1402 = vadd.f32 0.0, %v1401
  %v1403 = vpop.f32.mrf.mxu0
  %v1404 = vpop.f32.mrf.mxu0
  %1405 = vdwg.mxu0
  %1406 = vst [vmem:[#allocation3] sm:$0xff] %v1400
  %1407 = vst [vmem:[#allocation3 + $0x8] sm:$0xff] %v1402
  %v1408 = vld [vmem:[#allocation3] sm:$0xff]
  %v1409 = vld [vmem:[#allocation3 + $0x8] sm:$0xff]
  %s1410 = scalar_lea.vmem [#allocation2], 8
  %v1411 = vld [vmem:[%s1410] sm:$0xff]
  %s1412 = scalar_lea.vmem %s3, 144
  %v1413 = vld [vmem:[%s1412] sm:$0xff]
  %v1414 = vld [vmem:[%s1412 + $0x8] sm:$0xff]
  %v1415 = vld [vmem:[%s1412 + $0x10] sm:$0xff]
  %v1416 = vld [vmem:[%s1412 + $0x18] sm:$0xff]
  %v1417 = vld [vmem:[%s1412 + $0x20] sm:$0xff]
  %v1418 = vld [vmem:[%s1412 + $0x28] sm:$0xff]
  %v1419 = vld [vmem:[%s1412 + $0x30] sm:$0xff]
  %v1420 = vld [vmem:[%s1412 + $0x38] sm:$0xff]
  %v1421 = vld [vmem:[%s1412 + $0x40] sm:$0xff]
  %v1422 = vld [vmem:[%s1412 + $0x48] sm:$0xff]
  %v1423 = vld [vmem:[%s1412 + $0x50] sm:$0xff]
  %v1424 = vld [vmem:[%s1412 + $0x58] sm:$0xff]
  %v1425 = vld [vmem:[%s1412 + $0x60] sm:$0xff]
  %v1426 = vld [vmem:[%s1412 + $0x68] sm:$0xff]
  %v1427 = vld [vmem:[%s1412 + $0x70] sm:$0xff]
  %v1428 = vld [vmem:[%s1412 + $0x78] sm:$0xff]
  %v1429 = vld [vmem:[%s1412 + $0x80] sm:$0xff]
  %v1430 = vld [vmem:[%s1412 + $0x88] sm:$0xff]
  %v1432 = vunpack.c.l.b16 %v1411
  %v1433 = vunpack.c.h.b16 %v1411
  %v1434 = vpack.c.b16 %v1432, %v1432
  %v1435 = vpack.c.b16 %v1433, %v1433
  %v1455 = vunpack.c.l.b16 %v1413
  %v1456 = vunpack.c.h.b16 %v1413
  %v1457 = vunpack.c.l.b16 %v1414
  %v1458 = vunpack.c.h.b16 %v1414
  %v1459 = vunpack.c.l.b16 %v1415
  %v1460 = vunpack.c.h.b16 %v1415
  %v1461 = vunpack.c.l.b16 %v1416
  %v1462 = vunpack.c.h.b16 %v1416
  %v1463 = vunpack.c.l.b16 %v1417
  %v1464 = vunpack.c.h.b16 %v1417
  %v1465 = vunpack.c.l.b16 %v1418
  %v1466 = vunpack.c.h.b16 %v1418
  %v1467 = vunpack.c.l.b16 %v1419
  %v1468 = vunpack.c.h.b16 %v1419
  %v1469 = vunpack.c.l.b16 %v1420
  %v1470 = vunpack.c.h.b16 %v1420
  %v1471 = vunpack.c.l.b16 %v1421
  %v1472 = vunpack.c.h.b16 %v1421
  %v1473 = vunpack.c.l.b16 %v1422
  %v1474 = vunpack.c.h.b16 %v1422
  %v1475 = vunpack.c.l.b16 %v1423
  %v1476 = vunpack.c.h.b16 %v1423
  %v1477 = vunpack.c.l.b16 %v1424
  %v1478 = vunpack.c.h.b16 %v1424
  %v1479 = vunpack.c.l.b16 %v1425
  %v1480 = vunpack.c.h.b16 %v1425
  %v1481 = vunpack.c.l.b16 %v1426
  %v1482 = vunpack.c.h.b16 %v1426
  %v1483 = vunpack.c.l.b16 %v1427
  %v1484 = vunpack.c.h.b16 %v1427
  %v1485 = vunpack.c.l.b16 %v1428
  %v1486 = vunpack.c.h.b16 %v1428
  %v1487 = vunpack.c.l.b16 %v1429
  %v1488 = vunpack.c.h.b16 %v1429
  %v1489 = vunpack.c.l.b16 %v1430
  %v1490 = vunpack.c.h.b16 %v1430
  %v1491 = vpack.c.b16 %v1457, %v1455
  %v1492 = vpack.c.b16 %v1458, %v1456
  %v1493 = vpack.c.b16 %v1461, %v1459
  %v1494 = vpack.c.b16 %v1462, %v1460
  %v1495 = vpack.c.b16 %v1465, %v1463
  %v1496 = vpack.c.b16 %v1466, %v1464
  %v1497 = vpack.c.b16 %v1469, %v1467
  %v1498 = vpack.c.b16 %v1470, %v1468
  %v1499 = vpack.c.b16 %v1473, %v1471
  %v1500 = vpack.c.b16 %v1474, %v1472
  %v1501 = vpack.c.b16 %v1477, %v1475
  %v1502 = vpack.c.b16 %v1478, %v1476
  %v1503 = vpack.c.b16 %v1481, %v1479
  %v1504 = vpack.c.b16 %v1482, %v1480
  %v1505 = vpack.c.b16 %v1485, %v1483
  %v1506 = vpack.c.b16 %v1486, %v1484
  %v1507 = vpack.c.b16 %v1489, %v1487
  %v1508 = vpack.c.b16 %v1490, %v1488
  %v1528 = vsel %vm1361, %v1435, 0
  %1530 = vmatprep.subr.bf16.mxu0 %v1506
  %1531 = vmatpush1.bf16.msra.mxu0 %v1505
  %1532 = vmatprep.subr.bf16.mxu0 %v1504
  %1533 = vmatpush1.bf16.msra.mxu0 %v1503
  %1534 = vmatprep.subr.bf16.mxu0 %v1502
  %1535 = vmatpush1.bf16.msra.mxu0 %v1501
  %1536 = vmatprep.subr.bf16.mxu0 %v1500
  %1537 = vmatpush1.bf16.msra.mxu0 %v1499
  %1538 = vmatprep.subr.bf16.mxu0 %v1498
  %1539 = vmatpush1.bf16.msra.mxu0 %v1497
  %1540 = vmatprep.subr.bf16.mxu0 %v1496
  %1541 = vmatpush1.bf16.msra.mxu0 %v1495
  %1542 = vmatprep.subr.bf16.mxu0 %v1494
  %1543 = vmatpush1.bf16.msra.mxu0 %v1493
  %1544 = vmatprep.subr.bf16.mxu0 %v1492
  %1545 = vmatpush1.bf16.msra.mxu0 %v1491
  %1546 = vmatprep.subr.bf16.mxu0 0
  %1547 = vmatpush2.bf16.msra.mxu0 0
  %1548 = vmatprep.subr.bf16.mxu0 0
  %1549 = vmatpush2.bf16.msra.mxu0 0
  %1550 = vmatprep.subr.bf16.mxu0 0
  %1551 = vmatpush2.bf16.msra.mxu0 0
  %1552 = vmatprep.subr.bf16.mxu0 0
  %1553 = vmatpush2.bf16.msra.mxu0 0
  %1554 = vmatprep.subr.bf16.mxu0 0
  %1555 = vmatpush2.bf16.msra.mxu0 0
  %1556 = vmatprep.subr.bf16.mxu0 0
  %1557 = vmatpush2.bf16.msra.mxu0 0
  %1558 = vmatprep.subr.bf16.mxu0 0
  %1559 = vmatpush2.bf16.msra.mxu0 0
  %1560 = vmatprep.subr.bf16.mxu0 %v1508
  %1561 = vmatpush2.bf16.msra.mxu0 %v1507
  %1562 = vmatprep.mubr.bf16.mxu0 %v1528
  %1563 = vmatmul.mubr.bf16.gmra.mxu0 %v1434
  %v1564 = vpop.f32.mrf.mxu0
  %v1565 = vadd.f32 0.0, %v1564
  %v1566 = vpop.f32.mrf.mxu0
  %v1567 = vadd.f32 0.0, %v1566
  %v1568 = vpop.f32.mrf.mxu0
  %v1569 = vpop.f32.mrf.mxu0
  %1570 = vdwg.mxu0
  %v1571 = vadd.f32 %v1408, %v1565
  %v1572 = vadd.f32 %v1409, %v1567
  %1573 = vst [vmem:[#allocation3] sm:$0xff] %v1571
  %1574 = vst [vmem:[#allocation3 + $0x8] sm:$0xff] %v1572
  %v1575 = vld [vmem:[#allocation3] sm:$0xff]
  %v1576 = vld [vmem:[#allocation3 + $0x8] sm:$0xff]
  %s1577 = scalar_lea.vmem [#allocation2], 16
  %v1578 = vld [vmem:[%s1577] sm:$0xff]
  %s1579 = scalar_lea.vmem %s3, 288
  %v1580 = vld [vmem:[%s1579] sm:$0xff]
  %v1581 = vld [vmem:[%s1579 + $0x8] sm:$0xff]
  %v1582 = vld [vmem:[%s1579 + $0x10] sm:$0xff]
  %v1583 = vld [vmem:[%s1579 + $0x18] sm:$0xff]
  %v1584 = vld [vmem:[%s1579 + $0x20] sm:$0xff]
  %v1585 = vld [vmem:[%s1579 + $0x28] sm:$0xff]
  %v1586 = vld [vmem:[%s1579 + $0x30] sm:$0xff]
  %v1587 = vld [vmem:[%s1579 + $0x38] sm:$0xff]
  %v1588 = vld [vmem:[%s1579 + $0x40] sm:$0xff]
  %v1589 = vld [vmem:[%s1579 + $0x48] sm:$0xff]
  %v1590 = vld [vmem:[%s1579 + $0x50] sm:$0xff]
  %v1591 = vld [vmem:[%s1579 + $0x58] sm:$0xff]
  %v1592 = vld [vmem:[%s1579 + $0x60] sm:$0xff]
  %v1593 = vld [vmem:[%s1579 + $0x68] sm:$0xff]
  %v1594 = vld [vmem:[%s1579 + $0x70] sm:$0xff]
  %v1595 = vld [vmem:[%s1579 + $0x78] sm:$0xff]
  %v1596 = vld [vmem:[%s1579 + $0x80] sm:$0xff]
  %v1597 = vld [vmem:[%s1579 + $0x88] sm:$0xff]
  %v1599 = vunpack.c.l.b16 %v1578
  %v1600 = vunpack.c.h.b16 %v1578
  %v1601 = vpack.c.b16 %v1599, %v1599
  %v1602 = vpack.c.b16 %v1600, %v1600
  %v1622 = vunpack.c.l.b16 %v1580
  %v1623 = vunpack.c.h.b16 %v1580
  %v1624 = vunpack.c.l.b16 %v1581
  %v1625 = vunpack.c.h.b16 %v1581
  %v1626 = vunpack.c.l.b16 %v1582
  %v1627 = vunpack.c.h.b16 %v1582
  %v1628 = vunpack.c.l.b16 %v1583
  %v1629 = vunpack.c.h.b16 %v1583
  %v1630 = vunpack.c.l.b16 %v1584
  %v1631 = vunpack.c.h.b16 %v1584
  %v1632 = vunpack.c.l.b16 %v1585
  %v1633 = vunpack.c.h.b16 %v1585
  %v1634 = vunpack.c.l.b16 %v1586
  %v1635 = vunpack.c.h.b16 %v1586
  %v1636 = vunpack.c.l.b16 %v1587
  %v1637 = vunpack.c.h.b16 %v1587
  %v1638 = vunpack.c.l.b16 %v1588
  %v1639 = vunpack.c.h.b16 %v1588
  %v1640 = vunpack.c.l.b16 %v1589
  %v1641 = vunpack.c.h.b16 %v1589
  %v1642 = vunpack.c.l.b16 %v1590
  %v1643 = vunpack.c.h.b16 %v1590
  %v1644 = vunpack.c.l.b16 %v1591
  %v1645 = vunpack.c.h.b16 %v1591
  %v1646 = vunpack.c.l.b16 %v1592
  %v1647 = vunpack.c.h.b16 %v1592
  %v1648 = vunpack.c.l.b16 %v1593
  %v1649 = vunpack.c.h.b16 %v1593
  %v1650 = vunpack.c.l.b16 %v1594
  %v1651 = vunpack.c.h.b16 %v1594
  %v1652 = vunpack.c.l.b16 %v1595
  %v1653 = vunpack.c.h.b16 %v1595
  %v1654 = vunpack.c.l.b16 %v1596
  %v1655 = vunpack.c.h.b16 %v1596
  %v1656 = vunpack.c.l.b16 %v1597
  %v1657 = vunpack.c.h.b16 %v1597
  %v1658 = vpack.c.b16 %v1624, %v1622
  %v1659 = vpack.c.b16 %v1625, %v1623
  %v1660 = vpack.c.b16 %v1628, %v1626
  %v1661 = vpack.c.b16 %v1629, %v1627
  %v1662 = vpack.c.b16 %v1632, %v1630
  %v1663 = vpack.c.b16 %v1633, %v1631
  %v1664 = vpack.c.b16 %v1636, %v1634
  %v1665 = vpack.c.b16 %v1637, %v1635
  %v1666 = vpack.c.b16 %v1640, %v1638
  %v1667 = vpack.c.b16 %v1641, %v1639
  %v1668 = vpack.c.b16 %v1644, %v1642
  %v1669 = vpack.c.b16 %v1645, %v1643
  %v1670 = vpack.c.b16 %v1648, %v1646
  %v1671 = vpack.c.b16 %v1649, %v1647
  %v1672 = vpack.c.b16 %v1652, %v1650
  %v1673 = vpack.c.b16 %v1653, %v1651
  %v1674 = vpack.c.b16 %v1656, %v1654
  %v1675 = vpack.c.b16 %v1657, %v1655
  %v1695 = vsel %vm1361, %v1602, 0
  %1697 = vmatprep.subr.bf16.mxu0 %v1673
  %1698 = vmatpush1.bf16.msra.mxu0 %v1672
  %1699 = vmatprep.subr.bf16.mxu0 %v1671
  %1700 = vmatpush1.bf16.msra.mxu0 %v1670
  %1701 = vmatprep.subr.bf16.mxu0 %v1669
  %1702 = vmatpush1.bf16.msra.mxu0 %v1668
  %1703 = vmatprep.subr.bf16.mxu0 %v1667
  %1704 = vmatpush1.bf16.msra.mxu0 %v1666
  %1705 = vmatprep.subr.bf16.mxu0 %v1665
  %1706 = vmatpush1.bf16.msra.mxu0 %v1664
  %1707 = vmatprep.subr.bf16.mxu0 %v1663
  %1708 = vmatpush1.bf16.msra.mxu0 %v1662
  %1709 = vmatprep.subr.bf16.mxu0 %v1661
  %1710 = vmatpush1.bf16.msra.mxu0 %v1660
  %1711 = vmatprep.subr.bf16.mxu0 %v1659
  %1712 = vmatpush1.bf16.msra.mxu0 %v1658
  %1713 = vmatprep.subr.bf16.mxu0 0
  %1714 = vmatpush2.bf16.msra.mxu0 0
  %1715 = vmatprep.subr.bf16.mxu0 0
  %1716 = vmatpush2.bf16.msra.mxu0 0
  %1717 = vmatprep.subr.bf16.mxu0 0
  %1718 = vmatpush2.bf16.msra.mxu0 0
  %1719 = vmatprep.subr.bf16.mxu0 0
  %1720 = vmatpush2.bf16.msra.mxu0 0
  %1721 = vmatprep.subr.bf16.mxu0 0
  %1722 = vmatpush2.bf16.msra.mxu0 0
  %1723 = vmatprep.subr.bf16.mxu0 0
  %1724 = vmatpush2.bf16.msra.mxu0 0
  %1725 = vmatprep.subr.bf16.mxu0 0
  %1726 = vmatpush2.bf16.msra.mxu0 0
  %1727 = vmatprep.subr.bf16.mxu0 %v1675
  %1728 = vmatpush2.bf16.msra.mxu0 %v1674
  %1729 = vmatprep.mubr.bf16.mxu0 %v1695
  %1730 = vmatmul.mubr.bf16.gmra.mxu0 %v1601
  %v1731 = vpop.f32.mrf.mxu0
  %v1732 = vadd.f32 0.0, %v1731
  %v1733 = vpop.f32.mrf.mxu0
  %v1734 = vadd.f32 0.0, %v1733
  %v1735 = vpop.f32.mrf.mxu0
  %v1736 = vpop.f32.mrf.mxu0
  %1737 = vdwg.mxu0
  %v1738 = vadd.f32 %v1575, %v1732
  %v1739 = vadd.f32 %v1576, %v1734
  %1740 = vst [vmem:[#allocation3] sm:$0xff] %v1738
  %1741 = vst [vmem:[#allocation3 + $0x8] sm:$0xff] %v1739
  %v1742 = vld [vmem:[#allocation3] sm:$0xff]
  %v1743 = vld [vmem:[#allocation3 + $0x8] sm:$0xff]
  %s1744 = scalar_lea.vmem [#allocation2], 24
  %v1745 = vld [vmem:[%s1744] sm:$0xff]
  %s1746 = scalar_lea.vmem %s3, 432
  %v1747 = vld [vmem:[%s1746] sm:$0xff]
  %v1748 = vld [vmem:[%s1746 + $0x8] sm:$0xff]
  %v1749 = vld [vmem:[%s1746 + $0x10] sm:$0xff]
  %v1750 = vld [vmem:[%s1746 + $0x18] sm:$0xff]
  %v1751 = vld [vmem:[%s1746 + $0x20] sm:$0xff]
  %v1752 = vld [vmem:[%s1746 + $0x28] sm:$0xff]
  %v1753 = vld [vmem:[%s1746 + $0x30] sm:$0xff]
  %v1754 = vld [vmem:[%s1746 + $0x38] sm:$0xff]
  %v1755 = vld [vmem:[%s1746 + $0x40] sm:$0xff]
  %v1756 = vld [vmem:[%s1746 + $0x48] sm:$0xff]
  %v1757 = vld [vmem:[%s1746 + $0x50] sm:$0xff]
  %v1758 = vld [vmem:[%s1746 + $0x58] sm:$0xff]
  %v1759 = vld [vmem:[%s1746 + $0x60] sm:$0xff]
  %v1760 = vld [vmem:[%s1746 + $0x68] sm:$0xff]
  %v1761 = vld [vmem:[%s1746 + $0x70] sm:$0xff]
  %v1762 = vld [vmem:[%s1746 + $0x78] sm:$0xff]
  %v1763 = vld [vmem:[%s1746 + $0x80] sm:$0xff]
  %v1764 = vld [vmem:[%s1746 + $0x88] sm:$0xff]
  %v1766 = vunpack.c.l.b16 %v1745
  %v1767 = vunpack.c.h.b16 %v1745
  %v1768 = vpack.c.b16 %v1766, %v1766
  %v1769 = vpack.c.b16 %v1767, %v1767
  %v1789 = vunpack.c.l.b16 %v1747
  %v1790 = vunpack.c.h.b16 %v1747
  %v1791 = vunpack.c.l.b16 %v1748
  %v1792 = vunpack.c.h.b16 %v1748
  %v1793 = vunpack.c.l.b16 %v1749
  %v1794 = vunpack.c.h.b16 %v1749
  %v1795 = vunpack.c.l.b16 %v1750
  %v1796 = vunpack.c.h.b16 %v1750
  %v1797 = vunpack.c.l.b16 %v1751
  %v1798 = vunpack.c.h.b16 %v1751
  %v1799 = vunpack.c.l.b16 %v1752
  %v1800 = vunpack.c.h.b16 %v1752
  %v1801 = vunpack.c.l.b16 %v1753
  %v1802 = vunpack.c.h.b16 %v1753
  %v1803 = vunpack.c.l.b16 %v1754
  %v1804 = vunpack.c.h.b16 %v1754
  %v1805 = vunpack.c.l.b16 %v1755
  %v1806 = vunpack.c.h.b16 %v1755
  %v1807 = vunpack.c.l.b16 %v1756
  %v1808 = vunpack.c.h.b16 %v1756
  %v1809 = vunpack.c.l.b16 %v1757
  %v1810 = vunpack.c.h.b16 %v1757
  %v1811 = vunpack.c.l.b16 %v1758
  %v1812 = vunpack.c.h.b16 %v1758
  %v1813 = vunpack.c.l.b16 %v1759
  %v1814 = vunpack.c.h.b16 %v1759
  %v1815 = vunpack.c.l.b16 %v1760
  %v1816 = vunpack.c.h.b16 %v1760
  %v1817 = vunpack.c.l.b16 %v1761
  %v1818 = vunpack.c.h.b16 %v1761
  %v1819 = vunpack.c.l.b16 %v1762
  %v1820 = vunpack.c.h.b16 %v1762
  %v1821 = vunpack.c.l.b16 %v1763
  %v1822 = vunpack.c.h.b16 %v1763
  %v1823 = vunpack.c.l.b16 %v1764
  %v1824 = vunpack.c.h.b16 %v1764
  %v1825 = vpack.c.b16 %v1791, %v1789
  %v1826 = vpack.c.b16 %v1792, %v1790
  %v1827 = vpack.c.b16 %v1795, %v1793
  %v1828 = vpack.c.b16 %v1796, %v1794
  %v1829 = vpack.c.b16 %v1799, %v1797
  %v1830 = vpack.c.b16 %v1800, %v1798
  %v1831 = vpack.c.b16 %v1803, %v1801
  %v1832 = vpack.c.b16 %v1804, %v1802
  %v1833 = vpack.c.b16 %v1807, %v1805
  %v1834 = vpack.c.b16 %v1808, %v1806
  %v1835 = vpack.c.b16 %v1811, %v1809
  %v1836 = vpack.c.b16 %v1812, %v1810
  %v1837 = vpack.c.b16 %v1815, %v1813
  %v1838 = vpack.c.b16 %v1816, %v1814
  %v1839 = vpack.c.b16 %v1819, %v1817
  %v1840 = vpack.c.b16 %v1820, %v1818
  %v1841 = vpack.c.b16 %v1823, %v1821
  %v1842 = vpack.c.b16 %v1824, %v1822
  %v1862 = vsel %vm1361, %v1769, 0
  %1864 = vmatprep.subr.bf16.mxu0 %v1840
  %1865 = vmatpush1.bf16.msra.mxu0 %v1839
  %1866 = vmatprep.subr.bf16.mxu0 %v1838
  %1867 = vmatpush1.bf16.msra.mxu0 %v1837
  %1868 = vmatprep.subr.bf16.mxu0 %v1836
  %1869 = vmatpush1.bf16.msra.mxu0 %v1835
  %1870 = vmatprep.subr.bf16.mxu0 %v1834
  %1871 = vmatpush1.bf16.msra.mxu0 %v1833
  %1872 = vmatprep.subr.bf16.mxu0 %v1832
  %1873 = vmatpush1.bf16.msra.mxu0 %v1831
  %1874 = vmatprep.subr.bf16.mxu0 %v1830
  %1875 = vmatpush1.bf16.msra.mxu0 %v1829
  %1876 = vmatprep.subr.bf16.mxu0 %v1828
  %1877 = vmatpush1.bf16.msra.mxu0 %v1827
  %1878 = vmatprep.subr.bf16.mxu0 %v1826
  %1879 = vmatpush1.bf16.msra.mxu0 %v1825
  %1880 = vmatprep.subr.bf16.mxu0 0
  %1881 = vmatpush2.bf16.msra.mxu0 0
  %1882 = vmatprep.subr.bf16.mxu0 0
  %1883 = vmatpush2.bf16.msra.mxu0 0
  %1884 = vmatprep.subr.bf16.mxu0 0
  %1885 = vmatpush2.bf16.msra.mxu0 0
  %1886 = vmatprep.subr.bf16.mxu0 0
  %1887 = vmatpush2.bf16.msra.mxu0 0
  %1888 = vmatprep.subr.bf16.mxu0 0
  %1889 = vmatpush2.bf16.msra.mxu0 0
  %1890 = vmatprep.subr.bf16.mxu0 0
  %1891 = vmatpush2.bf16.msra.mxu0 0
  %1892 = vmatprep.subr.bf16.mxu0 0
  %1893 = vmatpush2.bf16.msra.mxu0 0
  %1894 = vmatprep.subr.bf16.mxu0 %v1842
  %1895 = vmatpush2.bf16.msra.mxu0 %v1841
  %1896 = vmatprep.mubr.bf16.mxu0 %v1862
  %1897 = vmatmul.mubr.bf16.gmra.mxu0 %v1768
  %v1898 = vpop.f32.mrf.mxu0
  %v1899 = vadd.f32 0.0, %v1898
  %v1900 = vpop.f32.mrf.mxu0
  %v1901 = vadd.f32 0.0, %v1900
  %v1902 = vpop.f32.mrf.mxu0
  %v1903 = vpop.f32.mrf.mxu0
  %1904 = vdwg.mxu0
  %v1905 = vadd.f32 %v1742, %v1899
  %v1906 = vadd.f32 %v1743, %v1901
  %1907 = vst [vmem:[#allocation3] sm:$0xff] %v1905
  %1908 = vst [vmem:[#allocation3 + $0x8] sm:$0xff] %v1906
  %v1909 = vld [vmem:[#allocation3] sm:$0xff]
  %v1910 = vld [vmem:[#allocation3 + $0x8] sm:$0xff]
  %s1911 = scalar_lea.vmem [#allocation2], 32
  %v1912 = vld [vmem:[%s1911] sm:$0xff]
  %s1913 = scalar_lea.vmem %s3, 576
  %v1914 = vld [vmem:[%s1913] sm:$0xff]
  %v1915 = vld [vmem:[%s1913 + $0x8] sm:$0xff]
  %v1916 = vld [vmem:[%s1913 + $0x10] sm:$0xff]
  %v1917 = vld [vmem:[%s1913 + $0x18] sm:$0xff]
  %v1918 = vld [vmem:[%s1913 + $0x20] sm:$0xff]
  %v1919 = vld [vmem:[%s1913 + $0x28] sm:$0xff]
  %v1920 = vld [vmem:[%s1913 + $0x30] sm:$0xff]
  %v1921 = vld [vmem:[%s1913 + $0x38] sm:$0xff]
  %v1922 = vld [vmem:[%s1913 + $0x40] sm:$0xff]
  %v1923 = vld [vmem:[%s1913 + $0x48] sm:$0xff]
  %v1924 = vld [vmem:[%s1913 + $0x50] sm:$0xff]
  %v1925 = vld [vmem:[%s1913 + $0x58] sm:$0xff]
  %v1926 = vld [vmem:[%s1913 + $0x60] sm:$0xff]
  %v1927 = vld [vmem:[%s1913 + $0x68] sm:$0xff]
  %v1928 = vld [vmem:[%s1913 + $0x70] sm:$0xff]
  %v1929 = vld [vmem:[%s1913 + $0x78] sm:$0xff]
  %v1930 = vld [vmem:[%s1913 + $0x80] sm:$0xff]
  %v1931 = vld [vmem:[%s1913 + $0x88] sm:$0xff]
  %v1933 = vunpack.c.l.b16 %v1912
  %v1934 = vunpack.c.h.b16 %v1912
  %v1935 = vpack.c.b16 %v1933, %v1933
  %v1936 = vpack.c.b16 %v1934, %v1934
  %v1956 = vunpack.c.l.b16 %v1914
  %v1957 = vunpack.c.h.b16 %v1914
  %v1958 = vunpack.c.l.b16 %v1915
  %v1959 = vunpack.c.h.b16 %v1915
  %v1960 = vunpack.c.l.b16 %v1916
  %v1961 = vunpack.c.h.b16 %v1916
  %v1962 = vunpack.c.l.b16 %v1917
  %v1963 = vunpack.c.h.b16 %v1917
  %v1964 = vunpack.c.l.b16 %v1918
  %v1965 = vunpack.c.h.b16 %v1918
  %v1966 = vunpack.c.l.b16 %v1919
  %v1967 = vunpack.c.h.b16 %v1919
  %v1968 = vunpack.c.l.b16 %v1920
  %v1969 = vunpack.c.h.b16 %v1920
  %v1970 = vunpack.c.l.b16 %v1921
  %v1971 = vunpack.c.h.b16 %v1921
  %v1972 = vunpack.c.l.b16 %v1922
  %v1973 = vunpack.c.h.b16 %v1922
  %v1974 = vunpack.c.l.b16 %v1923
  %v1975 = vunpack.c.h.b16 %v1923
  %v1976 = vunpack.c.l.b16 %v1924
  %v1977 = vunpack.c.h.b16 %v1924
  %v1978 = vunpack.c.l.b16 %v1925
  %v1979 = vunpack.c.h.b16 %v1925
  %v1980 = vunpack.c.l.b16 %v1926
  %v1981 = vunpack.c.h.b16 %v1926
  %v1982 = vunpack.c.l.b16 %v1927
  %v1983 = vunpack.c.h.b16 %v1927
  %v1984 = vunpack.c.l.b16 %v1928
  %v1985 = vunpack.c.h.b16 %v1928
  %v1986 = vunpack.c.l.b16 %v1929
  %v1987 = vunpack.c.h.b16 %v1929
  %v1988 = vunpack.c.l.b16 %v1930
  %v1989 = vunpack.c.h.b16 %v1930
  %v1990 = vunpack.c.l.b16 %v1931
  %v1991 = vunpack.c.h.b16 %v1931
  %v1992 = vpack.c.b16 %v1958, %v1956
  %v1993 = vpack.c.b16 %v1959, %v1957
  %v1994 = vpack.c.b16 %v1962, %v1960
  %v1995 = vpack.c.b16 %v1963, %v1961
  %v1996 = vpack.c.b16 %v1966, %v1964
  %v1997 = vpack.c.b16 %v1967, %v1965
  %v1998 = vpack.c.b16 %v1970, %v1968
  %v1999 = vpack.c.b16 %v1971, %v1969
  %v2000 = vpack.c.b16 %v1974, %v1972
  %v2001 = vpack.c.b16 %v1975, %v1973
  %v2002 = vpack.c.b16 %v1978, %v1976
  %v2003 = vpack.c.b16 %v1979, %v1977
  %v2004 = vpack.c.b16 %v1982, %v1980
  %v2005 = vpack.c.b16 %v1983, %v1981
  %v2006 = vpack.c.b16 %v1986, %v1984
  %v2007 = vpack.c.b16 %v1987, %v1985
  %v2008 = vpack.c.b16 %v1990, %v1988
  %v2009 = vpack.c.b16 %v1991, %v1989
  %v2029 = vsel %vm1361, %v1936, 0
  %2031 = vmatprep.subr.bf16.mxu0 %v2007
  %2032 = vmatpush1.bf16.msra.mxu0 %v2006
  %2033 = vmatprep.subr.bf16.mxu0 %v2005
  %2034 = vmatpush1.bf16.msra.mxu0 %v2004
  %2035 = vmatprep.subr.bf16.mxu0 %v2003
  %2036 = vmatpush1.bf16.msra.mxu0 %v2002
  %2037 = vmatprep.subr.bf16.mxu0 %v2001
  %2038 = vmatpush1.bf16.msra.mxu0 %v2000
  %2039 = vmatprep.subr.bf16.mxu0 %v1999
  %2040 = vmatpush1.bf16.msra.mxu0 %v1998
  %2041 = vmatprep.subr.bf16.mxu0 %v1997
  %2042 = vmatpush1.bf16.msra.mxu0 %v1996
  %2043 = vmatprep.subr.bf16.mxu0 %v1995
  %2044 = vmatpush1.bf16.msra.mxu0 %v1994
  %2045 = vmatprep.subr.bf16.mxu0 %v1993
  %2046 = vmatpush1.bf16.msra.mxu0 %v1992
  %2047 = vmatprep.subr.bf16.mxu0 0
  %2048 = vmatpush2.bf16.msra.mxu0 0
  %2049 = vmatprep.subr.bf16.mxu0 0
  %2050 = vmatpush2.bf16.msra.mxu0 0
  %2051 = vmatprep.subr.bf16.mxu0 0
  %2052 = vmatpush2.bf16.msra.mxu0 0
  %2053 = vmatprep.subr.bf16.mxu0 0
  %2054 = vmatpush2.bf16.msra.mxu0 0
  %2055 = vmatprep.subr.bf16.mxu0 0
  %2056 = vmatpush2.bf16.msra.mxu0 0
  %2057 = vmatprep.subr.bf16.mxu0 0
  %2058 = vmatpush2.bf16.msra.mxu0 0
  %2059 = vmatprep.subr.bf16.mxu0 0
  %2060 = vmatpush2.bf16.msra.mxu0 0
  %2061 = vmatprep.subr.bf16.mxu0 %v2009
  %2062 = vmatpush2.bf16.msra.mxu0 %v2008
  %2063 = vmatprep.mubr.bf16.mxu0 %v2029
  %2064 = vmatmul.mubr.bf16.gmra.mxu0 %v1935
  %v2065 = vpop.f32.mrf.mxu0
  %v2066 = vadd.f32 0.0, %v2065
  %v2067 = vpop.f32.mrf.mxu0
  %v2068 = vadd.f32 0.0, %v2067
  %v2069 = vpop.f32.mrf.mxu0
  %v2070 = vpop.f32.mrf.mxu0
  %2071 = vdwg.mxu0
  %v2072 = vadd.f32 %v1909, %v2066
  %v2073 = vadd.f32 %v1910, %v2068
  %2074 = vst [vmem:[#allocation3] sm:$0xff] %v2072
  %2075 = vst [vmem:[#allocation3 + $0x8] sm:$0xff] %v2073
  %v2076 = vld [vmem:[#allocation3] sm:$0xff]
  %v2077 = vld [vmem:[#allocation3 + $0x8] sm:$0xff]
  %s2078 = scalar_lea.vmem [#allocation2], 40
  %v2079 = vld [vmem:[%s2078] sm:$0xff]
  %s2080 = scalar_lea.vmem %s3, 720
  %v2081 = vld [vmem:[%s2080] sm:$0xff]
  %v2082 = vld [vmem:[%s2080 + $0x8] sm:$0xff]
  %v2083 = vld [vmem:[%s2080 + $0x10] sm:$0xff]
  %v2084 = vld [vmem:[%s2080 + $0x18] sm:$0xff]
  %v2085 = vld [vmem:[%s2080 + $0x20] sm:$0xff]
  %v2086 = vld [vmem:[%s2080 + $0x28] sm:$0xff]
  %v2087 = vld [vmem:[%s2080 + $0x30] sm:$0xff]
  %v2088 = vld [vmem:[%s2080 + $0x38] sm:$0xff]
  %v2089 = vld [vmem:[%s2080 + $0x40] sm:$0xff]
  %v2090 = vld [vmem:[%s2080 + $0x48] sm:$0xff]
  %v2091 = vld [vmem:[%s2080 + $0x50] sm:$0xff]
  %v2092 = vld [vmem:[%s2080 + $0x58] sm:$0xff]
  %v2093 = vld [vmem:[%s2080 + $0x60] sm:$0xff]
  %v2094 = vld [vmem:[%s2080 + $0x68] sm:$0xff]
  %v2095 = vld [vmem:[%s2080 + $0x70] sm:$0xff]
  %v2096 = vld [vmem:[%s2080 + $0x78] sm:$0xff]
  %v2097 = vld [vmem:[%s2080 + $0x80] sm:$0xff]
  %v2098 = vld [vmem:[%s2080 + $0x88] sm:$0xff]
  %v2100 = vunpack.c.l.b16 %v2079
  %v2101 = vunpack.c.h.b16 %v2079
  %v2102 = vpack.c.b16 %v2100, %v2100
  %v2103 = vpack.c.b16 %v2101, %v2101
  %v2123 = vunpack.c.l.b16 %v2081
  %v2124 = vunpack.c.h.b16 %v2081
  %v2125 = vunpack.c.l.b16 %v2082
  %v2126 = vunpack.c.h.b16 %v2082
  %v2127 = vunpack.c.l.b16 %v2083
  %v2128 = vunpack.c.h.b16 %v2083
  %v2129 = vunpack.c.l.b16 %v2084
  %v2130 = vunpack.c.h.b16 %v2084
  %v2131 = vunpack.c.l.b16 %v2085
  %v2132 = vunpack.c.h.b16 %v2085
  %v2133 = vunpack.c.l.b16 %v2086
  %v2134 = vunpack.c.h.b16 %v2086
  %v2135 = vunpack.c.l.b16 %v2087
  %v2136 = vunpack.c.h.b16 %v2087
  %v2137 = vunpack.c.l.b16 %v2088
  %v2138 = vunpack.c.h.b16 %v2088
  %v2139 = vunpack.c.l.b16 %v2089
  %v2140 = vunpack.c.h.b16 %v2089
  %v2141 = vunpack.c.l.b16 %v2090
  %v2142 = vunpack.c.h.b16 %v2090
  %v2143 = vunpack.c.l.b16 %v2091
  %v2144 = vunpack.c.h.b16 %v2091
  %v2145 = vunpack.c.l.b16 %v2092
  %v2146 = vunpack.c.h.b16 %v2092
  %v2147 = vunpack.c.l.b16 %v2093
  %v2148 = vunpack.c.h.b16 %v2093
  %v2149 = vunpack.c.l.b16 %v2094
  %v2150 = vunpack.c.h.b16 %v2094
  %v2151 = vunpack.c.l.b16 %v2095
  %v2152 = vunpack.c.h.b16 %v2095
  %v2153 = vunpack.c.l.b16 %v2096
  %v2154 = vunpack.c.h.b16 %v2096
  %v2155 = vunpack.c.l.b16 %v2097
  %v2156 = vunpack.c.h.b16 %v2097
  %v2157 = vunpack.c.l.b16 %v2098
  %v2158 = vunpack.c.h.b16 %v2098
  %v2159 = vpack.c.b16 %v2125, %v2123
  %v2160 = vpack.c.b16 %v2126, %v2124
  %v2161 = vpack.c.b16 %v2129, %v2127
  %v2162 = vpack.c.b16 %v2130, %v2128
  %v2163 = vpack.c.b16 %v2133, %v2131
  %v2164 = vpack.c.b16 %v2134, %v2132
  %v2165 = vpack.c.b16 %v2137, %v2135
  %v2166 = vpack.c.b16 %v2138, %v2136
  %v2167 = vpack.c.b16 %v2141, %v2139
  %v2168 = vpack.c.b16 %v2142, %v2140
  %v2169 = vpack.c.b16 %v2145, %v2143
  %v2170 = vpack.c.b16 %v2146, %v2144
  %v2171 = vpack.c.b16 %v2149, %v2147
  %v2172 = vpack.c.b16 %v2150, %v2148
  %v2173 = vpack.c.b16 %v2153, %v2151
  %v2174 = vpack.c.b16 %v2154, %v2152
  %v2175 = vpack.c.b16 %v2157, %v2155
  %v2176 = vpack.c.b16 %v2158, %v2156
  %v2196 = vsel %vm1361, %v2103, 0
  %2198 = vmatprep.subr.bf16.mxu0 %v2174
  %2199 = vmatpush1.bf16.msra.mxu0 %v2173
  %2200 = vmatprep.subr.bf16.mxu0 %v2172
  %2201 = vmatpush1.bf16.msra.mxu0 %v2171
  %2202 = vmatprep.subr.bf16.mxu0 %v2170
  %2203 = vmatpush1.bf16.msra.mxu0 %v2169
  %2204 = vmatprep.subr.bf16.mxu0 %v2168
  %2205 = vmatpush1.bf16.msra.mxu0 %v2167
  %2206 = vmatprep.subr.bf16.mxu0 %v2166
  %2207 = vmatpush1.bf16.msra.mxu0 %v2165
  %2208 = vmatprep.subr.bf16.mxu0 %v2164
  %2209 = vmatpush1.bf16.msra.mxu0 %v2163
  %2210 = vmatprep.subr.bf16.mxu0 %v2162
  %2211 = vmatpush1.bf16.msra.mxu0 %v2161
  %2212 = vmatprep.subr.bf16.mxu0 %v2160
  %2213 = vmatpush1.bf16.msra.mxu0 %v2159
  %2214 = vmatprep.subr.bf16.mxu0 0
  %2215 = vmatpush2.bf16.msra.mxu0 0
  %2216 = vmatprep.subr.bf16.mxu0 0
  %2217 = vmatpush2.bf16.msra.mxu0 0
  %2218 = vmatprep.subr.bf16.mxu0 0
  %2219 = vmatpush2.bf16.msra.mxu0 0
  %2220 = vmatprep.subr.bf16.mxu0 0
  %2221 = vmatpush2.bf16.msra.mxu0 0
  %2222 = vmatprep.subr.bf16.mxu0 0
  %2223 = vmatpush2.bf16.msra.mxu0 0
  %2224 = vmatprep.subr.bf16.mxu0 0
  %2225 = vmatpush2.bf16.msra.mxu0 0
  %2226 = vmatprep.subr.bf16.mxu0 0
  %2227 = vmatpush2.bf16.msra.mxu0 0
  %2228 = vmatprep.subr.bf16.mxu0 %v2176
  %2229 = vmatpush2.bf16.msra.mxu0 %v2175
  %2230 = vmatprep.mubr.bf16.mxu0 %v2196
  %2231 = vmatmul.mubr.bf16.gmra.mxu0 %v2102
  %v2232 = vpop.f32.mrf.mxu0
  %v2233 = vadd.f32 0.0, %v2232
  %v2234 = vpop.f32.mrf.mxu0
  %v2235 = vadd.f32 0.0, %v2234
  %v2236 = vpop.f32.mrf.mxu0
  %v2237 = vpop.f32.mrf.mxu0
  %2238 = vdwg.mxu0
  %v2239 = vadd.f32 %v2076, %v2233
  %v2240 = vadd.f32 %v2077, %v2235
  %2241 = vst [vmem:[#allocation3] sm:$0xff] %v2239
  %2242 = vst [vmem:[#allocation3 + $0x8] sm:$0xff] %v2240
  %v2243 = vld [vmem:[#allocation3] sm:$0xff]
  %v2244 = vld [vmem:[#allocation3 + $0x8] sm:$0xff]
  %s2245 = scalar_lea.vmem [#allocation2], 48
  %v2246 = vld [vmem:[%s2245] sm:$0xff]
  %s2247 = scalar_lea.vmem %s3, 864
  %v2248 = vld [vmem:[%s2247] sm:$0xff]
  %v2249 = vld [vmem:[%s2247 + $0x8] sm:$0xff]
  %v2250 = vld [vmem:[%s2247 + $0x10] sm:$0xff]
  %v2251 = vld [vmem:[%s2247 + $0x18] sm:$0xff]
  %v2252 = vld [vmem:[%s2247 + $0x20] sm:$0xff]
  %v2253 = vld [vmem:[%s2247 + $0x28] sm:$0xff]
  %v2254 = vld [vmem:[%s2247 + $0x30] sm:$0xff]
  %v2255 = vld [vmem:[%s2247 + $0x38] sm:$0xff]
  %v2256 = vld [vmem:[%s2247 + $0x40] sm:$0xff]
  %v2257 = vld [vmem:[%s2247 + $0x48] sm:$0xff]
  %v2258 = vld [vmem:[%s2247 + $0x50] sm:$0xff]
  %v2259 = vld [vmem:[%s2247 + $0x58] sm:$0xff]
  %v2260 = vld [vmem:[%s2247 + $0x60] sm:$0xff]
  %v2261 = vld [vmem:[%s2247 + $0x68] sm:$0xff]
  %v2262 = vld [vmem:[%s2247 + $0x70] sm:$0xff]
  %v2263 = vld [vmem:[%s2247 + $0x78] sm:$0xff]
  %v2264 = vld [vmem:[%s2247 + $0x80] sm:$0xff]
  %v2265 = vld [vmem:[%s2247 + $0x88] sm:$0xff]
  %v2267 = vunpack.c.l.b16 %v2246
  %v2268 = vunpack.c.h.b16 %v2246
  %v2269 = vpack.c.b16 %v2267, %v2267
  %v2270 = vpack.c.b16 %v2268, %v2268
  %v2290 = vunpack.c.l.b16 %v2248
  %v2291 = vunpack.c.h.b16 %v2248
  %v2292 = vunpack.c.l.b16 %v2249
  %v2293 = vunpack.c.h.b16 %v2249
  %v2294 = vunpack.c.l.b16 %v2250
  %v2295 = vunpack.c.h.b16 %v2250
  %v2296 = vunpack.c.l.b16 %v2251
  %v2297 = vunpack.c.h.b16 %v2251
  %v2298 = vunpack.c.l.b16 %v2252
  %v2299 = vunpack.c.h.b16 %v2252
  %v2300 = vunpack.c.l.b16 %v2253
  %v2301 = vunpack.c.h.b16 %v2253
  %v2302 = vunpack.c.l.b16 %v2254
  %v2303 = vunpack.c.h.b16 %v2254
  %v2304 = vunpack.c.l.b16 %v2255
  %v2305 = vunpack.c.h.b16 %v2255
  %v2306 = vunpack.c.l.b16 %v2256
  %v2307 = vunpack.c.h.b16 %v2256
  %v2308 = vunpack.c.l.b16 %v2257
  %v2309 = vunpack.c.h.b16 %v2257
  %v2310 = vunpack.c.l.b16 %v2258
  %v2311 = vunpack.c.h.b16 %v2258
  %v2312 = vunpack.c.l.b16 %v2259
  %v2313 = vunpack.c.h.b16 %v2259
  %v2314 = vunpack.c.l.b16 %v2260
  %v2315 = vunpack.c.h.b16 %v2260
  %v2316 = vunpack.c.l.b16 %v2261
  %v2317 = vunpack.c.h.b16 %v2261
  %v2318 = vunpack.c.l.b16 %v2262
  %v2319 = vunpack.c.h.b16 %v2262
  %v2320 = vunpack.c.l.b16 %v2263
  %v2321 = vunpack.c.h.b16 %v2263
  %v2322 = vunpack.c.l.b16 %v2264
  %v2323 = vunpack.c.h.b16 %v2264
  %v2324 = vunpack.c.l.b16 %v2265
  %v2325 = vunpack.c.h.b16 %v2265
  %v2326 = vpack.c.b16 %v2292, %v2290
  %v2327 = vpack.c.b16 %v2293, %v2291
  %v2328 = vpack.c.b16 %v2296, %v2294
  %v2329 = vpack.c.b16 %v2297, %v2295
  %v2330 = vpack.c.b16 %v2300, %v2298
  %v2331 = vpack.c.b16 %v2301, %v2299
  %v2332 = vpack.c.b16 %v2304, %v2302
  %v2333 = vpack.c.b16 %v2305, %v2303
  %v2334 = vpack.c.b16 %v2308, %v2306
  %v2335 = vpack.c.b16 %v2309, %v2307
  %v2336 = vpack.c.b16 %v2312, %v2310
  %v2337 = vpack.c.b16 %v2313, %v2311
  %v2338 = vpack.c.b16 %v2316, %v2314
  %v2339 = vpack.c.b16 %v2317, %v2315
  %v2340 = vpack.c.b16 %v2320, %v2318
  %v2341 = vpack.c.b16 %v2321, %v2319
  %v2342 = vpack.c.b16 %v2324, %v2322
  %v2343 = vpack.c.b16 %v2325, %v2323
  %v2363 = vsel %vm1361, %v2270, 0
  %2365 = vmatprep.subr.bf16.mxu0 %v2341
  %2366 = vmatpush1.bf16.msra.mxu0 %v2340
  %2367 = vmatprep.subr.bf16.mxu0 %v2339
  %2368 = vmatpush1.bf16.msra.mxu0 %v2338
  %2369 = vmatprep.subr.bf16.mxu0 %v2337
  %2370 = vmatpush1.bf16.msra.mxu0 %v2336
  %2371 = vmatprep.subr.bf16.mxu0 %v2335
  %2372 = vmatpush1.bf16.msra.mxu0 %v2334
  %2373 = vmatprep.subr.bf16.mxu0 %v2333
  %2374 = vmatpush1.bf16.msra.mxu0 %v2332
  %2375 = vmatprep.subr.bf16.mxu0 %v2331
  %2376 = vmatpush1.bf16.msra.mxu0 %v2330
  %2377 = vmatprep.subr.bf16.mxu0 %v2329
  %2378 = vmatpush1.bf16.msra.mxu0 %v2328
  %2379 = vmatprep.subr.bf16.mxu0 %v2327
  %2380 = vmatpush1.bf16.msra.mxu0 %v2326
  %2381 = vmatprep.subr.bf16.mxu0 0
  %2382 = vmatpush2.bf16.msra.mxu0 0
  %2383 = vmatprep.subr.bf16.mxu0 0
  %2384 = vmatpush2.bf16.msra.mxu0 0
  %2385 = vmatprep.subr.bf16.mxu0 0
  %2386 = vmatpush2.bf16.msra.mxu0 0
  %2387 = vmatprep.subr.bf16.mxu0 0
  %2388 = vmatpush2.bf16.msra.mxu0 0
  %2389 = vmatprep.subr.bf16.mxu0 0
  %2390 = vmatpush2.bf16.msra.mxu0 0
  %2391 = vmatprep.subr.bf16.mxu0 0
  %2392 = vmatpush2.bf16.msra.mxu0 0
  %2393 = vmatprep.subr.bf16.mxu0 0
  %2394 = vmatpush2.bf16.msra.mxu0 0
  %2395 = vmatprep.subr.bf16.mxu0 %v2343
  %2396 = vmatpush2.bf16.msra.mxu0 %v2342
  %2397 = vmatprep.mubr.bf16.mxu0 %v2363
  %2398 = vmatmul.mubr.bf16.gmra.mxu0 %v2269
  %v2399 = vpop.f32.mrf.mxu0
  %v2400 = vadd.f32 0.0, %v2399
  %v2401 = vpop.f32.mrf.mxu0
  %v2402 = vadd.f32 0.0, %v2401
  %v2403 = vpop.f32.mrf.mxu0
  %v2404 = vpop.f32.mrf.mxu0
  %2405 = vdwg.mxu0
  %v2406 = vadd.f32 %v2243, %v2400
  %v2407 = vadd.f32 %v2244, %v2402
  %2408 = vst [vmem:[#allocation3] sm:$0xff] %v2406
  %2409 = vst [vmem:[#allocation3 + $0x8] sm:$0xff] %v2407
  %v2410 = vld [vmem:[#allocation3] sm:$0xff]
  %v2411 = vld [vmem:[#allocation3 + $0x8] sm:$0xff]
  %s2412 = scalar_lea.vmem [#allocation2], 56
  %v2413 = vld [vmem:[%s2412] sm:$0xff]
  %s2414 = scalar_lea.vmem %s3, 1008
  %v2415 = vld [vmem:[%s2414] sm:$0xff]
  %v2416 = vld [vmem:[%s2414 + $0x8] sm:$0xff]
  %v2417 = vld [vmem:[%s2414 + $0x10] sm:$0xff]
  %v2418 = vld [vmem:[%s2414 + $0x18] sm:$0xff]
  %v2419 = vld [vmem:[%s2414 + $0x20] sm:$0xff]
  %v2420 = vld [vmem:[%s2414 + $0x28] sm:$0xff]
  %v2421 = vld [vmem:[%s2414 + $0x30] sm:$0xff]
  %v2422 = vld [vmem:[%s2414 + $0x38] sm:$0xff]
  %v2423 = vld [vmem:[%s2414 + $0x40] sm:$0xff]
  %v2424 = vld [vmem:[%s2414 + $0x48] sm:$0xff]
  %v2425 = vld [vmem:[%s2414 + $0x50] sm:$0xff]
  %v2426 = vld [vmem:[%s2414 + $0x58] sm:$0xff]
  %v2427 = vld [vmem:[%s2414 + $0x60] sm:$0xff]
  %v2428 = vld [vmem:[%s2414 + $0x68] sm:$0xff]
  %v2429 = vld [vmem:[%s2414 + $0x70] sm:$0xff]
  %v2430 = vld [vmem:[%s2414 + $0x78] sm:$0xff]
  %v2431 = vld [vmem:[%s2414 + $0x80] sm:$0xff]
  %v2432 = vld [vmem:[%s2414 + $0x88] sm:$0xff]
  %v2434 = vunpack.c.l.b16 %v2413
  %v2435 = vunpack.c.h.b16 %v2413
  %v2436 = vpack.c.b16 %v2434, %v2434
  %v2437 = vpack.c.b16 %v2435, %v2435
  %v2457 = vunpack.c.l.b16 %v2415
  %v2458 = vunpack.c.h.b16 %v2415
  %v2459 = vunpack.c.l.b16 %v2416
  %v2460 = vunpack.c.h.b16 %v2416
  %v2461 = vunpack.c.l.b16 %v2417
  %v2462 = vunpack.c.h.b16 %v2417
  %v2463 = vunpack.c.l.b16 %v2418
  %v2464 = vunpack.c.h.b16 %v2418
  %v2465 = vunpack.c.l.b16 %v2419
  %v2466 = vunpack.c.h.b16 %v2419
  %v2467 = vunpack.c.l.b16 %v2420
  %v2468 = vunpack.c.h.b16 %v2420
  %v2469 = vunpack.c.l.b16 %v2421
  %v2470 = vunpack.c.h.b16 %v2421
  %v2471 = vunpack.c.l.b16 %v2422
  %v2472 = vunpack.c.h.b16 %v2422
  %v2473 = vunpack.c.l.b16 %v2423
  %v2474 = vunpack.c.h.b16 %v2423
  %v2475 = vunpack.c.l.b16 %v2424
  %v2476 = vunpack.c.h.b16 %v2424
  %v2477 = vunpack.c.l.b16 %v2425
  %v2478 = vunpack.c.h.b16 %v2425
  %v2479 = vunpack.c.l.b16 %v2426
  %v2480 = vunpack.c.h.b16 %v2426
  %v2481 = vunpack.c.l.b16 %v2427
  %v2482 = vunpack.c.h.b16 %v2427
  %v2483 = vunpack.c.l.b16 %v2428
  %v2484 = vunpack.c.h.b16 %v2428
  %v2485 = vunpack.c.l.b16 %v2429
  %v2486 = vunpack.c.h.b16 %v2429
  %v2487 = vunpack.c.l.b16 %v2430
  %v2488 = vunpack.c.h.b16 %v2430
  %v2489 = vunpack.c.l.b16 %v2431
  %v2490 = vunpack.c.h.b16 %v2431
  %v2491 = vunpack.c.l.b16 %v2432
  %v2492 = vunpack.c.h.b16 %v2432
  %v2493 = vpack.c.b16 %v2459, %v2457
  %v2494 = vpack.c.b16 %v2460, %v2458
  %v2495 = vpack.c.b16 %v2463, %v2461
  %v2496 = vpack.c.b16 %v2464, %v2462
  %v2497 = vpack.c.b16 %v2467, %v2465
  %v2498 = vpack.c.b16 %v2468, %v2466
  %v2499 = vpack.c.b16 %v2471, %v2469
  %v2500 = vpack.c.b16 %v2472, %v2470
  %v2501 = vpack.c.b16 %v2475, %v2473
  %v2502 = vpack.c.b16 %v2476, %v2474
  %v2503 = vpack.c.b16 %v2479, %v2477
  %v2504 = vpack.c.b16 %v2480, %v2478
  %v2505 = vpack.c.b16 %v2483, %v2481
  %v2506 = vpack.c.b16 %v2484, %v2482
  %v2507 = vpack.c.b16 %v2487, %v2485
  %v2508 = vpack.c.b16 %v2488, %v2486
  %v2509 = vpack.c.b16 %v2491, %v2489
  %v2510 = vpack.c.b16 %v2492, %v2490
  %v2530 = vsel %vm1361, %v2437, 0
  %2532 = vmatprep.subr.bf16.mxu0 %v2508
  %2533 = vmatpush1.bf16.msra.mxu0 %v2507
  %2534 = vmatprep.subr.bf16.mxu0 %v2506
  %2535 = vmatpush1.bf16.msra.mxu0 %v2505
  %2536 = vmatprep.subr.bf16.mxu0 %v2504
  %2537 = vmatpush1.bf16.msra.mxu0 %v2503
  %2538 = vmatprep.subr.bf16.mxu0 %v2502
  %2539 = vmatpush1.bf16.msra.mxu0 %v2501
  %2540 = vmatprep.subr.bf16.mxu0 %v2500
  %2541 = vmatpush1.bf16.msra.mxu0 %v2499
  %2542 = vmatprep.subr.bf16.mxu0 %v2498
  %2543 = vmatpush1.bf16.msra.mxu0 %v2497
  %2544 = vmatprep.subr.bf16.mxu0 %v2496
  %2545 = vmatpush1.bf16.msra.mxu0 %v2495
  %2546 = vmatprep.subr.bf16.mxu0 %v2494
  %2547 = vmatpush1.bf16.msra.mxu0 %v2493
  %2548 = vmatprep.subr.bf16.mxu0 0
  %2549 = vmatpush2.bf16.msra.mxu0 0
  %2550 = vmatprep.subr.bf16.mxu0 0
  %2551 = vmatpush2.bf16.msra.mxu0 0
  %2552 = vmatprep.subr.bf16.mxu0 0
  %2553 = vmatpush2.bf16.msra.mxu0 0
  %2554 = vmatprep.subr.bf16.mxu0 0
  %2555 = vmatpush2.bf16.msra.mxu0 0
  %2556 = vmatprep.subr.bf16.mxu0 0
  %2557 = vmatpush2.bf16.msra.mxu0 0
  %2558 = vmatprep.subr.bf16.mxu0 0
  %2559 = vmatpush2.bf16.msra.mxu0 0
  %2560 = vmatprep.subr.bf16.mxu0 0
  %2561 = vmatpush2.bf16.msra.mxu0 0
  %2562 = vmatprep.subr.bf16.mxu0 %v2510
  %2563 = vmatpush2.bf16.msra.mxu0 %v2509
  %2564 = vmatprep.mubr.bf16.mxu0 %v2530
  %2565 = vmatmul.mubr.bf16.gmra.mxu0 %v2436
  %v2566 = vpop.f32.mrf.mxu0
  %v2567 = vadd.f32 0.0, %v2566
  %v2568 = vpop.f32.mrf.mxu0
  %v2569 = vadd.f32 0.0, %v2568
  %v2570 = vpop.f32.mrf.mxu0
  %v2571 = vpop.f32.mrf.mxu0
  %2572 = vdwg.mxu0
  %v2573 = vadd.f32 %v2410, %v2567
  %v2574 = vadd.f32 %v2411, %v2569
  %2575 = vst [vmem:[#allocation3] sm:$0xff] %v2573
  %2576 = vst [vmem:[#allocation3 + $0x8] sm:$0xff] %v2574
  %v2577 = vld [vmem:[#allocation3] sm:$0xff]
  %v2578 = vld [vmem:[#allocation3 + $0x8] sm:$0xff]
  %s2579 = scalar_lea.vmem [#allocation2], 64
  %v2580 = vld [vmem:[%s2579] sm:$0xff]
  %s2581 = scalar_lea.vmem %s3, 1152
  %v2582 = vld [vmem:[%s2581] sm:$0xff]
  %v2583 = vld [vmem:[%s2581 + $0x8] sm:$0xff]
  %v2584 = vld [vmem:[%s2581 + $0x10] sm:$0xff]
  %v2585 = vld [vmem:[%s2581 + $0x18] sm:$0xff]
  %v2586 = vld [vmem:[%s2581 + $0x20] sm:$0xff]
  %v2587 = vld [vmem:[%s2581 + $0x28] sm:$0xff]
  %v2588 = vld [vmem:[%s2581 + $0x30] sm:$0xff]
  %v2589 = vld [vmem:[%s2581 + $0x38] sm:$0xff]
  %v2590 = vld [vmem:[%s2581 + $0x40] sm:$0xff]
  %v2591 = vld [vmem:[%s2581 + $0x48] sm:$0xff]
  %v2592 = vld [vmem:[%s2581 + $0x50] sm:$0xff]
  %v2593 = vld [vmem:[%s2581 + $0x58] sm:$0xff]
  %v2594 = vld [vmem:[%s2581 + $0x60] sm:$0xff]
  %v2595 = vld [vmem:[%s2581 + $0x68] sm:$0xff]
  %v2596 = vld [vmem:[%s2581 + $0x70] sm:$0xff]
  %v2597 = vld [vmem:[%s2581 + $0x78] sm:$0xff]
  %v2598 = vld [vmem:[%s2581 + $0x80] sm:$0xff]
  %v2599 = vld [vmem:[%s2581 + $0x88] sm:$0xff]
  %v2601 = vunpack.c.l.b16 %v2580
  %v2602 = vunpack.c.h.b16 %v2580
  %v2603 = vpack.c.b16 %v2601, %v2601
  %v2604 = vpack.c.b16 %v2602, %v2602
  %v2624 = vunpack.c.l.b16 %v2582
  %v2625 = vunpack.c.h.b16 %v2582
  %v2626 = vunpack.c.l.b16 %v2583
  %v2627 = vunpack.c.h.b16 %v2583
  %v2628 = vunpack.c.l.b16 %v2584
  %v2629 = vunpack.c.h.b16 %v2584
  %v2630 = vunpack.c.l.b16 %v2585
  %v2631 = vunpack.c.h.b16 %v2585
  %v2632 = vunpack.c.l.b16 %v2586
  %v2633 = vunpack.c.h.b16 %v2586
  %v2634 = vunpack.c.l.b16 %v2587
  %v2635 = vunpack.c.h.b16 %v2587
  %v2636 = vunpack.c.l.b16 %v2588
  %v2637 = vunpack.c.h.b16 %v2588
  %v2638 = vunpack.c.l.b16 %v2589
  %v2639 = vunpack.c.h.b16 %v2589
  %v2640 = vunpack.c.l.b16 %v2590
  %v2641 = vunpack.c.h.b16 %v2590
  %v2642 = vunpack.c.l.b16 %v2591
  %v2643 = vunpack.c.h.b16 %v2591
  %v2644 = vunpack.c.l.b16 %v2592
  %v2645 = vunpack.c.h.b16 %v2592
  %v2646 = vunpack.c.l.b16 %v2593
  %v2647 = vunpack.c.h.b16 %v2593
  %v2648 = vunpack.c.l.b16 %v2594
  %v2649 = vunpack.c.h.b16 %v2594
  %v2650 = vunpack.c.l.b16 %v2595
  %v2651 = vunpack.c.h.b16 %v2595
  %v2652 = vunpack.c.l.b16 %v2596
  %v2653 = vunpack.c.h.b16 %v2596
  %v2654 = vunpack.c.l.b16 %v2597
  %v2655 = vunpack.c.h.b16 %v2597
  %v2656 = vunpack.c.l.b16 %v2598
  %v2657 = vunpack.c.h.b16 %v2598
  %v2658 = vunpack.c.l.b16 %v2599
  %v2659 = vunpack.c.h.b16 %v2599
  %v2660 = vpack.c.b16 %v2626, %v2624
  %v2661 = vpack.c.b16 %v2627, %v2625
  %v2662 = vpack.c.b16 %v2630, %v2628
  %v2663 = vpack.c.b16 %v2631, %v2629
  %v2664 = vpack.c.b16 %v2634, %v2632
  %v2665 = vpack.c.b16 %v2635, %v2633
  %v2666 = vpack.c.b16 %v2638, %v2636
  %v2667 = vpack.c.b16 %v2639, %v2637
  %v2668 = vpack.c.b16 %v2642, %v2640
  %v2669 = vpack.c.b16 %v2643, %v2641
  %v2670 = vpack.c.b16 %v2646, %v2644
  %v2671 = vpack.c.b16 %v2647, %v2645
  %v2672 = vpack.c.b16 %v2650, %v2648
  %v2673 = vpack.c.b16 %v2651, %v2649
  %v2674 = vpack.c.b16 %v2654, %v2652
  %v2675 = vpack.c.b16 %v2655, %v2653
  %v2676 = vpack.c.b16 %v2658, %v2656
  %v2677 = vpack.c.b16 %v2659, %v2657
  %v2697 = vsel %vm1361, %v2604, 0
  %2699 = vmatprep.subr.bf16.mxu0 %v2675
  %2700 = vmatpush1.bf16.msra.mxu0 %v2674
  %2701 = vmatprep.subr.bf16.mxu0 %v2673
  %2702 = vmatpush1.bf16.msra.mxu0 %v2672
  %2703 = vmatprep.subr.bf16.mxu0 %v2671
  %2704 = vmatpush1.bf16.msra.mxu0 %v2670
  %2705 = vmatprep.subr.bf16.mxu0 %v2669
  %2706 = vmatpush1.bf16.msra.mxu0 %v2668
  %2707 = vmatprep.subr.bf16.mxu0 %v2667
  %2708 = vmatpush1.bf16.msra.mxu0 %v2666
  %2709 = vmatprep.subr.bf16.mxu0 %v2665
  %2710 = vmatpush1.bf16.msra.mxu0 %v2664
  %2711 = vmatprep.subr.bf16.mxu0 %v2663
  %2712 = vmatpush1.bf16.msra.mxu0 %v2662
  %2713 = vmatprep.subr.bf16.mxu0 %v2661
  %2714 = vmatpush1.bf16.msra.mxu0 %v2660
  %2715 = vmatprep.subr.bf16.mxu0 0
  %2716 = vmatpush2.bf16.msra.mxu0 0
  %2717 = vmatprep.subr.bf16.mxu0 0
  %2718 = vmatpush2.bf16.msra.mxu0 0
  %2719 = vmatprep.subr.bf16.mxu0 0
  %2720 = vmatpush2.bf16.msra.mxu0 0
  %2721 = vmatprep.subr.bf16.mxu0 0
  %2722 = vmatpush2.bf16.msra.mxu0 0
  %2723 = vmatprep.subr.bf16.mxu0 0
  %2724 = vmatpush2.bf16.msra.mxu0 0
  %2725 = vmatprep.subr.bf16.mxu0 0
  %2726 = vmatpush2.bf16.msra.mxu0 0
  %2727 = vmatprep.subr.bf16.mxu0 0
  %2728 = vmatpush2.bf16.msra.mxu0 0
  %2729 = vmatprep.subr.bf16.mxu0 %v2677
  %2730 = vmatpush2.bf16.msra.mxu0 %v2676
  %2731 = vmatprep.mubr.bf16.mxu0 %v2697
  %2732 = vmatmul.mubr.bf16.gmra.mxu0 %v2603
  %v2733 = vpop.f32.mrf.mxu0
  %v2734 = vadd.f32 0.0, %v2733
  %v2735 = vpop.f32.mrf.mxu0
  %v2736 = vadd.f32 0.0, %v2735
  %v2737 = vpop.f32.mrf.mxu0
  %v2738 = vpop.f32.mrf.mxu0
  %2739 = vdwg.mxu0
  %v2740 = vadd.f32 %v2577, %v2734
  %v2741 = vadd.f32 %v2578, %v2736
  %2742 = vst [vmem:[#allocation3] sm:$0xff] %v2740
  %2743 = vst [vmem:[#allocation3 + $0x8] sm:$0xff] %v2741
  %v2744 = vld [vmem:[#allocation3] sm:$0xff]
  %v2745 = vld [vmem:[#allocation3 + $0x8] sm:$0xff]
  %s2746 = scalar_lea.vmem [#allocation2], 72
  %v2747 = vld [vmem:[%s2746] sm:$0xff]
  %s2748 = scalar_lea.vmem %s3, 1296
  %v2749 = vld [vmem:[%s2748] sm:$0xff]
  %v2750 = vld [vmem:[%s2748 + $0x8] sm:$0xff]
  %v2751 = vld [vmem:[%s2748 + $0x10] sm:$0xff]
  %v2752 = vld [vmem:[%s2748 + $0x18] sm:$0xff]
  %v2753 = vld [vmem:[%s2748 + $0x20] sm:$0xff]
  %v2754 = vld [vmem:[%s2748 + $0x28] sm:$0xff]
  %v2755 = vld [vmem:[%s2748 + $0x30] sm:$0xff]
  %v2756 = vld [vmem:[%s2748 + $0x38] sm:$0xff]
  %v2757 = vld [vmem:[%s2748 + $0x40] sm:$0xff]
  %v2758 = vld [vmem:[%s2748 + $0x48] sm:$0xff]
  %v2759 = vld [vmem:[%s2748 + $0x50] sm:$0xff]
  %v2760 = vld [vmem:[%s2748 + $0x58] sm:$0xff]
  %v2761 = vld [vmem:[%s2748 + $0x60] sm:$0xff]
  %v2762 = vld [vmem:[%s2748 + $0x68] sm:$0xff]
  %v2763 = vld [vmem:[%s2748 + $0x70] sm:$0xff]
  %v2764 = vld [vmem:[%s2748 + $0x78] sm:$0xff]
  %v2765 = vld [vmem:[%s2748 + $0x80] sm:$0xff]
  %v2766 = vld [vmem:[%s2748 + $0x88] sm:$0xff]
  %v2768 = vunpack.c.l.b16 %v2747
  %v2769 = vunpack.c.h.b16 %v2747
  %v2770 = vpack.c.b16 %v2768, %v2768
  %v2771 = vpack.c.b16 %v2769, %v2769
  %v2791 = vunpack.c.l.b16 %v2749
  %v2792 = vunpack.c.h.b16 %v2749
  %v2793 = vunpack.c.l.b16 %v2750
  %v2794 = vunpack.c.h.b16 %v2750
  %v2795 = vunpack.c.l.b16 %v2751
  %v2796 = vunpack.c.h.b16 %v2751
  %v2797 = vunpack.c.l.b16 %v2752
  %v2798 = vunpack.c.h.b16 %v2752
  %v2799 = vunpack.c.l.b16 %v2753
  %v2800 = vunpack.c.h.b16 %v2753
  %v2801 = vunpack.c.l.b16 %v2754
  %v2802 = vunpack.c.h.b16 %v2754
  %v2803 = vunpack.c.l.b16 %v2755
  %v2804 = vunpack.c.h.b16 %v2755
  %v2805 = vunpack.c.l.b16 %v2756
  %v2806 = vunpack.c.h.b16 %v2756
  %v2807 = vunpack.c.l.b16 %v2757
  %v2808 = vunpack.c.h.b16 %v2757
  %v2809 = vunpack.c.l.b16 %v2758
  %v2810 = vunpack.c.h.b16 %v2758
  %v2811 = vunpack.c.l.b16 %v2759
  %v2812 = vunpack.c.h.b16 %v2759
  %v2813 = vunpack.c.l.b16 %v2760
  %v2814 = vunpack.c.h.b16 %v2760
  %v2815 = vunpack.c.l.b16 %v2761
  %v2816 = vunpack.c.h.b16 %v2761
  %v2817 = vunpack.c.l.b16 %v2762
  %v2818 = vunpack.c.h.b16 %v2762
  %v2819 = vunpack.c.l.b16 %v2763
  %v2820 = vunpack.c.h.b16 %v2763
  %v2821 = vunpack.c.l.b16 %v2764
  %v2822 = vunpack.c.h.b16 %v2764
  %v2823 = vunpack.c.l.b16 %v2765
  %v2824 = vunpack.c.h.b16 %v2765
  %v2825 = vunpack.c.l.b16 %v2766
  %v2826 = vunpack.c.h.b16 %v2766
  %v2827 = vpack.c.b16 %v2793, %v2791
  %v2828 = vpack.c.b16 %v2794, %v2792
  %v2829 = vpack.c.b16 %v2797, %v2795
  %v2830 = vpack.c.b16 %v2798, %v2796
  %v2831 = vpack.c.b16 %v2801, %v2799
  %v2832 = vpack.c.b16 %v2802, %v2800
  %v2833 = vpack.c.b16 %v2805, %v2803
  %v2834 = vpack.c.b16 %v2806, %v2804
  %v2835 = vpack.c.b16 %v2809, %v2807
  %v2836 = vpack.c.b16 %v2810, %v2808
  %v2837 = vpack.c.b16 %v2813, %v2811
  %v2838 = vpack.c.b16 %v2814, %v2812
  %v2839 = vpack.c.b16 %v2817, %v2815
  %v2840 = vpack.c.b16 %v2818, %v2816
  %v2841 = vpack.c.b16 %v2821, %v2819
  %v2842 = vpack.c.b16 %v2822, %v2820
  %v2843 = vpack.c.b16 %v2825, %v2823
  %v2844 = vpack.c.b16 %v2826, %v2824
  %v2864 = vsel %vm1361, %v2771, 0
  %2866 = vmatprep.subr.bf16.mxu0 %v2842
  %2867 = vmatpush1.bf16.msra.mxu0 %v2841
  %2868 = vmatprep.subr.bf16.mxu0 %v2840
  %2869 = vmatpush1.bf16.msra.mxu0 %v2839
  %2870 = vmatprep.subr.bf16.mxu0 %v2838
  %2871 = vmatpush1.bf16.msra.mxu0 %v2837
  %2872 = vmatprep.subr.bf16.mxu0 %v2836
  %2873 = vmatpush1.bf16.msra.mxu0 %v2835
  %2874 = vmatprep.subr.bf16.mxu0 %v2834
  %2875 = vmatpush1.bf16.msra.mxu0 %v2833
  %2876 = vmatprep.subr.bf16.mxu0 %v2832
  %2877 = vmatpush1.bf16.msra.mxu0 %v2831
  %2878 = vmatprep.subr.bf16.mxu0 %v2830
  %2879 = vmatpush1.bf16.msra.mxu0 %v2829
  %2880 = vmatprep.subr.bf16.mxu0 %v2828
  %2881 = vmatpush1.bf16.msra.mxu0 %v2827
  %2882 = vmatprep.subr.bf16.mxu0 0
  %2883 = vmatpush2.bf16.msra.mxu0 0
  %2884 = vmatprep.subr.bf16.mxu0 0
  %2885 = vmatpush2.bf16.msra.mxu0 0
  %2886 = vmatprep.subr.bf16.mxu0 0
  %2887 = vmatpush2.bf16.msra.mxu0 0
  %2888 = vmatprep.subr.bf16.mxu0 0
  %2889 = vmatpush2.bf16.msra.mxu0 0
  %2890 = vmatprep.subr.bf16.mxu0 0
  %2891 = vmatpush2.bf16.msra.mxu0 0
  %2892 = vmatprep.subr.bf16.mxu0 0
  %2893 = vmatpush2.bf16.msra.mxu0 0
  %2894 = vmatprep.subr.bf16.mxu0 0
  %2895 = vmatpush2.bf16.msra.mxu0 0
  %2896 = vmatprep.subr.bf16.mxu0 %v2844
  %2897 = vmatpush2.bf16.msra.mxu0 %v2843
  %2898 = vmatprep.mubr.bf16.mxu0 %v2864
  %2899 = vmatmul.mubr.bf16.gmra.mxu0 %v2770
  %v2900 = vpop.f32.mrf.mxu0
  %v2901 = vadd.f32 0.0, %v2900
  %v2902 = vpop.f32.mrf.mxu0
  %v2903 = vadd.f32 0.0, %v2902
  %v2904 = vpop.f32.mrf.mxu0
  %v2905 = vpop.f32.mrf.mxu0
  %2906 = vdwg.mxu0
  %v2907 = vadd.f32 %v2744, %v2901
  %v2908 = vadd.f32 %v2745, %v2903
  %2909 = vst [vmem:[#allocation3] sm:$0xff] %v2907
  %2910 = vst [vmem:[#allocation3 + $0x8] sm:$0xff] %v2908
  %v2911 = vld [vmem:[#allocation3] sm:$0xff]
  %v2912 = vld [vmem:[#allocation3 + $0x8] sm:$0xff]
  %s2913 = scalar_lea.vmem [#allocation2], 80
  %v2914 = vld [vmem:[%s2913] sm:$0xff]
  %s2915 = scalar_lea.vmem %s3, 1440
  %v2916 = vld [vmem:[%s2915] sm:$0xff]
  %v2917 = vld [vmem:[%s2915 + $0x8] sm:$0xff]
  %v2918 = vld [vmem:[%s2915 + $0x10] sm:$0xff]
  %v2919 = vld [vmem:[%s2915 + $0x18] sm:$0xff]
  %v2920 = vld [vmem:[%s2915 + $0x20] sm:$0xff]
  %v2921 = vld [vmem:[%s2915 + $0x28] sm:$0xff]
  %v2922 = vld [vmem:[%s2915 + $0x30] sm:$0xff]
  %v2923 = vld [vmem:[%s2915 + $0x38] sm:$0xff]
  %v2924 = vld [vmem:[%s2915 + $0x40] sm:$0xff]
  %v2925 = vld [vmem:[%s2915 + $0x48] sm:$0xff]
  %v2926 = vld [vmem:[%s2915 + $0x50] sm:$0xff]
  %v2927 = vld [vmem:[%s2915 + $0x58] sm:$0xff]
  %v2928 = vld [vmem:[%s2915 + $0x60] sm:$0xff]
  %v2929 = vld [vmem:[%s2915 + $0x68] sm:$0xff]
  %v2930 = vld [vmem:[%s2915 + $0x70] sm:$0xff]
  %v2931 = vld [vmem:[%s2915 + $0x78] sm:$0xff]
  %v2932 = vld [vmem:[%s2915 + $0x80] sm:$0xff]
  %v2933 = vld [vmem:[%s2915 + $0x88] sm:$0xff]
  %v2935 = vunpack.c.l.b16 %v2914
  %v2936 = vunpack.c.h.b16 %v2914
  %v2937 = vpack.c.b16 %v2935, %v2935
  %v2938 = vpack.c.b16 %v2936, %v2936
  %v2958 = vunpack.c.l.b16 %v2916
  %v2959 = vunpack.c.h.b16 %v2916
  %v2960 = vunpack.c.l.b16 %v2917
  %v2961 = vunpack.c.h.b16 %v2917
  %v2962 = vunpack.c.l.b16 %v2918
  %v2963 = vunpack.c.h.b16 %v2918
  %v2964 = vunpack.c.l.b16 %v2919
  %v2965 = vunpack.c.h.b16 %v2919
  %v2966 = vunpack.c.l.b16 %v2920
  %v2967 = vunpack.c.h.b16 %v2920
  %v2968 = vunpack.c.l.b16 %v2921
  %v2969 = vunpack.c.h.b16 %v2921
  %v2970 = vunpack.c.l.b16 %v2922
  %v2971 = vunpack.c.h.b16 %v2922
  %v2972 = vunpack.c.l.b16 %v2923
  %v2973 = vunpack.c.h.b16 %v2923
  %v2974 = vunpack.c.l.b16 %v2924
  %v2975 = vunpack.c.h.b16 %v2924
  %v2976 = vunpack.c.l.b16 %v2925
  %v2977 = vunpack.c.h.b16 %v2925
  %v2978 = vunpack.c.l.b16 %v2926
  %v2979 = vunpack.c.h.b16 %v2926
  %v2980 = vunpack.c.l.b16 %v2927
  %v2981 = vunpack.c.h.b16 %v2927
  %v2982 = vunpack.c.l.b16 %v2928
  %v2983 = vunpack.c.h.b16 %v2928
  %v2984 = vunpack.c.l.b16 %v2929
  %v2985 = vunpack.c.h.b16 %v2929
  %v2986 = vunpack.c.l.b16 %v2930
  %v2987 = vunpack.c.h.b16 %v2930
  %v2988 = vunpack.c.l.b16 %v2931
  %v2989 = vunpack.c.h.b16 %v2931
  %v2990 = vunpack.c.l.b16 %v2932
  %v2991 = vunpack.c.h.b16 %v2932
  %v2992 = vunpack.c.l.b16 %v2933
  %v2993 = vunpack.c.h.b16 %v2933
  %v2994 = vpack.c.b16 %v2960, %v2958
  %v2995 = vpack.c.b16 %v2961, %v2959
  %v2996 = vpack.c.b16 %v2964, %v2962
  %v2997 = vpack.c.b16 %v2965, %v2963
  %v2998 = vpack.c.b16 %v2968, %v2966
  %v2999 = vpack.c.b16 %v2969, %v2967
  %v3000 = vpack.c.b16 %v2972, %v2970
  %v3001 = vpack.c.b16 %v2973, %v2971
  %v3002 = vpack.c.b16 %v2976, %v2974
  %v3003 = vpack.c.b16 %v2977, %v2975
  %v3004 = vpack.c.b16 %v2980, %v2978
  %v3005 = vpack.c.b16 %v2981, %v2979
  %v3006 = vpack.c.b16 %v2984, %v2982
  %v3007 = vpack.c.b16 %v2985, %v2983
  %v3008 = vpack.c.b16 %v2988, %v2986
  %v3009 = vpack.c.b16 %v2989, %v2987
  %v3010 = vpack.c.b16 %v2992, %v2990
  %v3011 = vpack.c.b16 %v2993, %v2991
  %v3031 = vsel %vm1361, %v2938, 0
  %3033 = vmatprep.subr.bf16.mxu0 %v3009
  %3034 = vmatpush1.bf16.msra.mxu0 %v3008
  %3035 = vmatprep.subr.bf16.mxu0 %v3007
  %3036 = vmatpush1.bf16.msra.mxu0 %v3006
  %3037 = vmatprep.subr.bf16.mxu0 %v3005
  %3038 = vmatpush1.bf16.msra.mxu0 %v3004
  %3039 = vmatprep.subr.bf16.mxu0 %v3003
  %3040 = vmatpush1.bf16.msra.mxu0 %v3002
  %3041 = vmatprep.subr.bf16.mxu0 %v3001
  %3042 = vmatpush1.bf16.msra.mxu0 %v3000
  %3043 = vmatprep.subr.bf16.mxu0 %v2999
  %3044 = vmatpush1.bf16.msra.mxu0 %v2998
  %3045 = vmatprep.subr.bf16.mxu0 %v2997
  %3046 = vmatpush1.bf16.msra.mxu0 %v2996
  %3047 = vmatprep.subr.bf16.mxu0 %v2995
  %3048 = vmatpush1.bf16.msra.mxu0 %v2994
  %3049 = vmatprep.subr.bf16.mxu0 0
  %3050 = vmatpush2.bf16.msra.mxu0 0
  %3051 = vmatprep.subr.bf16.mxu0 0
  %3052 = vmatpush2.bf16.msra.mxu0 0
  %3053 = vmatprep.subr.bf16.mxu0 0
  %3054 = vmatpush2.bf16.msra.mxu0 0
  %3055 = vmatprep.subr.bf16.mxu0 0
  %3056 = vmatpush2.bf16.msra.mxu0 0
  %3057 = vmatprep.subr.bf16.mxu0 0
  %3058 = vmatpush2.bf16.msra.mxu0 0
  %3059 = vmatprep.subr.bf16.mxu0 0
  %3060 = vmatpush2.bf16.msra.mxu0 0
  %3061 = vmatprep.subr.bf16.mxu0 0
  %3062 = vmatpush2.bf16.msra.mxu0 0
  %3063 = vmatprep.subr.bf16.mxu0 %v3011
  %3064 = vmatpush2.bf16.msra.mxu0 %v3010
  %3065 = vmatprep.mubr.bf16.mxu0 %v3031
  %3066 = vmatmul.mubr.bf16.gmra.mxu0 %v2937
  %v3067 = vpop.f32.mrf.mxu0
  %v3068 = vadd.f32 0.0, %v3067
  %v3069 = vpop.f32.mrf.mxu0
  %v3070 = vadd.f32 0.0, %v3069
  %v3071 = vpop.f32.mrf.mxu0
  %v3072 = vpop.f32.mrf.mxu0
  %3073 = vdwg.mxu0
  %v3074 = vadd.f32 %v2911, %v3068
  %v3075 = vadd.f32 %v2912, %v3070
  %3076 = vst [vmem:[#allocation3] sm:$0xff] %v3074
  %3077 = vst [vmem:[#allocation3 + $0x8] sm:$0xff] %v3075
  %v3078 = vld [vmem:[#allocation3] sm:$0xff]
  %v3079 = vld [vmem:[#allocation3 + $0x8] sm:$0xff]
  %s3080 = scalar_lea.vmem [#allocation2], 88
  %v3081 = vld [vmem:[%s3080] sm:$0xff]
  %s3082 = scalar_lea.vmem %s3, 1584
  %v3083 = vld [vmem:[%s3082] sm:$0xff]
  %v3084 = vld [vmem:[%s3082 + $0x8] sm:$0xff]
  %v3085 = vld [vmem:[%s3082 + $0x10] sm:$0xff]
  %v3086 = vld [vmem:[%s3082 + $0x18] sm:$0xff]
  %v3087 = vld [vmem:[%s3082 + $0x20] sm:$0xff]
  %v3088 = vld [vmem:[%s3082 + $0x28] sm:$0xff]
  %v3089 = vld [vmem:[%s3082 + $0x30] sm:$0xff]
  %v3090 = vld [vmem:[%s3082 + $0x38] sm:$0xff]
  %v3091 = vld [vmem:[%s3082 + $0x40] sm:$0xff]
  %v3092 = vld [vmem:[%s3082 + $0x48] sm:$0xff]
  %v3093 = vld [vmem:[%s3082 + $0x50] sm:$0xff]
  %v3094 = vld [vmem:[%s3082 + $0x58] sm:$0xff]
  %v3095 = vld [vmem:[%s3082 + $0x60] sm:$0xff]
  %v3096 = vld [vmem:[%s3082 + $0x68] sm:$0xff]
  %v3097 = vld [vmem:[%s3082 + $0x70] sm:$0xff]
  %v3098 = vld [vmem:[%s3082 + $0x78] sm:$0xff]
  %v3099 = vld [vmem:[%s3082 + $0x80] sm:$0xff]
  %v3100 = vld [vmem:[%s3082 + $0x88] sm:$0xff]
  %v3102 = vunpack.c.l.b16 %v3081
  %v3103 = vunpack.c.h.b16 %v3081
  %v3104 = vpack.c.b16 %v3102, %v3102
  %v3105 = vpack.c.b16 %v3103, %v3103
  %v3125 = vunpack.c.l.b16 %v3083
  %v3126 = vunpack.c.h.b16 %v3083
  %v3127 = vunpack.c.l.b16 %v3084
  %v3128 = vunpack.c.h.b16 %v3084
  %v3129 = vunpack.c.l.b16 %v3085
  %v3130 = vunpack.c.h.b16 %v3085
  %v3131 = vunpack.c.l.b16 %v3086
  %v3132 = vunpack.c.h.b16 %v3086
  %v3133 = vunpack.c.l.b16 %v3087
  %v3134 = vunpack.c.h.b16 %v3087
  %v3135 = vunpack.c.l.b16 %v3088
  %v3136 = vunpack.c.h.b16 %v3088
  %v3137 = vunpack.c.l.b16 %v3089
  %v3138 = vunpack.c.h.b16 %v3089
  %v3139 = vunpack.c.l.b16 %v3090
  %v3140 = vunpack.c.h.b16 %v3090
  %v3141 = vunpack.c.l.b16 %v3091
  %v3142 = vunpack.c.h.b16 %v3091
  %v3143 = vunpack.c.l.b16 %v3092
  %v3144 = vunpack.c.h.b16 %v3092
  %v3145 = vunpack.c.l.b16 %v3093
  %v3146 = vunpack.c.h.b16 %v3093
  %v3147 = vunpack.c.l.b16 %v3094
  %v3148 = vunpack.c.h.b16 %v3094
  %v3149 = vunpack.c.l.b16 %v3095
  %v3150 = vunpack.c.h.b16 %v3095
  %v3151 = vunpack.c.l.b16 %v3096
  %v3152 = vunpack.c.h.b16 %v3096
  %v3153 = vunpack.c.l.b16 %v3097
  %v3154 = vunpack.c.h.b16 %v3097
  %v3155 = vunpack.c.l.b16 %v3098
  %v3156 = vunpack.c.h.b16 %v3098
  %v3157 = vunpack.c.l.b16 %v3099
  %v3158 = vunpack.c.h.b16 %v3099
  %v3159 = vunpack.c.l.b16 %v3100
  %v3160 = vunpack.c.h.b16 %v3100
  %v3161 = vpack.c.b16 %v3127, %v3125
  %v3162 = vpack.c.b16 %v3128, %v3126
  %v3163 = vpack.c.b16 %v3131, %v3129
  %v3164 = vpack.c.b16 %v3132, %v3130
  %v3165 = vpack.c.b16 %v3135, %v3133
  %v3166 = vpack.c.b16 %v3136, %v3134
  %v3167 = vpack.c.b16 %v3139, %v3137
  %v3168 = vpack.c.b16 %v3140, %v3138
  %v3169 = vpack.c.b16 %v3143, %v3141
  %v3170 = vpack.c.b16 %v3144, %v3142
  %v3171 = vpack.c.b16 %v3147, %v3145
  %v3172 = vpack.c.b16 %v3148, %v3146
  %v3173 = vpack.c.b16 %v3151, %v3149
  %v3174 = vpack.c.b16 %v3152, %v3150
  %v3175 = vpack.c.b16 %v3155, %v3153
  %v3176 = vpack.c.b16 %v3156, %v3154
  %v3177 = vpack.c.b16 %v3159, %v3157
  %v3178 = vpack.c.b16 %v3160, %v3158
  %v3198 = vsel %vm1361, %v3105, 0
  %3200 = vmatprep.subr.bf16.mxu0 %v3176
  %3201 = vmatpush1.bf16.msra.mxu0 %v3175
  %3202 = vmatprep.subr.bf16.mxu0 %v3174
  %3203 = vmatpush1.bf16.msra.mxu0 %v3173
  %3204 = vmatprep.subr.bf16.mxu0 %v3172
  %3205 = vmatpush1.bf16.msra.mxu0 %v3171
  %3206 = vmatprep.subr.bf16.mxu0 %v3170
  %3207 = vmatpush1.bf16.msra.mxu0 %v3169
  %3208 = vmatprep.subr.bf16.mxu0 %v3168
  %3209 = vmatpush1.bf16.msra.mxu0 %v3167
  %3210 = vmatprep.subr.bf16.mxu0 %v3166
  %3211 = vmatpush1.bf16.msra.mxu0 %v3165
  %3212 = vmatprep.subr.bf16.mxu0 %v3164
  %3213 = vmatpush1.bf16.msra.mxu0 %v3163
  %3214 = vmatprep.subr.bf16.mxu0 %v3162
  %3215 = vmatpush1.bf16.msra.mxu0 %v3161
  %3216 = vmatprep.subr.bf16.mxu0 0
  %3217 = vmatpush2.bf16.msra.mxu0 0
  %3218 = vmatprep.subr.bf16.mxu0 0
  %3219 = vmatpush2.bf16.msra.mxu0 0
  %3220 = vmatprep.subr.bf16.mxu0 0
  %3221 = vmatpush2.bf16.msra.mxu0 0
  %3222 = vmatprep.subr.bf16.mxu0 0
  %3223 = vmatpush2.bf16.msra.mxu0 0
  %3224 = vmatprep.subr.bf16.mxu0 0
  %3225 = vmatpush2.bf16.msra.mxu0 0
  %3226 = vmatprep.subr.bf16.mxu0 0
  %3227 = vmatpush2.bf16.msra.mxu0 0
  %3228 = vmatprep.subr.bf16.mxu0 0
  %3229 = vmatpush2.bf16.msra.mxu0 0
  %3230 = vmatprep.subr.bf16.mxu0 %v3178
  %3231 = vmatpush2.bf16.msra.mxu0 %v3177
  %3232 = vmatprep.mubr.bf16.mxu0 %v3198
  %3233 = vmatmul.mubr.bf16.gmra.mxu0 %v3104
  %v3234 = vpop.f32.mrf.mxu0
  %v3235 = vadd.f32 0.0, %v3234
  %v3236 = vpop.f32.mrf.mxu0
  %v3237 = vadd.f32 0.0, %v3236
  %v3238 = vpop.f32.mrf.mxu0
  %v3239 = vpop.f32.mrf.mxu0
  %3240 = vdwg.mxu0
  %v3241 = vadd.f32 %v3078, %v3235
  %v3242 = vadd.f32 %v3079, %v3237
  %3243 = vst [vmem:[#allocation3] sm:$0xff] %v3241
  %3244 = vst [vmem:[#allocation3 + $0x8] sm:$0xff] %v3242
  %v3245 = vld [vmem:[#allocation3] sm:$0xff]
  %v3246 = vld [vmem:[#allocation3 + $0x8] sm:$0xff]
  %s3247 = scalar_lea.vmem [#allocation2], 96
  %v3248 = vld [vmem:[%s3247] sm:$0xff]
  %s3249 = scalar_lea.vmem %s3, 1728
  %v3250 = vld [vmem:[%s3249] sm:$0xff]
  %v3251 = vld [vmem:[%s3249 + $0x8] sm:$0xff]
  %v3252 = vld [vmem:[%s3249 + $0x10] sm:$0xff]
  %v3253 = vld [vmem:[%s3249 + $0x18] sm:$0xff]
  %v3254 = vld [vmem:[%s3249 + $0x20] sm:$0xff]
  %v3255 = vld [vmem:[%s3249 + $0x28] sm:$0xff]
  %v3256 = vld [vmem:[%s3249 + $0x30] sm:$0xff]
  %v3257 = vld [vmem:[%s3249 + $0x38] sm:$0xff]
  %v3258 = vld [vmem:[%s3249 + $0x40] sm:$0xff]
  %v3259 = vld [vmem:[%s3249 + $0x48] sm:$0xff]
  %v3260 = vld [vmem:[%s3249 + $0x50] sm:$0xff]
  %v3261 = vld [vmem:[%s3249 + $0x58] sm:$0xff]
  %v3262 = vld [vmem:[%s3249 + $0x60] sm:$0xff]
  %v3263 = vld [vmem:[%s3249 + $0x68] sm:$0xff]
  %v3264 = vld [vmem:[%s3249 + $0x70] sm:$0xff]
  %v3265 = vld [vmem:[%s3249 + $0x78] sm:$0xff]
  %v3266 = vld [vmem:[%s3249 + $0x80] sm:$0xff]
  %v3267 = vld [vmem:[%s3249 + $0x88] sm:$0xff]
  %v3269 = vunpack.c.l.b16 %v3248
  %v3270 = vunpack.c.h.b16 %v3248
  %v3271 = vpack.c.b16 %v3269, %v3269
  %v3272 = vpack.c.b16 %v3270, %v3270
  %v3292 = vunpack.c.l.b16 %v3250
  %v3293 = vunpack.c.h.b16 %v3250
  %v3294 = vunpack.c.l.b16 %v3251
  %v3295 = vunpack.c.h.b16 %v3251
  %v3296 = vunpack.c.l.b16 %v3252
  %v3297 = vunpack.c.h.b16 %v3252
  %v3298 = vunpack.c.l.b16 %v3253
  %v3299 = vunpack.c.h.b16 %v3253
  %v3300 = vunpack.c.l.b16 %v3254
  %v3301 = vunpack.c.h.b16 %v3254
  %v3302 = vunpack.c.l.b16 %v3255
  %v3303 = vunpack.c.h.b16 %v3255
  %v3304 = vunpack.c.l.b16 %v3256
  %v3305 = vunpack.c.h.b16 %v3256
  %v3306 = vunpack.c.l.b16 %v3257
  %v3307 = vunpack.c.h.b16 %v3257
  %v3308 = vunpack.c.l.b16 %v3258
  %v3309 = vunpack.c.h.b16 %v3258
  %v3310 = vunpack.c.l.b16 %v3259
  %v3311 = vunpack.c.h.b16 %v3259
  %v3312 = vunpack.c.l.b16 %v3260
  %v3313 = vunpack.c.h.b16 %v3260
  %v3314 = vunpack.c.l.b16 %v3261
  %v3315 = vunpack.c.h.b16 %v3261
  %v3316 = vunpack.c.l.b16 %v3262
  %v3317 = vunpack.c.h.b16 %v3262
  %v3318 = vunpack.c.l.b16 %v3263
  %v3319 = vunpack.c.h.b16 %v3263
  %v3320 = vunpack.c.l.b16 %v3264
  %v3321 = vunpack.c.h.b16 %v3264
  %v3322 = vunpack.c.l.b16 %v3265
  %v3323 = vunpack.c.h.b16 %v3265
  %v3324 = vunpack.c.l.b16 %v3266
  %v3325 = vunpack.c.h.b16 %v3266
  %v3326 = vunpack.c.l.b16 %v3267
  %v3327 = vunpack.c.h.b16 %v3267
  %v3328 = vpack.c.b16 %v3294, %v3292
  %v3329 = vpack.c.b16 %v3295, %v3293
  %v3330 = vpack.c.b16 %v3298, %v3296
  %v3331 = vpack.c.b16 %v3299, %v3297
  %v3332 = vpack.c.b16 %v3302, %v3300
  %v3333 = vpack.c.b16 %v3303, %v3301
  %v3334 = vpack.c.b16 %v3306, %v3304
  %v3335 = vpack.c.b16 %v3307, %v3305
  %v3336 = vpack.c.b16 %v3310, %v3308
  %v3337 = vpack.c.b16 %v3311, %v3309
  %v3338 = vpack.c.b16 %v3314, %v3312
  %v3339 = vpack.c.b16 %v3315, %v3313
  %v3340 = vpack.c.b16 %v3318, %v3316
  %v3341 = vpack.c.b16 %v3319, %v3317
  %v3342 = vpack.c.b16 %v3322, %v3320
  %v3343 = vpack.c.b16 %v3323, %v3321
  %v3344 = vpack.c.b16 %v3326, %v3324
  %v3345 = vpack.c.b16 %v3327, %v3325
  %v3365 = vsel %vm1361, %v3272, 0
  %3367 = vmatprep.subr.bf16.mxu0 %v3343
  %3368 = vmatpush1.bf16.msra.mxu0 %v3342
  %3369 = vmatprep.subr.bf16.mxu0 %v3341
  %3370 = vmatpush1.bf16.msra.mxu0 %v3340
  %3371 = vmatprep.subr.bf16.mxu0 %v3339
  %3372 = vmatpush1.bf16.msra.mxu0 %v3338
  %3373 = vmatprep.subr.bf16.mxu0 %v3337
  %3374 = vmatpush1.bf16.msra.mxu0 %v3336
  %3375 = vmatprep.subr.bf16.mxu0 %v3335
  %3376 = vmatpush1.bf16.msra.mxu0 %v3334
  %3377 = vmatprep.subr.bf16.mxu0 %v3333
  %3378 = vmatpush1.bf16.msra.mxu0 %v3332
  %3379 = vmatprep.subr.bf16.mxu0 %v3331
  %3380 = vmatpush1.bf16.msra.mxu0 %v3330
  %3381 = vmatprep.subr.bf16.mxu0 %v3329
  %3382 = vmatpush1.bf16.msra.mxu0 %v3328
  %3383 = vmatprep.subr.bf16.mxu0 0
  %3384 = vmatpush2.bf16.msra.mxu0 0
  %3385 = vmatprep.subr.bf16.mxu0 0
  %3386 = vmatpush2.bf16.msra.mxu0 0
  %3387 = vmatprep.subr.bf16.mxu0 0
  %3388 = vmatpush2.bf16.msra.mxu0 0
  %3389 = vmatprep.subr.bf16.mxu0 0
  %3390 = vmatpush2.bf16.msra.mxu0 0
  %3391 = vmatprep.subr.bf16.mxu0 0
  %3392 = vmatpush2.bf16.msra.mxu0 0
  %3393 = vmatprep.subr.bf16.mxu0 0
  %3394 = vmatpush2.bf16.msra.mxu0 0
  %3395 = vmatprep.subr.bf16.mxu0 0
  %3396 = vmatpush2.bf16.msra.mxu0 0
  %3397 = vmatprep.subr.bf16.mxu0 %v3345
  %3398 = vmatpush2.bf16.msra.mxu0 %v3344
  %3399 = vmatprep.mubr.bf16.mxu0 %v3365
  %3400 = vmatmul.mubr.bf16.gmra.mxu0 %v3271
  %v3401 = vpop.f32.mrf.mxu0
  %v3402 = vadd.f32 0.0, %v3401
  %v3403 = vpop.f32.mrf.mxu0
  %v3404 = vadd.f32 0.0, %v3403
  %v3405 = vpop.f32.mrf.mxu0
  %v3406 = vpop.f32.mrf.mxu0
  %3407 = vdwg.mxu0
  %v3408 = vadd.f32 %v3245, %v3402
  %v3409 = vadd.f32 %v3246, %v3404
  %3410 = vst [vmem:[#allocation3] sm:$0xff] %v3408
  %3411 = vst [vmem:[#allocation3 + $0x8] sm:$0xff] %v3409
  %v3412 = vld [vmem:[#allocation3] sm:$0xff]
  %v3413 = vld [vmem:[#allocation3 + $0x8] sm:$0xff]
  %s3414 = scalar_lea.vmem [#allocation2], 104
  %v3415 = vld [vmem:[%s3414] sm:$0xff]
  %s3416 = scalar_lea.vmem %s3, 1872
  %v3417 = vld [vmem:[%s3416] sm:$0xff]
  %v3418 = vld [vmem:[%s3416 + $0x8] sm:$0xff]
  %v3419 = vld [vmem:[%s3416 + $0x10] sm:$0xff]
  %v3420 = vld [vmem:[%s3416 + $0x18] sm:$0xff]
  %v3421 = vld [vmem:[%s3416 + $0x20] sm:$0xff]
  %v3422 = vld [vmem:[%s3416 + $0x28] sm:$0xff]
  %v3423 = vld [vmem:[%s3416 + $0x30] sm:$0xff]
  %v3424 = vld [vmem:[%s3416 + $0x38] sm:$0xff]
  %v3425 = vld [vmem:[%s3416 + $0x40] sm:$0xff]
  %v3426 = vld [vmem:[%s3416 + $0x48] sm:$0xff]
  %v3427 = vld [vmem:[%s3416 + $0x50] sm:$0xff]
  %v3428 = vld [vmem:[%s3416 + $0x58] sm:$0xff]
  %v3429 = vld [vmem:[%s3416 + $0x60] sm:$0xff]
  %v3430 = vld [vmem:[%s3416 + $0x68] sm:$0xff]
  %v3431 = vld [vmem:[%s3416 + $0x70] sm:$0xff]
  %v3432 = vld [vmem:[%s3416 + $0x78] sm:$0xff]
  %v3433 = vld [vmem:[%s3416 + $0x80] sm:$0xff]
  %v3434 = vld [vmem:[%s3416 + $0x88] sm:$0xff]
  %v3436 = vunpack.c.l.b16 %v3415
  %v3437 = vunpack.c.h.b16 %v3415
  %v3438 = vpack.c.b16 %v3436, %v3436
  %v3439 = vpack.c.b16 %v3437, %v3437
  %v3459 = vunpack.c.l.b16 %v3417
  %v3460 = vunpack.c.h.b16 %v3417
  %v3461 = vunpack.c.l.b16 %v3418
  %v3462 = vunpack.c.h.b16 %v3418
  %v3463 = vunpack.c.l.b16 %v3419
  %v3464 = vunpack.c.h.b16 %v3419
  %v3465 = vunpack.c.l.b16 %v3420
  %v3466 = vunpack.c.h.b16 %v3420
  %v3467 = vunpack.c.l.b16 %v3421
  %v3468 = vunpack.c.h.b16 %v3421
  %v3469 = vunpack.c.l.b16 %v3422
  %v3470 = vunpack.c.h.b16 %v3422
  %v3471 = vunpack.c.l.b16 %v3423
  %v3472 = vunpack.c.h.b16 %v3423
  %v3473 = vunpack.c.l.b16 %v3424
  %v3474 = vunpack.c.h.b16 %v3424
  %v3475 = vunpack.c.l.b16 %v3425
  %v3476 = vunpack.c.h.b16 %v3425
  %v3477 = vunpack.c.l.b16 %v3426
  %v3478 = vunpack.c.h.b16 %v3426
  %v3479 = vunpack.c.l.b16 %v3427
  %v3480 = vunpack.c.h.b16 %v3427
  %v3481 = vunpack.c.l.b16 %v3428
  %v3482 = vunpack.c.h.b16 %v3428
  %v3483 = vunpack.c.l.b16 %v3429
  %v3484 = vunpack.c.h.b16 %v3429
  %v3485 = vunpack.c.l.b16 %v3430
  %v3486 = vunpack.c.h.b16 %v3430
  %v3487 = vunpack.c.l.b16 %v3431
  %v3488 = vunpack.c.h.b16 %v3431
  %v3489 = vunpack.c.l.b16 %v3432
  %v3490 = vunpack.c.h.b16 %v3432
  %v3491 = vunpack.c.l.b16 %v3433
  %v3492 = vunpack.c.h.b16 %v3433
  %v3493 = vunpack.c.l.b16 %v3434
  %v3494 = vunpack.c.h.b16 %v3434
  %v3495 = vpack.c.b16 %v3461, %v3459
  %v3496 = vpack.c.b16 %v3462, %v3460
  %v3497 = vpack.c.b16 %v3465, %v3463
  %v3498 = vpack.c.b16 %v3466, %v3464
  %v3499 = vpack.c.b16 %v3469, %v3467
  %v3500 = vpack.c.b16 %v3470, %v3468
  %v3501 = vpack.c.b16 %v3473, %v3471
  %v3502 = vpack.c.b16 %v3474, %v3472
  %v3503 = vpack.c.b16 %v3477, %v3475
  %v3504 = vpack.c.b16 %v3478, %v3476
  %v3505 = vpack.c.b16 %v3481, %v3479
  %v3506 = vpack.c.b16 %v3482, %v3480
  %v3507 = vpack.c.b16 %v3485, %v3483
  %v3508 = vpack.c.b16 %v3486, %v3484
  %v3509 = vpack.c.b16 %v3489, %v3487
  %v3510 = vpack.c.b16 %v3490, %v3488
  %v3511 = vpack.c.b16 %v3493, %v3491
  %v3512 = vpack.c.b16 %v3494, %v3492
  %v3532 = vsel %vm1361, %v3439, 0
  %3534 = vmatprep.subr.bf16.mxu0 %v3510
  %3535 = vmatpush1.bf16.msra.mxu0 %v3509
  %3536 = vmatprep.subr.bf16.mxu0 %v3508
  %3537 = vmatpush1.bf16.msra.mxu0 %v3507
  %3538 = vmatprep.subr.bf16.mxu0 %v3506
  %3539 = vmatpush1.bf16.msra.mxu0 %v3505
  %3540 = vmatprep.subr.bf16.mxu0 %v3504
  %3541 = vmatpush1.bf16.msra.mxu0 %v3503
  %3542 = vmatprep.subr.bf16.mxu0 %v3502
  %3543 = vmatpush1.bf16.msra.mxu0 %v3501
  %3544 = vmatprep.subr.bf16.mxu0 %v3500
  %3545 = vmatpush1.bf16.msra.mxu0 %v3499
  %3546 = vmatprep.subr.bf16.mxu0 %v3498
  %3547 = vmatpush1.bf16.msra.mxu0 %v3497
  %3548 = vmatprep.subr.bf16.mxu0 %v3496
  %3549 = vmatpush1.bf16.msra.mxu0 %v3495
  %3550 = vmatprep.subr.bf16.mxu0 0
  %3551 = vmatpush2.bf16.msra.mxu0 0
  %3552 = vmatprep.subr.bf16.mxu0 0
  %3553 = vmatpush2.bf16.msra.mxu0 0
  %3554 = vmatprep.subr.bf16.mxu0 0
  %3555 = vmatpush2.bf16.msra.mxu0 0
  %3556 = vmatprep.subr.bf16.mxu0 0
  %3557 = vmatpush2.bf16.msra.mxu0 0
  %3558 = vmatprep.subr.bf16.mxu0 0
  %3559 = vmatpush2.bf16.msra.mxu0 0
  %3560 = vmatprep.subr.bf16.mxu0 0
  %3561 = vmatpush2.bf16.msra.mxu0 0
  %3562 = vmatprep.subr.bf16.mxu0 0
  %3563 = vmatpush2.bf16.msra.mxu0 0
  %3564 = vmatprep.subr.bf16.mxu0 %v3512
  %3565 = vmatpush2.bf16.msra.mxu0 %v3511
  %3566 = vmatprep.mubr.bf16.mxu0 %v3532
  %3567 = vmatmul.mubr.bf16.gmra.mxu0 %v3438
  %v3568 = vpop.f32.mrf.mxu0
  %v3569 = vadd.f32 0.0, %v3568
  %v3570 = vpop.f32.mrf.mxu0
  %v3571 = vadd.f32 0.0, %v3570
  %v3572 = vpop.f32.mrf.mxu0
  %v3573 = vpop.f32.mrf.mxu0
  %3574 = vdwg.mxu0
  %v3575 = vadd.f32 %v3412, %v3569
  %v3576 = vadd.f32 %v3413, %v3571
  %3577 = vst [vmem:[#allocation3] sm:$0xff] %v3575
  %3578 = vst [vmem:[#allocation3 + $0x8] sm:$0xff] %v3576
  %v3579 = vld [vmem:[#allocation3] sm:$0xff]
  %v3580 = vld [vmem:[#allocation3 + $0x8] sm:$0xff]
  %s3581 = scalar_lea.vmem [#allocation2], 112
  %v3582 = vld [vmem:[%s3581] sm:$0xff]
  %s3583 = scalar_lea.vmem %s3, 2016
  %v3584 = vld [vmem:[%s3583] sm:$0xff]
  %v3585 = vld [vmem:[%s3583 + $0x8] sm:$0xff]
  %v3586 = vld [vmem:[%s3583 + $0x10] sm:$0xff]
  %v3587 = vld [vmem:[%s3583 + $0x18] sm:$0xff]
  %v3588 = vld [vmem:[%s3583 + $0x20] sm:$0xff]
  %v3589 = vld [vmem:[%s3583 + $0x28] sm:$0xff]
  %v3590 = vld [vmem:[%s3583 + $0x30] sm:$0xff]
  %v3591 = vld [vmem:[%s3583 + $0x38] sm:$0xff]
  %v3592 = vld [vmem:[%s3583 + $0x40] sm:$0xff]
  %v3593 = vld [vmem:[%s3583 + $0x48] sm:$0xff]
  %v3594 = vld [vmem:[%s3583 + $0x50] sm:$0xff]
  %v3595 = vld [vmem:[%s3583 + $0x58] sm:$0xff]
  %v3596 = vld [vmem:[%s3583 + $0x60] sm:$0xff]
  %v3597 = vld [vmem:[%s3583 + $0x68] sm:$0xff]
  %v3598 = vld [vmem:[%s3583 + $0x70] sm:$0xff]
  %v3599 = vld [vmem:[%s3583 + $0x78] sm:$0xff]
  %v3600 = vld [vmem:[%s3583 + $0x80] sm:$0xff]
  %v3601 = vld [vmem:[%s3583 + $0x88] sm:$0xff]
  %v3603 = vunpack.c.l.b16 %v3582
  %v3604 = vunpack.c.h.b16 %v3582
  %v3605 = vpack.c.b16 %v3603, %v3603
  %v3606 = vpack.c.b16 %v3604, %v3604
  %v3626 = vunpack.c.l.b16 %v3584
  %v3627 = vunpack.c.h.b16 %v3584
  %v3628 = vunpack.c.l.b16 %v3585
  %v3629 = vunpack.c.h.b16 %v3585
  %v3630 = vunpack.c.l.b16 %v3586
  %v3631 = vunpack.c.h.b16 %v3586
  %v3632 = vunpack.c.l.b16 %v3587
  %v3633 = vunpack.c.h.b16 %v3587
  %v3634 = vunpack.c.l.b16 %v3588
  %v3635 = vunpack.c.h.b16 %v3588
  %v3636 = vunpack.c.l.b16 %v3589
  %v3637 = vunpack.c.h.b16 %v3589
  %v3638 = vunpack.c.l.b16 %v3590
  %v3639 = vunpack.c.h.b16 %v3590
  %v3640 = vunpack.c.l.b16 %v3591
  %v3641 = vunpack.c.h.b16 %v3591
  %v3642 = vunpack.c.l.b16 %v3592
  %v3643 = vunpack.c.h.b16 %v3592
  %v3644 = vunpack.c.l.b16 %v3593
  %v3645 = vunpack.c.h.b16 %v3593
  %v3646 = vunpack.c.l.b16 %v3594
  %v3647 = vunpack.c.h.b16 %v3594
  %v3648 = vunpack.c.l.b16 %v3595
  %v3649 = vunpack.c.h.b16 %v3595
  %v3650 = vunpack.c.l.b16 %v3596
  %v3651 = vunpack.c.h.b16 %v3596
  %v3652 = vunpack.c.l.b16 %v3597
  %v3653 = vunpack.c.h.b16 %v3597
  %v3654 = vunpack.c.l.b16 %v3598
  %v3655 = vunpack.c.h.b16 %v3598
  %v3656 = vunpack.c.l.b16 %v3599
  %v3657 = vunpack.c.h.b16 %v3599
  %v3658 = vunpack.c.l.b16 %v3600
  %v3659 = vunpack.c.h.b16 %v3600
  %v3660 = vunpack.c.l.b16 %v3601
  %v3661 = vunpack.c.h.b16 %v3601
  %v3662 = vpack.c.b16 %v3628, %v3626
  %v3663 = vpack.c.b16 %v3629, %v3627
  %v3664 = vpack.c.b16 %v3632, %v3630
  %v3665 = vpack.c.b16 %v3633, %v3631
  %v3666 = vpack.c.b16 %v3636, %v3634
  %v3667 = vpack.c.b16 %v3637, %v3635
  %v3668 = vpack.c.b16 %v3640, %v3638
  %v3669 = vpack.c.b16 %v3641, %v3639
  %v3670 = vpack.c.b16 %v3644, %v3642
  %v3671 = vpack.c.b16 %v3645, %v3643
  %v3672 = vpack.c.b16 %v3648, %v3646
  %v3673 = vpack.c.b16 %v3649, %v3647
  %v3674 = vpack.c.b16 %v3652, %v3650
  %v3675 = vpack.c.b16 %v3653, %v3651
  %v3676 = vpack.c.b16 %v3656, %v3654
  %v3677 = vpack.c.b16 %v3657, %v3655
  %v3678 = vpack.c.b16 %v3660, %v3658
  %v3679 = vpack.c.b16 %v3661, %v3659
  %v3699 = vsel %vm1361, %v3606, 0
  %3701 = vmatprep.subr.bf16.mxu0 %v3677
  %3702 = vmatpush1.bf16.msra.mxu0 %v3676
  %3703 = vmatprep.subr.bf16.mxu0 %v3675
  %3704 = vmatpush1.bf16.msra.mxu0 %v3674
  %3705 = vmatprep.subr.bf16.mxu0 %v3673
  %3706 = vmatpush1.bf16.msra.mxu0 %v3672
  %3707 = vmatprep.subr.bf16.mxu0 %v3671
  %3708 = vmatpush1.bf16.msra.mxu0 %v3670
  %3709 = vmatprep.subr.bf16.mxu0 %v3669
  %3710 = vmatpush1.bf16.msra.mxu0 %v3668
  %3711 = vmatprep.subr.bf16.mxu0 %v3667
  %3712 = vmatpush1.bf16.msra.mxu0 %v3666
  %3713 = vmatprep.subr.bf16.mxu0 %v3665
  %3714 = vmatpush1.bf16.msra.mxu0 %v3664
  %3715 = vmatprep.subr.bf16.mxu0 %v3663
  %3716 = vmatpush1.bf16.msra.mxu0 %v3662
  %3717 = vmatprep.subr.bf16.mxu0 0
  %3718 = vmatpush2.bf16.msra.mxu0 0
  %3719 = vmatprep.subr.bf16.mxu0 0
  %3720 = vmatpush2.bf16.msra.mxu0 0
  %3721 = vmatprep.subr.bf16.mxu0 0
  %3722 = vmatpush2.bf16.msra.mxu0 0
  %3723 = vmatprep.subr.bf16.mxu0 0
  %3724 = vmatpush2.bf16.msra.mxu0 0
  %3725 = vmatprep.subr.bf16.mxu0 0
  %3726 = vmatpush2.bf16.msra.mxu0 0
  %3727 = vmatprep.subr.bf16.mxu0 0
  %3728 = vmatpush2.bf16.msra.mxu0 0
  %3729 = vmatprep.subr.bf16.mxu0 0
  %3730 = vmatpush2.bf16.msra.mxu0 0
  %3731 = vmatprep.subr.bf16.mxu0 %v3679
  %3732 = vmatpush2.bf16.msra.mxu0 %v3678
  %3733 = vmatprep.mubr.bf16.mxu0 %v3699
  %3734 = vmatmul.mubr.bf16.gmra.mxu0 %v3605
  %v3735 = vpop.f32.mrf.mxu0
  %v3736 = vadd.f32 0.0, %v3735
  %v3737 = vpop.f32.mrf.mxu0
  %v3738 = vadd.f32 0.0, %v3737
  %v3739 = vpop.f32.mrf.mxu0
  %v3740 = vpop.f32.mrf.mxu0
  %3741 = vdwg.mxu0
  %v3742 = vadd.f32 %v3579, %v3736
  %v3743 = vadd.f32 %v3580, %v3738
  %3744 = vst [vmem:[#allocation3] sm:$0xff] %v3742
  %3745 = vst [vmem:[#allocation3 + $0x8] sm:$0xff] %v3743
  %v3746 = vld [vmem:[#allocation3] sm:$0xff]
  %v3747 = vld [vmem:[#allocation3 + $0x8] sm:$0xff]
  %s3748 = scalar_lea.vmem [#allocation2], 120
  %v3749 = vld [vmem:[%s3748] sm:$0xff]
  %s3750 = scalar_lea.vmem %s3, 2160
  %v3751 = vld [vmem:[%s3750] sm:$0xff]
  %v3752 = vld [vmem:[%s3750 + $0x8] sm:$0xff]
  %v3753 = vld [vmem:[%s3750 + $0x10] sm:$0xff]
  %v3754 = vld [vmem:[%s3750 + $0x18] sm:$0xff]
  %v3755 = vld [vmem:[%s3750 + $0x20] sm:$0xff]
  %v3756 = vld [vmem:[%s3750 + $0x28] sm:$0xff]
  %v3757 = vld [vmem:[%s3750 + $0x30] sm:$0xff]
  %v3758 = vld [vmem:[%s3750 + $0x38] sm:$0xff]
  %v3759 = vld [vmem:[%s3750 + $0x40] sm:$0xff]
  %v3760 = vld [vmem:[%s3750 + $0x48] sm:$0xff]
  %v3761 = vld [vmem:[%s3750 + $0x50] sm:$0xff]
  %v3762 = vld [vmem:[%s3750 + $0x58] sm:$0xff]
  %v3763 = vld [vmem:[%s3750 + $0x60] sm:$0xff]
  %v3764 = vld [vmem:[%s3750 + $0x68] sm:$0xff]
  %v3765 = vld [vmem:[%s3750 + $0x70] sm:$0xff]
  %v3766 = vld [vmem:[%s3750 + $0x78] sm:$0xff]
  %v3767 = vld [vmem:[%s3750 + $0x80] sm:$0xff]
  %v3768 = vld [vmem:[%s3750 + $0x88] sm:$0xff]
  %v3770 = vunpack.c.l.b16 %v3749
  %v3771 = vunpack.c.h.b16 %v3749
  %v3772 = vpack.c.b16 %v3770, %v3770
  %v3773 = vpack.c.b16 %v3771, %v3771
  %v3793 = vunpack.c.l.b16 %v3751
  %v3794 = vunpack.c.h.b16 %v3751
  %v3795 = vunpack.c.l.b16 %v3752
  %v3796 = vunpack.c.h.b16 %v3752
  %v3797 = vunpack.c.l.b16 %v3753
  %v3798 = vunpack.c.h.b16 %v3753
  %v3799 = vunpack.c.l.b16 %v3754
  %v3800 = vunpack.c.h.b16 %v3754
  %v3801 = vunpack.c.l.b16 %v3755
  %v3802 = vunpack.c.h.b16 %v3755
  %v3803 = vunpack.c.l.b16 %v3756
  %v3804 = vunpack.c.h.b16 %v3756
  %v3805 = vunpack.c.l.b16 %v3757
  %v3806 = vunpack.c.h.b16 %v3757
  %v3807 = vunpack.c.l.b16 %v3758
  %v3808 = vunpack.c.h.b16 %v3758
  %v3809 = vunpack.c.l.b16 %v3759
  %v3810 = vunpack.c.h.b16 %v3759
  %v3811 = vunpack.c.l.b16 %v3760
  %v3812 = vunpack.c.h.b16 %v3760
  %v3813 = vunpack.c.l.b16 %v3761
  %v3814 = vunpack.c.h.b16 %v3761
  %v3815 = vunpack.c.l.b16 %v3762
  %v3816 = vunpack.c.h.b16 %v3762
  %v3817 = vunpack.c.l.b16 %v3763
  %v3818 = vunpack.c.h.b16 %v3763
  %v3819 = vunpack.c.l.b16 %v3764
  %v3820 = vunpack.c.h.b16 %v3764
  %v3821 = vunpack.c.l.b16 %v3765
  %v3822 = vunpack.c.h.b16 %v3765
  %v3823 = vunpack.c.l.b16 %v3766
  %v3824 = vunpack.c.h.b16 %v3766
  %v3825 = vunpack.c.l.b16 %v3767
  %v3826 = vunpack.c.h.b16 %v3767
  %v3827 = vunpack.c.l.b16 %v3768
  %v3828 = vunpack.c.h.b16 %v3768
  %v3829 = vpack.c.b16 %v3795, %v3793
  %v3830 = vpack.c.b16 %v3796, %v3794
  %v3831 = vpack.c.b16 %v3799, %v3797
  %v3832 = vpack.c.b16 %v3800, %v3798
  %v3833 = vpack.c.b16 %v3803, %v3801
  %v3834 = vpack.c.b16 %v3804, %v3802
  %v3835 = vpack.c.b16 %v3807, %v3805
  %v3836 = vpack.c.b16 %v3808, %v3806
  %v3837 = vpack.c.b16 %v3811, %v3809
  %v3838 = vpack.c.b16 %v3812, %v3810
  %v3839 = vpack.c.b16 %v3815, %v3813
  %v3840 = vpack.c.b16 %v3816, %v3814
  %v3841 = vpack.c.b16 %v3819, %v3817
  %v3842 = vpack.c.b16 %v3820, %v3818
  %v3843 = vpack.c.b16 %v3823, %v3821
  %v3844 = vpack.c.b16 %v3824, %v3822
  %v3845 = vpack.c.b16 %v3827, %v3825
  %v3846 = vpack.c.b16 %v3828, %v3826
  %v3866 = vsel %vm1361, %v3773, 0
  %3868 = vmatprep.subr.bf16.mxu0 %v3844
  %3869 = vmatpush1.bf16.msra.mxu0 %v3843
  %3870 = vmatprep.subr.bf16.mxu0 %v3842
  %3871 = vmatpush1.bf16.msra.mxu0 %v3841
  %3872 = vmatprep.subr.bf16.mxu0 %v3840
  %3873 = vmatpush1.bf16.msra.mxu0 %v3839
  %3874 = vmatprep.subr.bf16.mxu0 %v3838
  %3875 = vmatpush1.bf16.msra.mxu0 %v3837
  %3876 = vmatprep.subr.bf16.mxu0 %v3836
  %3877 = vmatpush1.bf16.msra.mxu0 %v3835
  %3878 = vmatprep.subr.bf16.mxu0 %v3834
  %3879 = vmatpush1.bf16.msra.mxu0 %v3833
  %3880 = vmatprep.subr.bf16.mxu0 %v3832
  %3881 = vmatpush1.bf16.msra.mxu0 %v3831
  %3882 = vmatprep.subr.bf16.mxu0 %v3830
  %3883 = vmatpush1.bf16.msra.mxu0 %v3829
  %3884 = vmatprep.subr.bf16.mxu0 0
  %3885 = vmatpush2.bf16.msra.mxu0 0
  %3886 = vmatprep.subr.bf16.mxu0 0
  %3887 = vmatpush2.bf16.msra.mxu0 0
  %3888 = vmatprep.subr.bf16.mxu0 0
  %3889 = vmatpush2.bf16.msra.mxu0 0
  %3890 = vmatprep.subr.bf16.mxu0 0
  %3891 = vmatpush2.bf16.msra.mxu0 0
  %3892 = vmatprep.subr.bf16.mxu0 0
  %3893 = vmatpush2.bf16.msra.mxu0 0
  %3894 = vmatprep.subr.bf16.mxu0 0
  %3895 = vmatpush2.bf16.msra.mxu0 0
  %3896 = vmatprep.subr.bf16.mxu0 0
  %3897 = vmatpush2.bf16.msra.mxu0 0
  %3898 = vmatprep.subr.bf16.mxu0 %v3846
  %3899 = vmatpush2.bf16.msra.mxu0 %v3845
  %3900 = vmatprep.mubr.bf16.mxu0 %v3866
  %3901 = vmatmul.mubr.bf16.gmra.mxu0 %v3772
  %v3902 = vpop.f32.mrf.mxu0
  %v3903 = vadd.f32 0.0, %v3902
  %v3904 = vpop.f32.mrf.mxu0
  %v3905 = vadd.f32 0.0, %v3904
  %v3906 = vpop.f32.mrf.mxu0
  %v3907 = vpop.f32.mrf.mxu0
  %3908 = vdwg.mxu0
  %v3909 = vadd.f32 %v3746, %v3903
  %v3910 = vadd.f32 %v3747, %v3905
  %3911 = vst [vmem:[#allocation3] sm:$0xff] %v3909
  %3912 = vst [vmem:[#allocation3 + $0x8] sm:$0xff] %v3910
  %v3913 = vld [vmem:[#allocation3] sm:$0xff]
  %v3914 = vld [vmem:[#allocation3 + $0x8] sm:$0xff]
  %v3915 = vld [vmem:[%s4] sm:$0x3]
  %v3917 = vlaneseq
  %v3918 = vshrl.u32 %v3917, 7
  %v3919 = vsub.s32 0, %v3918
  %v3920 = vrot.slane %v3915, %v3919
  %v3921 = vlaneseq
  %v3922 = vshrl.u32 %v3921, 7
  %v3923 = vsub.s32 1, %v3922
  %v3924 = vrot.slane %v3915, %v3923
  %v3927 = vadd.f32 %v3913, %v3920
  %v3928 = vadd.f32 %v3914, %v3924
  %v3929 = vmax.f32 %v3927, 0.0
  %v3930 = vmax.f32 %v3928, 0.0
  %v3931 = vld [vmem:[%s5] sm:$0xff]
  %v3932 = vld [vmem:[%s5 + $0x8] sm:$0xff]
  %v3933 = vld [vmem:[%s5 + $0x10] sm:$0xff]
  %v3934 = vld [vmem:[%s5 + $0x18] sm:$0xff]
  %v3935 = vld [vmem:[%s5 + $0x20] sm:$0xff]
  %v3936 = vld [vmem:[%s5 + $0x28] sm:$0xff]
  %v3937 = vld [vmem:[%s5 + $0x30] sm:$0xff]
  %v3938 = vld [vmem:[%s5 + $0x38] sm:$0xff]
  %v3939 = vld [vmem:[%s5 + $0x40] sm:$0xff]
  %v3940 = vld [vmem:[%s5 + $0x48] sm:$0xff]
  %v3941 = vld [vmem:[%s5 + $0x50] sm:$0xff]
  %v3942 = vld [vmem:[%s5 + $0x58] sm:$0xff]
  %v3943 = vld [vmem:[%s5 + $0x60] sm:$0xff]
  %v3944 = vld [vmem:[%s5 + $0x68] sm:$0xff]
  %v3945 = vld [vmem:[%s5 + $0x70] sm:$0xff]
  %v3946 = vld [vmem:[%s5 + $0x78] sm:$0xff]
  %v3947 = vld [vmem:[%s5 + $0x80] sm:$0xff]
  %v3948 = vld [vmem:[%s5 + $0x88] sm:$0xff]
  %v3949 = vld [vmem:[%s5 + $0x90] sm:$0xff]
  %v3950 = vld [vmem:[%s5 + $0x98] sm:$0xff]
  %v3951 = vld [vmem:[%s5 + $0xa0] sm:$0xff]
  %v3952 = vld [vmem:[%s5 + $0xa8] sm:$0xff]
  %v3953 = vld [vmem:[%s5 + $0xb0] sm:$0xff]
  %v3954 = vld [vmem:[%s5 + $0xb8] sm:$0xff]
  %v3955 = vld [vmem:[%s5 + $0xc0] sm:$0xff]
  %v3956 = vld [vmem:[%s5 + $0xc8] sm:$0xff]
  %v3957 = vld [vmem:[%s5 + $0xd0] sm:$0xff]
  %v3958 = vld [vmem:[%s5 + $0xd8] sm:$0xff]
  %v3959 = vld [vmem:[%s5 + $0xe0] sm:$0xff]
  %v3960 = vld [vmem:[%s5 + $0xe8] sm:$0xff]
  %v3961 = vld [vmem:[%s5 + $0xf0] sm:$0xff]
  %v3962 = vld [vmem:[%s5 + $0xf8] sm:$0xff]
  %v3963 = vld [vmem:[%s6] sm:$0x1]
  %v3965 = vlaneseq
  %v3966 = vshrl.u32 %v3965, 7
  %v3967 = vsub.s32 0, %v3966
  %v3968 = vrot.slane %v3963, %v3967
  %3970 = vmatprep.subr.mxu0 0.0
  %3971 = vmatpush1.msra.mxu0 %v3946
  %3972 = vmatprep.subr.mxu0 0.0
  %3973 = vmatpush1.msra.mxu0 %v3945
  %3974 = vmatprep.subr.mxu0 0.0
  %3975 = vmatpush1.msra.mxu0 %v3944
  %3976 = vmatprep.subr.mxu0 0.0
  %3977 = vmatpush1.msra.mxu0 %v3943
  %3978 = vmatprep.subr.mxu0 0.0
  %3979 = vmatpush1.msra.mxu0 %v3942
  %3980 = vmatprep.subr.mxu0 0.0
  %3981 = vmatpush1.msra.mxu0 %v3941
  %3982 = vmatprep.subr.mxu0 0.0
  %3983 = vmatpush1.msra.mxu0 %v3940
  %3984 = vmatprep.subr.mxu0 0.0
  %3985 = vmatpush1.msra.mxu0 %v3939
  %3986 = vmatprep.subr.mxu0 0.0
  %3987 = vmatpush1.msra.mxu0 %v3938
  %3988 = vmatprep.subr.mxu0 0.0
  %3989 = vmatpush1.msra.mxu0 %v3937
  %3990 = vmatprep.subr.mxu0 0.0
  %3991 = vmatpush1.msra.mxu0 %v3936
  %3992 = vmatprep.subr.mxu0 0.0
  %3993 = vmatpush1.msra.mxu0 %v3935
  %3994 = vmatprep.subr.mxu0 0.0
  %3995 = vmatpush1.msra.mxu0 %v3934
  %3996 = vmatprep.subr.mxu0 0.0
  %3997 = vmatpush1.msra.mxu0 %v3933
  %3998 = vmatprep.subr.mxu0 0.0
  %3999 = vmatpush1.msra.mxu0 %v3932
  %4000 = vmatprep.subr.mxu0 0.0
  %4001 = vmatpush1.msra.mxu0 %v3931
  %4002 = vmatprep.subr.mxu0 0.0
  %4003 = vmatpush2.msra.mxu0 %v3962
  %4004 = vmatprep.subr.mxu0 0.0
  %4005 = vmatpush2.msra.mxu0 %v3961
  %4006 = vmatprep.subr.mxu0 0.0
  %4007 = vmatpush2.msra.mxu0 %v3960
  %4008 = vmatprep.subr.mxu0 0.0
  %4009 = vmatpush2.msra.mxu0 %v3959
  %4010 = vmatprep.subr.mxu0 0.0
  %4011 = vmatpush2.msra.mxu0 %v3958
  %4012 = vmatprep.subr.mxu0 0.0
  %4013 = vmatpush2.msra.mxu0 %v3957
  %4014 = vmatprep.subr.mxu0 0.0
  %4015 = vmatpush2.msra.mxu0 %v3956
  %4016 = vmatprep.subr.mxu0 0.0
  %4017 = vmatpush2.msra.mxu0 %v3955
  %4018 = vmatprep.subr.mxu0 0.0
  %4019 = vmatpush2.msra.mxu0 %v3954
  %4020 = vmatprep.subr.mxu0 0.0
  %4021 = vmatpush2.msra.mxu0 %v3953
  %4022 = vmatprep.subr.mxu0 0.0
  %4023 = vmatpush2.msra.mxu0 %v3952
  %4024 = vmatprep.subr.mxu0 0.0
  %4025 = vmatpush2.msra.mxu0 %v3951
  %4026 = vmatprep.subr.mxu0 0.0
  %4027 = vmatpush2.msra.mxu0 %v3950
  %4028 = vmatprep.subr.mxu0 0.0
  %4029 = vmatpush2.msra.mxu0 %v3949
  %4030 = vmatprep.subr.mxu0 0.0
  %4031 = vmatpush2.msra.mxu0 %v3948
  %4032 = vmatprep.subr.mxu0 0.0
  %4033 = vmatpush2.msra.mxu0 %v3947
  %4034 = vmatprep.mubr.f32.mxu0 %v3930
  %4035 = vmatmul.mubr.f32.gmra.mxu0 %v3929
  %v4036 = vpop.f32.mrf.mxu0
  %v4037 = vadd.f32 %v3968, %v4036
  %v4038 = vpop.f32.mrf.mxu0
  %4039 = vdwg.mxu0
  %vm4040 = vcmask 80896
  %4041 = vst.msk [vmem:[%s7] sm:$0xff] %vm4040, %v4037
  // Predicated region
  $region30: #{model2_forward.1} parent=0 // pred_check
    _
  $region31: #{model2_forward.1} parent=0 // pred_check_branch
    %4043 = sbr.rel (0) target = $region33
  $region32: #{model2_forward.1} parent=0 // pred_region
    _
  $region33: #{model2_forward.1} parent=0 // pred_fallthru
    _
  // Predicated region
  $region34: #{model2_forward.1} parent=0 // pred_check
    _
  $region35: #{model2_forward.1} parent=0 // pred_check_branch
    %4045 = sbr.rel (0) target = $region37
  $region36: #{model2_forward.1} parent=0 // pred_region
    _
  $region37: #{model2_forward.1} parent=0 // pred_fallthru
    _

</llo_original>
